<compile_context>
chip_gen: v7x
topology: tpu7x:2x2x1
jax: 0.10.0
libtpu: 0.0.40
codegen_flags: <defaults>
</compile_context>

<pallas_src>
import functools

import jax
import jax.numpy as jnp
from jax.experimental import pallas as pl
from jax.experimental.pallas import tpu as pltpu


def decoder_kernel(latent_ref, w_l2h_ref, b_l2h_ref,
                   w_hh_ref, w_ih_ref, b_gate_ref,
                   w_ho_ref, b_ho_ref,
                   out_ref,
                   hs_scr,
                   *, seq_len, num_layers, hidden_size, unroll):
    """Whole decoder forward in one invocation; h/c live in the loop carry."""
    H = hidden_size
    L = num_layers
    B = latent_ref.shape[0]

    # --- latent -> hidden (Linear; weight already transposed to (Z, H)) -------
    h0 = (jnp.dot(latent_ref[...], w_l2h_ref[...],
                  preferred_element_type=jnp.float32) + b_l2h_ref[...])

    # --- hoist loop-invariant weight/bias loads & broadcasts ------------------
    # Gate columns are pre-reordered host-side to (i, f, o, g).
    w_hh = [w_hh_ref[l] for l in range(L)]                      # (H, 4H) each
    w_ih = [w_ih_ref[l - 1] for l in range(1, L)]               # (H, 4H) each, layers 1..L-1
    b_g = [jnp.broadcast_to(b_gate_ref[l], (B, 4 * H)) for l in range(L)]

    h_init = tuple(h0 for _ in range(L))
    c_init = tuple(jnp.zeros((B, H), jnp.float32) for _ in range(L))

    def cell(x, h_prev, c_prev, w_i, w_h, b):
        # decoder input is all zeros at layer 0 -> skip that input GEMM.
        gates = jnp.dot(h_prev, w_h, preferred_element_type=jnp.float32) + b
        if w_i is not None:
            gates = gates + jnp.dot(x, w_i, preferred_element_type=jnp.float32)
        sfo = jax.nn.sigmoid(gates[:, :3 * H])                  # i | f | o (contiguous)
        g = jnp.tanh(gates[:, 3 * H:])
        i = sfo[:, 0 * H:1 * H]
        f = sfo[:, 1 * H:2 * H]
        o = sfo[:, 2 * H:3 * H]
        c = f * c_prev + i * g
        h = o * jnp.tanh(c)
        return h, c

    def step(t, carry):
        hs, cs = carry
        new_h, new_c = [], []
        x = None
        for l in range(L):
            w_i = None if l == 0 else w_ih[l - 1]
            h, c = cell(x, hs[l], cs[l], w_i, w_hh[l], b_g[l])
            new_h.append(h)
            new_c.append(c)
            x = h
        hs_scr[t] = x                                           # stage final-layer hidden
        return (tuple(new_h), tuple(new_c))

    jax.lax.fori_loop(0, seq_len, step, (h_init, c_init), unroll=unroll)

    # --- hidden -> output: ONE GEMM + one dense writeback after the loop ------
    hs_flat = hs_scr[...].reshape(seq_len * B, H)
    y = (jnp.dot(hs_flat, w_ho_ref[...], preferred_element_type=jnp.float32)
         + b_ho_ref[...])
    out_ref[...] = y.reshape(seq_len, B, -1).astype(out_ref.dtype)


def _reorder_gate_cols(w):
    """Reorder the last (4H) axis from PyTorch (i, f, g, o) to (i, f, o, g)."""
    H = w.shape[-1] // 4
    return jnp.concatenate([w[..., :2 * H], w[..., 3 * H:], w[..., 2 * H:3 * H]],
                           axis=-1)


def decoder_forward(latent, params, *, seq_len, num_layers, hidden_size, output_size):
    B = latent.shape[0]
    H = hidden_size

    # --- host-side weight packing (zero-cost layout work) ---------------------
    w_l2h_t = jnp.transpose(params["w_l2h"])                     # (Z, H)
    w_hh_t = _reorder_gate_cols(jnp.swapaxes(params["w_hh"], 1, 2))   # (L, H, 4H)
    w_ih_t = _reorder_gate_cols(jnp.swapaxes(params["w_ih"], 1, 2))   # (L, H, 4H)
    # Layer 0's input is identically zero -> its input weight is dead; ship only
    # layers 1..L-1 (placeholder if the stack has a single layer).
    if num_layers > 1:
        w_ih_rest = w_ih_t[1:]                                   # (L-1, H, 4H)
    else:
        w_ih_rest = jnp.zeros((1, H, 4 * H), jnp.float32)        # never read
    b_gate = _reorder_gate_cols(params["b_ih"] + params["b_hh"])  # (L, 1, 4H)
    w_ho_t = jnp.transpose(params["w_ho"])                       # (H, O)

    unroll = True if seq_len <= 16 else 8

    kernel = functools.partial(decoder_kernel, seq_len=seq_len,
                               num_layers=num_layers, hidden_size=hidden_size,
                               unroll=unroll)

    vmem = lambda: pl.BlockSpec(memory_space=pltpu.MemorySpace.VMEM)

    # NOTE: at large H/L (e.g. H>=1024 on v7x's 64 MiB VMEM) weights should be
    # bf16 or DMA'd per layer; at these shapes full VMEM residency is fine.
    return pl.pallas_call(
        kernel,
        out_shape=jax.ShapeDtypeStruct((seq_len, B, output_size), jnp.float32),
        in_specs=[vmem() for _ in range(8)],
        out_specs=vmem(),
        scratch_shapes=[
            pltpu.VMEM((seq_len, B, hidden_size), jnp.float32),  # staged final-layer h
        ],
    )(latent, w_l2h_t, params["b_l2h"], w_hh_t, w_ih_rest, b_gate,
      w_ho_t, params["b_ho"])


def decoder_reference(latent, params, *, seq_len, num_layers, hidden_size):
    """Pure-JAX reference with identical semantics (PyTorch-layout params)."""
    H = hidden_size
    B = latent.shape[0]
    h0 = latent @ params["w_l2h"].T + params["b_l2h"]
    h = jnp.stack([h0] * num_layers)
    c = jnp.zeros_like(h)
    outs = []
    for _ in range(seq_len):
        x = jnp.zeros((B, H), jnp.float32)
        new_h, new_c = [], []
        for l in range(num_layers):
            gates = (x @ params["w_ih"][l].T + params["b_ih"][l]
                     + h[l] @ params["w_hh"][l].T + params["b_hh"][l])
            i = jax.nn.sigmoid(gates[:, 0 * H:1 * H])
            f = jax.nn.sigmoid(gates[:, 1 * H:2 * H])
            g = jnp.tanh(gates[:, 2 * H:3 * H])
            o = jax.nn.sigmoid(gates[:, 3 * H:4 * H])
            cl = f * c[l] + i * g
            hl = o * jnp.tanh(cl)
            new_h.append(hl)
            new_c.append(cl)
            x = hl
        h, c = jnp.stack(new_h), jnp.stack(new_c)
        outs.append(x @ params["w_ho"].T + params["b_ho"])
    return jnp.stack(outs)


if __name__ == "__main__":
    # Small shapes consistent with the module's __init__.
    sequence_length = 8
    batch_size = 2
    hidden_size = 32
    hidden_layer_depth = 2
    latent_length = 16
    output_size = 2

    key = jax.random.PRNGKey(0)
    ks = jax.random.split(key, 8)
    H, Z, L = hidden_size, latent_length, hidden_layer_depth
    s = 1.0 / jnp.sqrt(jnp.float32(H))

    params = {
        # latent_to_hidden (xavier-scale uniform init, deterministic)
        "w_l2h": jax.random.uniform(ks[0], (H, Z), jnp.float32, -0.3, 0.3),
        "b_l2h": jax.random.uniform(ks[1], (1, H), jnp.float32, -0.1, 0.1),
        # LSTM weights stacked per layer: (L, 4H, H).  Layer 0's true input size
        # is 1, but its input is identically zero, so the padded layer-0 W_ih is
        # never used (mathematically identical to PyTorch's (4H, 1) weight).
        "w_ih": jax.random.uniform(ks[2], (L, 4 * H, H), jnp.float32, -s, s),
        "w_hh": jax.random.uniform(ks[3], (L, 4 * H, H), jnp.float32, -s, s),
        "b_ih": jax.random.uniform(ks[4], (L, 1, 4 * H), jnp.float32, -s, s),
        "b_hh": jax.random.uniform(ks[5], (L, 1, 4 * H), jnp.float32, -s, s),
        # hidden_to_output
        "w_ho": jax.random.uniform(ks[6], (output_size, H), jnp.float32, -0.3, 0.3),
        "b_ho": jax.random.uniform(ks[7], (1, output_size), jnp.float32, -0.1, 0.1),
    }

    latent = jax.random.normal(jax.random.PRNGKey(1), (batch_size, latent_length),
                               jnp.float32)

    # TODO(synk): the GRU branch of the original module is not implemented; only
    # the default block='LSTM' path is translated.
    out = decoder_forward(latent, params,
                          seq_len=sequence_length, num_layers=L,
                          hidden_size=H, output_size=output_size)
    out = jax.block_until_ready(out)

    ref = decoder_reference(latent, params,
                            seq_len=sequence_length, num_layers=L, hidden_size=H)
    assert out.shape == (sequence_length, batch_size, output_size)
    assert jnp.allclose(out, ref, atol=1e-4, rtol=1e-4)
    print("KERNEL_OK")
</pallas_src>

<mosaic_0001>
module attributes {stable_mosaic.version = 11 : i64} {
  func.func @decoder_kernel(%arg0: memref<2x16xf32, #tpu.memory_space<vmem>>, %arg1: memref<16x32xf32, #tpu.memory_space<vmem>>, %arg2: memref<1x32xf32, #tpu.memory_space<vmem>>, %arg3: memref<2x32x128xf32, #tpu.memory_space<vmem>>, %arg4: memref<1x32x128xf32, #tpu.memory_space<vmem>>, %arg5: memref<2x1x128xf32, #tpu.memory_space<vmem>>, %arg6: memref<32x2xf32, #tpu.memory_space<vmem>>, %arg7: memref<1x2xf32, #tpu.memory_space<vmem>>, %arg8: memref<8x2x2xf32, #tpu.memory_space<vmem>>, %arg9: memref<8x2x32xf32, #tpu.memory_space<vmem>>) attributes {dimension_semantics = [], scalar_prefetch = 0 : i64, scratch_operands = 1 : i64, tpu.core_type = #tpu.core_type<tc>} {
    %c0 = arith.constant 0 : index
    %c0_0 = arith.constant 0 : index
    %0 = vector.load %arg0[%c0, %c0_0] : memref<2x16xf32, #tpu.memory_space<vmem>>, vector<2x16xf32>
    %c0_1 = arith.constant 0 : index
    %c0_2 = arith.constant 0 : index
    %1 = vector.load %arg1[%c0_1, %c0_2] : memref<16x32xf32, #tpu.memory_space<vmem>>, vector<16x32xf32>
    %cst = arith.constant dense<0.000000e+00> : vector<2x32xf32>
    %2 = tpu.matmul %0, %1, %cst {dimension_numbers = #tpu.dot_dimension_numbers<[1], [0], [0], [1], [0, 0, 1, 1], [], []>} : vector<2x16xf32>, vector<16x32xf32>, vector<2x32xf32> -> vector<2x32xf32>
    %c0_3 = arith.constant 0 : index
    %c0_4 = arith.constant 0 : index
    %3 = vector.load %arg2[%c0_3, %c0_4] : memref<1x32xf32, #tpu.memory_space<vmem>>, vector<1x32xf32>
    %4 = vector.broadcast %3 : vector<1x32xf32> to vector<2x32xf32>
    %5 = arith.addf %2, %4 : vector<2x32xf32>
    %c0_5 = arith.constant 0 : index
    %c0_6 = arith.constant 0 : index
    %c0_7 = arith.constant 0 : index
    %6 = vector.load %arg3[%c0_5, %c0_6, %c0_7] : memref<2x32x128xf32, #tpu.memory_space<vmem>>, vector<1x32x128xf32>
    %7 = vector.shape_cast %6 : vector<1x32x128xf32> to vector<32x128xf32>
    %c1 = arith.constant 1 : index
    %c0_8 = arith.constant 0 : index
    %c0_9 = arith.constant 0 : index
    %8 = vector.load %arg3[%c1, %c0_8, %c0_9] : memref<2x32x128xf32, #tpu.memory_space<vmem>>, vector<1x32x128xf32>
    %9 = vector.shape_cast %8 : vector<1x32x128xf32> to vector<32x128xf32>
    %c0_10 = arith.constant 0 : index
    %c0_11 = arith.constant 0 : index
    %c0_12 = arith.constant 0 : index
    %10 = vector.load %arg4[%c0_10, %c0_11, %c0_12] : memref<1x32x128xf32, #tpu.memory_space<vmem>>, vector<1x32x128xf32>
    %11 = vector.shape_cast %10 : vector<1x32x128xf32> to vector<32x128xf32>
    %c0_13 = arith.constant 0 : index
    %c0_14 = arith.constant 0 : index
    %c0_15 = arith.constant 0 : index
    %12 = vector.load %arg5[%c0_13, %c0_14, %c0_15] : memref<2x1x128xf32, #tpu.memory_space<vmem>>, vector<1x1x128xf32>
    %13 = vector.shape_cast %12 : vector<1x1x128xf32> to vector<1x128xf32>
    %14 = vector.shape_cast %13 : vector<1x128xf32> to vector<1x128xf32>
    %15 = vector.broadcast %14 : vector<1x128xf32> to vector<2x128xf32>
    %c1_16 = arith.constant 1 : index
    %c0_17 = arith.constant 0 : index
    %c0_18 = arith.constant 0 : index
    %16 = vector.load %arg5[%c1_16, %c0_17, %c0_18] : memref<2x1x128xf32, #tpu.memory_space<vmem>>, vector<1x1x128xf32>
    %17 = vector.shape_cast %16 : vector<1x1x128xf32> to vector<1x128xf32>
    %18 = vector.shape_cast %17 : vector<1x128xf32> to vector<1x128xf32>
    %19 = vector.broadcast %18 : vector<1x128xf32> to vector<2x128xf32>
    %cst_19 = arith.constant 0.000000e+00 : f32
    %20 = vector.broadcast %cst_19 : f32 to vector<2x32xf32>
    %cst_20 = arith.constant 0.000000e+00 : f32
    %21 = vector.broadcast %cst_20 : f32 to vector<2x32xf32>
    %c0_i32 = arith.constant 0 : i32
    %cst_21 = arith.constant dense<0.000000e+00> : vector<2x128xf32>
    %22 = tpu.matmul %5, %7, %cst_21 {dimension_numbers = #tpu.dot_dimension_numbers<[1], [0], [0], [1], [0, 0, 1, 1], [], []>} : vector<2x32xf32>, vector<32x128xf32>, vector<2x128xf32> -> vector<2x128xf32>
    %23 = arith.addf %22, %15 : vector<2x128xf32>
    %24 = vector.extract_strided_slice %23 {offsets = [0, 0], sizes = [2, 96], strides = [1, 1]} : vector<2x128xf32> to vector<2x96xf32>
    %25 = arith.negf %24 : vector<2x96xf32>
    %26 = math.exp %25 : vector<2x96xf32>
    %cst_22 = arith.constant 1.000000e+00 : f32
    %27 = vector.broadcast %cst_22 : f32 to vector<2x96xf32>
    %28 = arith.addf %27, %26 : vector<2x96xf32>
    %29 = arith.divf %27, %28 : vector<2x96xf32>
    %30 = vector.extract_strided_slice %23 {offsets = [0, 96], sizes = [2, 32], strides = [1, 1]} : vector<2x128xf32> to vector<2x32xf32>
    %31 = math.tanh %30 : vector<2x32xf32>
    %32 = vector.extract_strided_slice %29 {offsets = [0, 0], sizes = [2, 32], strides = [1, 1]} : vector<2x96xf32> to vector<2x32xf32>
    %33 = vector.extract_strided_slice %29 {offsets = [0, 32], sizes = [2, 32], strides = [1, 1]} : vector<2x96xf32> to vector<2x32xf32>
    %34 = vector.extract_strided_slice %29 {offsets = [0, 64], sizes = [2, 32], strides = [1, 1]} : vector<2x96xf32> to vector<2x32xf32>
    %35 = arith.mulf %33, %20 : vector<2x32xf32>
    %36 = arith.mulf %32, %31 : vector<2x32xf32>
    %37 = arith.addf %35, %36 : vector<2x32xf32>
    %38 = math.tanh %37 : vector<2x32xf32>
    %39 = arith.mulf %34, %38 : vector<2x32xf32>
    %cst_23 = arith.constant dense<0.000000e+00> : vector<2x128xf32>
    %40 = tpu.matmul %5, %9, %cst_23 {dimension_numbers = #tpu.dot_dimension_numbers<[1], [0], [0], [1], [0, 0, 1, 1], [], []>} : vector<2x32xf32>, vector<32x128xf32>, vector<2x128xf32> -> vector<2x128xf32>
    %41 = arith.addf %40, %19 : vector<2x128xf32>
    %cst_24 = arith.constant dense<0.000000e+00> : vector<2x128xf32>
    %42 = tpu.matmul %39, %11, %cst_24 {dimension_numbers = #tpu.dot_dimension_numbers<[1], [0], [0], [1], [0, 0, 1, 1], [], []>} : vector<2x32xf32>, vector<32x128xf32>, vector<2x128xf32> -> vector<2x128xf32>
    %43 = arith.addf %41, %42 : vector<2x128xf32>
    %44 = vector.extract_strided_slice %43 {offsets = [0, 0], sizes = [2, 96], strides = [1, 1]} : vector<2x128xf32> to vector<2x96xf32>
    %45 = arith.negf %44 : vector<2x96xf32>
    %46 = math.exp %45 : vector<2x96xf32>
    %cst_25 = arith.constant 1.000000e+00 : f32
    %47 = vector.broadcast %cst_25 : f32 to vector<2x96xf32>
    %48 = arith.addf %47, %46 : vector<2x96xf32>
    %49 = arith.divf %47, %48 : vector<2x96xf32>
    %50 = vector.extract_strided_slice %43 {offsets = [0, 96], sizes = [2, 32], strides = [1, 1]} : vector<2x128xf32> to vector<2x32xf32>
    %51 = math.tanh %50 : vector<2x32xf32>
    %52 = vector.extract_strided_slice %49 {offsets = [0, 0], sizes = [2, 32], strides = [1, 1]} : vector<2x96xf32> to vector<2x32xf32>
    %53 = vector.extract_strided_slice %49 {offsets = [0, 32], sizes = [2, 32], strides = [1, 1]} : vector<2x96xf32> to vector<2x32xf32>
    %54 = vector.extract_strided_slice %49 {offsets = [0, 64], sizes = [2, 32], strides = [1, 1]} : vector<2x96xf32> to vector<2x32xf32>
    %55 = arith.mulf %53, %21 : vector<2x32xf32>
    %56 = arith.mulf %52, %51 : vector<2x32xf32>
    %57 = arith.addf %55, %56 : vector<2x32xf32>
    %58 = math.tanh %57 : vector<2x32xf32>
    %59 = arith.mulf %54, %58 : vector<2x32xf32>
    %60 = arith.index_cast %c0_i32 : i32 to index
    %c0_26 = arith.constant 0 : index
    %c0_27 = arith.constant 0 : index
    %61 = vector.load %arg9[%60, %c0_26, %c0_27] : memref<8x2x32xf32, #tpu.memory_space<vmem>>, vector<1x2x32xf32>
    %62 = vector.shape_cast %61 : vector<1x2x32xf32> to vector<2x32xf32>
    %63 = vector.shape_cast %59 : vector<2x32xf32> to vector<1x2x32xf32>
    tpu.vector_store %arg9[%60, %c0_26, %c0_27], %63 {strides = array<i32>} : memref<8x2x32xf32, #tpu.memory_space<vmem>>, vector<1x2x32xf32>,
    %c1_i32 = arith.constant 1 : i32
    %cst_28 = arith.constant dense<0.000000e+00> : vector<2x128xf32>
    %64 = tpu.matmul %39, %7, %cst_28 {dimension_numbers = #tpu.dot_dimension_numbers<[1], [0], [0], [1], [0, 0, 1, 1], [], []>} : vector<2x32xf32>, vector<32x128xf32>, vector<2x128xf32> -> vector<2x128xf32>
    %65 = arith.addf %64, %15 : vector<2x128xf32>
    %66 = vector.extract_strided_slice %65 {offsets = [0, 0], sizes = [2, 96], strides = [1, 1]} : vector<2x128xf32> to vector<2x96xf32>
    %67 = arith.negf %66 : vector<2x96xf32>
    %68 = math.exp %67 : vector<2x96xf32>
    %cst_29 = arith.constant 1.000000e+00 : f32
    %69 = vector.broadcast %cst_29 : f32 to vector<2x96xf32>
    %70 = arith.addf %69, %68 : vector<2x96xf32>
    %71 = arith.divf %69, %70 : vector<2x96xf32>
    %72 = vector.extract_strided_slice %65 {offsets = [0, 96], sizes = [2, 32], strides = [1, 1]} : vector<2x128xf32> to vector<2x32xf32>
    %73 = math.tanh %72 : vector<2x32xf32>
    %74 = vector.extract_strided_slice %71 {offsets = [0, 0], sizes = [2, 32], strides = [1, 1]} : vector<2x96xf32> to vector<2x32xf32>
    %75 = vector.extract_strided_slice %71 {offsets = [0, 32], sizes = [2, 32], strides = [1, 1]} : vector<2x96xf32> to vector<2x32xf32>
    %76 = vector.extract_strided_slice %71 {offsets = [0, 64], sizes = [2, 32], strides = [1, 1]} : vector<2x96xf32> to vector<2x32xf32>
    %77 = arith.mulf %75, %37 : vector<2x32xf32>
    %78 = arith.mulf %74, %73 : vector<2x32xf32>
    %79 = arith.addf %77, %78 : vector<2x32xf32>
    %80 = math.tanh %79 : vector<2x32xf32>
    %81 = arith.mulf %76, %80 : vector<2x32xf32>
    %cst_30 = arith.constant dense<0.000000e+00> : vector<2x128xf32>
    %82 = tpu.matmul %59, %9, %cst_30 {dimension_numbers = #tpu.dot_dimension_numbers<[1], [0], [0], [1], [0, 0, 1, 1], [], []>} : vector<2x32xf32>, vector<32x128xf32>, vector<2x128xf32> -> vector<2x128xf32>
    %83 = arith.addf %82, %19 : vector<2x128xf32>
    %cst_31 = arith.constant dense<0.000000e+00> : vector<2x128xf32>
    %84 = tpu.matmul %81, %11, %cst_31 {dimension_numbers = #tpu.dot_dimension_numbers<[1], [0], [0], [1], [0, 0, 1, 1], [], []>} : vector<2x32xf32>, vector<32x128xf32>, vector<2x128xf32> -> vector<2x128xf32>
    %85 = arith.addf %83, %84 : vector<2x128xf32>
    %86 = vector.extract_strided_slice %85 {offsets = [0, 0], sizes = [2, 96], strides = [1, 1]} : vector<2x128xf32> to vector<2x96xf32>
    %87 = arith.negf %86 : vector<2x96xf32>
    %88 = math.exp %87 : vector<2x96xf32>
    %cst_32 = arith.constant 1.000000e+00 : f32
    %89 = vector.broadcast %cst_32 : f32 to vector<2x96xf32>
    %90 = arith.addf %89, %88 : vector<2x96xf32>
    %91 = arith.divf %89, %90 : vector<2x96xf32>
    %92 = vector.extract_strided_slice %85 {offsets = [0, 96], sizes = [2, 32], strides = [1, 1]} : vector<2x128xf32> to vector<2x32xf32>
    %93 = math.tanh %92 : vector<2x32xf32>
    %94 = vector.extract_strided_slice %91 {offsets = [0, 0], sizes = [2, 32], strides = [1, 1]} : vector<2x96xf32> to vector<2x32xf32>
    %95 = vector.extract_strided_slice %91 {offsets = [0, 32], sizes = [2, 32], strides = [1, 1]} : vector<2x96xf32> to vector<2x32xf32>
    %96 = vector.extract_strided_slice %91 {offsets = [0, 64], sizes = [2, 32], strides = [1, 1]} : vector<2x96xf32> to vector<2x32xf32>
    %97 = arith.mulf %95, %57 : vector<2x32xf32>
    %98 = arith.mulf %94, %93 : vector<2x32xf32>
    %99 = arith.addf %97, %98 : vector<2x32xf32>
    %100 = math.tanh %99 : vector<2x32xf32>
    %101 = arith.mulf %96, %100 : vector<2x32xf32>
    %102 = arith.index_cast %c1_i32 : i32 to index
    %c0_33 = arith.constant 0 : index
    %c0_34 = arith.constant 0 : index
    %103 = vector.load %arg9[%102, %c0_33, %c0_34] : memref<8x2x32xf32, #tpu.memory_space<vmem>>, vector<1x2x32xf32>
    %104 = vector.shape_cast %103 : vector<1x2x32xf32> to vector<2x32xf32>
    %105 = vector.shape_cast %101 : vector<2x32xf32> to vector<1x2x32xf32>
    tpu.vector_store %arg9[%102, %c0_33, %c0_34], %105 {strides = array<i32>} : memref<8x2x32xf32, #tpu.memory_space<vmem>>, vector<1x2x32xf32>,
    %c2_i32 = arith.constant 2 : i32
    %cst_35 = arith.constant dense<0.000000e+00> : vector<2x128xf32>
    %106 = tpu.matmul %81, %7, %cst_35 {dimension_numbers = #tpu.dot_dimension_numbers<[1], [0], [0], [1], [0, 0, 1, 1], [], []>} : vector<2x32xf32>, vector<32x128xf32>, vector<2x128xf32> -> vector<2x128xf32>
    %107 = arith.addf %106, %15 : vector<2x128xf32>
    %108 = vector.extract_strided_slice %107 {offsets = [0, 0], sizes = [2, 96], strides = [1, 1]} : vector<2x128xf32> to vector<2x96xf32>
    %109 = arith.negf %108 : vector<2x96xf32>
    %110 = math.exp %109 : vector<2x96xf32>
    %cst_36 = arith.constant 1.000000e+00 : f32
    %111 = vector.broadcast %cst_36 : f32 to vector<2x96xf32>
    %112 = arith.addf %111, %110 : vector<2x96xf32>
    %113 = arith.divf %111, %112 : vector<2x96xf32>
    %114 = vector.extract_strided_slice %107 {offsets = [0, 96], sizes = [2, 32], strides = [1, 1]} : vector<2x128xf32> to vector<2x32xf32>
    %115 = math.tanh %114 : vector<2x32xf32>
    %116 = vector.extract_strided_slice %113 {offsets = [0, 0], sizes = [2, 32], strides = [1, 1]} : vector<2x96xf32> to vector<2x32xf32>
    %117 = vector.extract_strided_slice %113 {offsets = [0, 32], sizes = [2, 32], strides = [1, 1]} : vector<2x96xf32> to vector<2x32xf32>
    %118 = vector.extract_strided_slice %113 {offsets = [0, 64], sizes = [2, 32], strides = [1, 1]} : vector<2x96xf32> to vector<2x32xf32>
    %119 = arith.mulf %117, %79 : vector<2x32xf32>
    %120 = arith.mulf %116, %115 : vector<2x32xf32>
    %121 = arith.addf %119, %120 : vector<2x32xf32>
    %122 = math.tanh %121 : vector<2x32xf32>
    %123 = arith.mulf %118, %122 : vector<2x32xf32>
    %cst_37 = arith.constant dense<0.000000e+00> : vector<2x128xf32>
    %124 = tpu.matmul %101, %9, %cst_37 {dimension_numbers = #tpu.dot_dimension_numbers<[1], [0], [0], [1], [0, 0, 1, 1], [], []>} : vector<2x32xf32>, vector<32x128xf32>, vector<2x128xf32> -> vector<2x128xf32>
    %125 = arith.addf %124, %19 : vector<2x128xf32>
    %cst_38 = arith.constant dense<0.000000e+00> : vector<2x128xf32>
    %126 = tpu.matmul %123, %11, %cst_38 {dimension_numbers = #tpu.dot_dimension_numbers<[1], [0], [0], [1], [0, 0, 1, 1], [], []>} : vector<2x32xf32>, vector<32x128xf32>, vector<2x128xf32> -> vector<2x128xf32>
    %127 = arith.addf %125, %126 : vector<2x128xf32>
    %128 = vector.extract_strided_slice %127 {offsets = [0, 0], sizes = [2, 96], strides = [1, 1]} : vector<2x128xf32> to vector<2x96xf32>
    %129 = arith.negf %128 : vector<2x96xf32>
    %130 = math.exp %129 : vector<2x96xf32>
    %cst_39 = arith.constant 1.000000e+00 : f32
    %131 = vector.broadcast %cst_39 : f32 to vector<2x96xf32>
    %132 = arith.addf %131, %130 : vector<2x96xf32>
    %133 = arith.divf %131, %132 : vector<2x96xf32>
    %134 = vector.extract_strided_slice %127 {offsets = [0, 96], sizes = [2, 32], strides = [1, 1]} : vector<2x128xf32> to vector<2x32xf32>
    %135 = math.tanh %134 : vector<2x32xf32>
    %136 = vector.extract_strided_slice %133 {offsets = [0, 0], sizes = [2, 32], strides = [1, 1]} : vector<2x96xf32> to vector<2x32xf32>
    %137 = vector.extract_strided_slice %133 {offsets = [0, 32], sizes = [2, 32], strides = [1, 1]} : vector<2x96xf32> to vector<2x32xf32>
    %138 = vector.extract_strided_slice %133 {offsets = [0, 64], sizes = [2, 32], strides = [1, 1]} : vector<2x96xf32> to vector<2x32xf32>
    %139 = arith.mulf %137, %99 : vector<2x32xf32>
    %140 = arith.mulf %136, %135 : vector<2x32xf32>
    %141 = arith.addf %139, %140 : vector<2x32xf32>
    %142 = math.tanh %141 : vector<2x32xf32>
    %143 = arith.mulf %138, %142 : vector<2x32xf32>
    %144 = arith.index_cast %c2_i32 : i32 to index
    %c0_40 = arith.constant 0 : index
    %c0_41 = arith.constant 0 : index
    %145 = vector.load %arg9[%144, %c0_40, %c0_41] : memref<8x2x32xf32, #tpu.memory_space<vmem>>, vector<1x2x32xf32>
    %146 = vector.shape_cast %145 : vector<1x2x32xf32> to vector<2x32xf32>
    %147 = vector.shape_cast %143 : vector<2x32xf32> to vector<1x2x32xf32>
    tpu.vector_store %arg9[%144, %c0_40, %c0_41], %147 {strides = array<i32>} : memref<8x2x32xf32, #tpu.memory_space<vmem>>, vector<1x2x32xf32>,
    %c3_i32 = arith.constant 3 : i32
    %cst_42 = arith.constant dense<0.000000e+00> : vector<2x128xf32>
    %148 = tpu.matmul %123, %7, %cst_42 {dimension_numbers = #tpu.dot_dimension_numbers<[1], [0], [0], [1], [0, 0, 1, 1], [], []>} : vector<2x32xf32>, vector<32x128xf32>, vector<2x128xf32> -> vector<2x128xf32>
    %149 = arith.addf %148, %15 : vector<2x128xf32>
    %150 = vector.extract_strided_slice %149 {offsets = [0, 0], sizes = [2, 96], strides = [1, 1]} : vector<2x128xf32> to vector<2x96xf32>
    %151 = arith.negf %150 : vector<2x96xf32>
    %152 = math.exp %151 : vector<2x96xf32>
    %cst_43 = arith.constant 1.000000e+00 : f32
    %153 = vector.broadcast %cst_43 : f32 to vector<2x96xf32>
    %154 = arith.addf %153, %152 : vector<2x96xf32>
    %155 = arith.divf %153, %154 : vector<2x96xf32>
    %156 = vector.extract_strided_slice %149 {offsets = [0, 96], sizes = [2, 32], strides = [1, 1]} : vector<2x128xf32> to vector<2x32xf32>
    %157 = math.tanh %156 : vector<2x32xf32>
    %158 = vector.extract_strided_slice %155 {offsets = [0, 0], sizes = [2, 32], strides = [1, 1]} : vector<2x96xf32> to vector<2x32xf32>
    %159 = vector.extract_strided_slice %155 {offsets = [0, 32], sizes = [2, 32], strides = [1, 1]} : vector<2x96xf32> to vector<2x32xf32>
    %160 = vector.extract_strided_slice %155 {offsets = [0, 64], sizes = [2, 32], strides = [1, 1]} : vector<2x96xf32> to vector<2x32xf32>
    %161 = arith.mulf %159, %121 : vector<2x32xf32>
    %162 = arith.mulf %158, %157 : vector<2x32xf32>
    %163 = arith.addf %161, %162 : vector<2x32xf32>
    %164 = math.tanh %163 : vector<2x32xf32>
    %165 = arith.mulf %160, %164 : vector<2x32xf32>
    %cst_44 = arith.constant dense<0.000000e+00> : vector<2x128xf32>
    %166 = tpu.matmul %143, %9, %cst_44 {dimension_numbers = #tpu.dot_dimension_numbers<[1], [0], [0], [1], [0, 0, 1, 1], [], []>} : vector<2x32xf32>, vector<32x128xf32>, vector<2x128xf32> -> vector<2x128xf32>
    %167 = arith.addf %166, %19 : vector<2x128xf32>
    %cst_45 = arith.constant dense<0.000000e+00> : vector<2x128xf32>
    %168 = tpu.matmul %165, %11, %cst_45 {dimension_numbers = #tpu.dot_dimension_numbers<[1], [0], [0], [1], [0, 0, 1, 1], [], []>} : vector<2x32xf32>, vector<32x128xf32>, vector<2x128xf32> -> vector<2x128xf32>
    %169 = arith.addf %167, %168 : vector<2x128xf32>
    %170 = vector.extract_strided_slice %169 {offsets = [0, 0], sizes = [2, 96], strides = [1, 1]} : vector<2x128xf32> to vector<2x96xf32>
    %171 = arith.negf %170 : vector<2x96xf32>
    %172 = math.exp %171 : vector<2x96xf32>
    %cst_46 = arith.constant 1.000000e+00 : f32
    %173 = vector.broadcast %cst_46 : f32 to vector<2x96xf32>
    %174 = arith.addf %173, %172 : vector<2x96xf32>
    %175 = arith.divf %173, %174 : vector<2x96xf32>
    %176 = vector.extract_strided_slice %169 {offsets = [0, 96], sizes = [2, 32], strides = [1, 1]} : vector<2x128xf32> to vector<2x32xf32>
    %177 = math.tanh %176 : vector<2x32xf32>
    %178 = vector.extract_strided_slice %175 {offsets = [0, 0], sizes = [2, 32], strides = [1, 1]} : vector<2x96xf32> to vector<2x32xf32>
    %179 = vector.extract_strided_slice %175 {offsets = [0, 32], sizes = [2, 32], strides = [1, 1]} : vector<2x96xf32> to vector<2x32xf32>
    %180 = vector.extract_strided_slice %175 {offsets = [0, 64], sizes = [2, 32], strides = [1, 1]} : vector<2x96xf32> to vector<2x32xf32>
    %181 = arith.mulf %179, %141 : vector<2x32xf32>
    %182 = arith.mulf %178, %177 : vector<2x32xf32>
    %183 = arith.addf %181, %182 : vector<2x32xf32>
    %184 = math.tanh %183 : vector<2x32xf32>
    %185 = arith.mulf %180, %184 : vector<2x32xf32>
    %186 = arith.index_cast %c3_i32 : i32 to index
    %c0_47 = arith.constant 0 : index
    %c0_48 = arith.constant 0 : index
    %187 = vector.load %arg9[%186, %c0_47, %c0_48] : memref<8x2x32xf32, #tpu.memory_space<vmem>>, vector<1x2x32xf32>
    %188 = vector.shape_cast %187 : vector<1x2x32xf32> to vector<2x32xf32>
    %189 = vector.shape_cast %185 : vector<2x32xf32> to vector<1x2x32xf32>
    tpu.vector_store %arg9[%186, %c0_47, %c0_48], %189 {strides = array<i32>} : memref<8x2x32xf32, #tpu.memory_space<vmem>>, vector<1x2x32xf32>,
    %c4_i32 = arith.constant 4 : i32
    %cst_49 = arith.constant dense<0.000000e+00> : vector<2x128xf32>
    %190 = tpu.matmul %165, %7, %cst_49 {dimension_numbers = #tpu.dot_dimension_numbers<[1], [0], [0], [1], [0, 0, 1, 1], [], []>} : vector<2x32xf32>, vector<32x128xf32>, vector<2x128xf32> -> vector<2x128xf32>
    %191 = arith.addf %190, %15 : vector<2x128xf32>
    %192 = vector.extract_strided_slice %191 {offsets = [0, 0], sizes = [2, 96], strides = [1, 1]} : vector<2x128xf32> to vector<2x96xf32>
    %193 = arith.negf %192 : vector<2x96xf32>
    %194 = math.exp %193 : vector<2x96xf32>
    %cst_50 = arith.constant 1.000000e+00 : f32
    %195 = vector.broadcast %cst_50 : f32 to vector<2x96xf32>
    %196 = arith.addf %195, %194 : vector<2x96xf32>
    %197 = arith.divf %195, %196 : vector<2x96xf32>
    %198 = vector.extract_strided_slice %191 {offsets = [0, 96], sizes = [2, 32], strides = [1, 1]} : vector<2x128xf32> to vector<2x32xf32>
    %199 = math.tanh %198 : vector<2x32xf32>
    %200 = vector.extract_strided_slice %197 {offsets = [0, 0], sizes = [2, 32], strides = [1, 1]} : vector<2x96xf32> to vector<2x32xf32>
    %201 = vector.extract_strided_slice %197 {offsets = [0, 32], sizes = [2, 32], strides = [1, 1]} : vector<2x96xf32> to vector<2x32xf32>
    %202 = vector.extract_strided_slice %197 {offsets = [0, 64], sizes = [2, 32], strides = [1, 1]} : vector<2x96xf32> to vector<2x32xf32>
    %203 = arith.mulf %201, %163 : vector<2x32xf32>
    %204 = arith.mulf %200, %199 : vector<2x32xf32>
    %205 = arith.addf %203, %204 : vector<2x32xf32>
    %206 = math.tanh %205 : vector<2x32xf32>
    %207 = arith.mulf %202, %206 : vector<2x32xf32>
    %cst_51 = arith.constant dense<0.000000e+00> : vector<2x128xf32>
    %208 = tpu.matmul %185, %9, %cst_51 {dimension_numbers = #tpu.dot_dimension_numbers<[1], [0], [0], [1], [0, 0, 1, 1], [], []>} : vector<2x32xf32>, vector<32x128xf32>, vector<2x128xf32> -> vector<2x128xf32>
    %209 = arith.addf %208, %19 : vector<2x128xf32>
    %cst_52 = arith.constant dense<0.000000e+00> : vector<2x128xf32>
    %210 = tpu.matmul %207, %11, %cst_52 {dimension_numbers = #tpu.dot_dimension_numbers<[1], [0], [0], [1], [0, 0, 1, 1], [], []>} : vector<2x32xf32>, vector<32x128xf32>, vector<2x128xf32> -> vector<2x128xf32>
    %211 = arith.addf %209, %210 : vector<2x128xf32>
    %212 = vector.extract_strided_slice %211 {offsets = [0, 0], sizes = [2, 96], strides = [1, 1]} : vector<2x128xf32> to vector<2x96xf32>
    %213 = arith.negf %212 : vector<2x96xf32>
    %214 = math.exp %213 : vector<2x96xf32>
    %cst_53 = arith.constant 1.000000e+00 : f32
    %215 = vector.broadcast %cst_53 : f32 to vector<2x96xf32>
    %216 = arith.addf %215, %214 : vector<2x96xf32>
    %217 = arith.divf %215, %216 : vector<2x96xf32>
    %218 = vector.extract_strided_slice %211 {offsets = [0, 96], sizes = [2, 32], strides = [1, 1]} : vector<2x128xf32> to vector<2x32xf32>
    %219 = math.tanh %218 : vector<2x32xf32>
    %220 = vector.extract_strided_slice %217 {offsets = [0, 0], sizes = [2, 32], strides = [1, 1]} : vector<2x96xf32> to vector<2x32xf32>
    %221 = vector.extract_strided_slice %217 {offsets = [0, 32], sizes = [2, 32], strides = [1, 1]} : vector<2x96xf32> to vector<2x32xf32>
    %222 = vector.extract_strided_slice %217 {offsets = [0, 64], sizes = [2, 32], strides = [1, 1]} : vector<2x96xf32> to vector<2x32xf32>
    %223 = arith.mulf %221, %183 : vector<2x32xf32>
    %224 = arith.mulf %220, %219 : vector<2x32xf32>
    %225 = arith.addf %223, %224 : vector<2x32xf32>
    %226 = math.tanh %225 : vector<2x32xf32>
    %227 = arith.mulf %222, %226 : vector<2x32xf32>
    %228 = arith.index_cast %c4_i32 : i32 to index
    %c0_54 = arith.constant 0 : index
    %c0_55 = arith.constant 0 : index
    %229 = vector.load %arg9[%228, %c0_54, %c0_55] : memref<8x2x32xf32, #tpu.memory_space<vmem>>, vector<1x2x32xf32>
    %230 = vector.shape_cast %229 : vector<1x2x32xf32> to vector<2x32xf32>
    %231 = vector.shape_cast %227 : vector<2x32xf32> to vector<1x2x32xf32>
    tpu.vector_store %arg9[%228, %c0_54, %c0_55], %231 {strides = array<i32>} : memref<8x2x32xf32, #tpu.memory_space<vmem>>, vector<1x2x32xf32>,
    %c5_i32 = arith.constant 5 : i32
    %cst_56 = arith.constant dense<0.000000e+00> : vector<2x128xf32>
    %232 = tpu.matmul %207, %7, %cst_56 {dimension_numbers = #tpu.dot_dimension_numbers<[1], [0], [0], [1], [0, 0, 1, 1], [], []>} : vector<2x32xf32>, vector<32x128xf32>, vector<2x128xf32> -> vector<2x128xf32>
    %233 = arith.addf %232, %15 : vector<2x128xf32>
    %234 = vector.extract_strided_slice %233 {offsets = [0, 0], sizes = [2, 96], strides = [1, 1]} : vector<2x128xf32> to vector<2x96xf32>
    %235 = arith.negf %234 : vector<2x96xf32>
    %236 = math.exp %235 : vector<2x96xf32>
    %cst_57 = arith.constant 1.000000e+00 : f32
    %237 = vector.broadcast %cst_57 : f32 to vector<2x96xf32>
    %238 = arith.addf %237, %236 : vector<2x96xf32>
    %239 = arith.divf %237, %238 : vector<2x96xf32>
    %240 = vector.extract_strided_slice %233 {offsets = [0, 96], sizes = [2, 32], strides = [1, 1]} : vector<2x128xf32> to vector<2x32xf32>
    %241 = math.tanh %240 : vector<2x32xf32>
    %242 = vector.extract_strided_slice %239 {offsets = [0, 0], sizes = [2, 32], strides = [1, 1]} : vector<2x96xf32> to vector<2x32xf32>
    %243 = vector.extract_strided_slice %239 {offsets = [0, 32], sizes = [2, 32], strides = [1, 1]} : vector<2x96xf32> to vector<2x32xf32>
    %244 = vector.extract_strided_slice %239 {offsets = [0, 64], sizes = [2, 32], strides = [1, 1]} : vector<2x96xf32> to vector<2x32xf32>
    %245 = arith.mulf %243, %205 : vector<2x32xf32>
    %246 = arith.mulf %242, %241 : vector<2x32xf32>
    %247 = arith.addf %245, %246 : vector<2x32xf32>
    %248 = math.tanh %247 : vector<2x32xf32>
    %249 = arith.mulf %244, %248 : vector<2x32xf32>
    %cst_58 = arith.constant dense<0.000000e+00> : vector<2x128xf32>
    %250 = tpu.matmul %227, %9, %cst_58 {dimension_numbers = #tpu.dot_dimension_numbers<[1], [0], [0], [1], [0, 0, 1, 1], [], []>} : vector<2x32xf32>, vector<32x128xf32>, vector<2x128xf32> -> vector<2x128xf32>
    %251 = arith.addf %250, %19 : vector<2x128xf32>
    %cst_59 = arith.constant dense<0.000000e+00> : vector<2x128xf32>
    %252 = tpu.matmul %249, %11, %cst_59 {dimension_numbers = #tpu.dot_dimension_numbers<[1], [0], [0], [1], [0, 0, 1, 1], [], []>} : vector<2x32xf32>, vector<32x128xf32>, vector<2x128xf32> -> vector<2x128xf32>
    %253 = arith.addf %251, %252 : vector<2x128xf32>
    %254 = vector.extract_strided_slice %253 {offsets = [0, 0], sizes = [2, 96], strides = [1, 1]} : vector<2x128xf32> to vector<2x96xf32>
    %255 = arith.negf %254 : vector<2x96xf32>
    %256 = math.exp %255 : vector<2x96xf32>
    %cst_60 = arith.constant 1.000000e+00 : f32
    %257 = vector.broadcast %cst_60 : f32 to vector<2x96xf32>
    %258 = arith.addf %257, %256 : vector<2x96xf32>
    %259 = arith.divf %257, %258 : vector<2x96xf32>
    %260 = vector.extract_strided_slice %253 {offsets = [0, 96], sizes = [2, 32], strides = [1, 1]} : vector<2x128xf32> to vector<2x32xf32>
    %261 = math.tanh %260 : vector<2x32xf32>
    %262 = vector.extract_strided_slice %259 {offsets = [0, 0], sizes = [2, 32], strides = [1, 1]} : vector<2x96xf32> to vector<2x32xf32>
    %263 = vector.extract_strided_slice %259 {offsets = [0, 32], sizes = [2, 32], strides = [1, 1]} : vector<2x96xf32> to vector<2x32xf32>
    %264 = vector.extract_strided_slice %259 {offsets = [0, 64], sizes = [2, 32], strides = [1, 1]} : vector<2x96xf32> to vector<2x32xf32>
    %265 = arith.mulf %263, %225 : vector<2x32xf32>
    %266 = arith.mulf %262, %261 : vector<2x32xf32>
    %267 = arith.addf %265, %266 : vector<2x32xf32>
    %268 = math.tanh %267 : vector<2x32xf32>
    %269 = arith.mulf %264, %268 : vector<2x32xf32>
    %270 = arith.index_cast %c5_i32 : i32 to index
    %c0_61 = arith.constant 0 : index
    %c0_62 = arith.constant 0 : index
    %271 = vector.load %arg9[%270, %c0_61, %c0_62] : memref<8x2x32xf32, #tpu.memory_space<vmem>>, vector<1x2x32xf32>
    %272 = vector.shape_cast %271 : vector<1x2x32xf32> to vector<2x32xf32>
    %273 = vector.shape_cast %269 : vector<2x32xf32> to vector<1x2x32xf32>
    tpu.vector_store %arg9[%270, %c0_61, %c0_62], %273 {strides = array<i32>} : memref<8x2x32xf32, #tpu.memory_space<vmem>>, vector<1x2x32xf32>,
    %c6_i32 = arith.constant 6 : i32
    %cst_63 = arith.constant dense<0.000000e+00> : vector<2x128xf32>
    %274 = tpu.matmul %249, %7, %cst_63 {dimension_numbers = #tpu.dot_dimension_numbers<[1], [0], [0], [1], [0, 0, 1, 1], [], []>} : vector<2x32xf32>, vector<32x128xf32>, vector<2x128xf32> -> vector<2x128xf32>
    %275 = arith.addf %274, %15 : vector<2x128xf32>
    %276 = vector.extract_strided_slice %275 {offsets = [0, 0], sizes = [2, 96], strides = [1, 1]} : vector<2x128xf32> to vector<2x96xf32>
    %277 = arith.negf %276 : vector<2x96xf32>
    %278 = math.exp %277 : vector<2x96xf32>
    %cst_64 = arith.constant 1.000000e+00 : f32
    %279 = vector.broadcast %cst_64 : f32 to vector<2x96xf32>
    %280 = arith.addf %279, %278 : vector<2x96xf32>
    %281 = arith.divf %279, %280 : vector<2x96xf32>
    %282 = vector.extract_strided_slice %275 {offsets = [0, 96], sizes = [2, 32], strides = [1, 1]} : vector<2x128xf32> to vector<2x32xf32>
    %283 = math.tanh %282 : vector<2x32xf32>
    %284 = vector.extract_strided_slice %281 {offsets = [0, 0], sizes = [2, 32], strides = [1, 1]} : vector<2x96xf32> to vector<2x32xf32>
    %285 = vector.extract_strided_slice %281 {offsets = [0, 32], sizes = [2, 32], strides = [1, 1]} : vector<2x96xf32> to vector<2x32xf32>
    %286 = vector.extract_strided_slice %281 {offsets = [0, 64], sizes = [2, 32], strides = [1, 1]} : vector<2x96xf32> to vector<2x32xf32>
    %287 = arith.mulf %285, %247 : vector<2x32xf32>
    %288 = arith.mulf %284, %283 : vector<2x32xf32>
    %289 = arith.addf %287, %288 : vector<2x32xf32>
    %290 = math.tanh %289 : vector<2x32xf32>
    %291 = arith.mulf %286, %290 : vector<2x32xf32>
    %cst_65 = arith.constant dense<0.000000e+00> : vector<2x128xf32>
    %292 = tpu.matmul %269, %9, %cst_65 {dimension_numbers = #tpu.dot_dimension_numbers<[1], [0], [0], [1], [0, 0, 1, 1], [], []>} : vector<2x32xf32>, vector<32x128xf32>, vector<2x128xf32> -> vector<2x128xf32>
    %293 = arith.addf %292, %19 : vector<2x128xf32>
    %cst_66 = arith.constant dense<0.000000e+00> : vector<2x128xf32>
    %294 = tpu.matmul %291, %11, %cst_66 {dimension_numbers = #tpu.dot_dimension_numbers<[1], [0], [0], [1], [0, 0, 1, 1], [], []>} : vector<2x32xf32>, vector<32x128xf32>, vector<2x128xf32> -> vector<2x128xf32>
    %295 = arith.addf %293, %294 : vector<2x128xf32>
    %296 = vector.extract_strided_slice %295 {offsets = [0, 0], sizes = [2, 96], strides = [1, 1]} : vector<2x128xf32> to vector<2x96xf32>
    %297 = arith.negf %296 : vector<2x96xf32>
    %298 = math.exp %297 : vector<2x96xf32>
    %cst_67 = arith.constant 1.000000e+00 : f32
    %299 = vector.broadcast %cst_67 : f32 to vector<2x96xf32>
    %300 = arith.addf %299, %298 : vector<2x96xf32>
    %301 = arith.divf %299, %300 : vector<2x96xf32>
    %302 = vector.extract_strided_slice %295 {offsets = [0, 96], sizes = [2, 32], strides = [1, 1]} : vector<2x128xf32> to vector<2x32xf32>
    %303 = math.tanh %302 : vector<2x32xf32>
    %304 = vector.extract_strided_slice %301 {offsets = [0, 0], sizes = [2, 32], strides = [1, 1]} : vector<2x96xf32> to vector<2x32xf32>
    %305 = vector.extract_strided_slice %301 {offsets = [0, 32], sizes = [2, 32], strides = [1, 1]} : vector<2x96xf32> to vector<2x32xf32>
    %306 = vector.extract_strided_slice %301 {offsets = [0, 64], sizes = [2, 32], strides = [1, 1]} : vector<2x96xf32> to vector<2x32xf32>
    %307 = arith.mulf %305, %267 : vector<2x32xf32>
    %308 = arith.mulf %304, %303 : vector<2x32xf32>
    %309 = arith.addf %307, %308 : vector<2x32xf32>
    %310 = math.tanh %309 : vector<2x32xf32>
    %311 = arith.mulf %306, %310 : vector<2x32xf32>
    %312 = arith.index_cast %c6_i32 : i32 to index
    %c0_68 = arith.constant 0 : index
    %c0_69 = arith.constant 0 : index
    %313 = vector.load %arg9[%312, %c0_68, %c0_69] : memref<8x2x32xf32, #tpu.memory_space<vmem>>, vector<1x2x32xf32>
    %314 = vector.shape_cast %313 : vector<1x2x32xf32> to vector<2x32xf32>
    %315 = vector.shape_cast %311 : vector<2x32xf32> to vector<1x2x32xf32>
    tpu.vector_store %arg9[%312, %c0_68, %c0_69], %315 {strides = array<i32>} : memref<8x2x32xf32, #tpu.memory_space<vmem>>, vector<1x2x32xf32>,
    %c7_i32 = arith.constant 7 : i32
    %cst_70 = arith.constant dense<0.000000e+00> : vector<2x128xf32>
    %316 = tpu.matmul %291, %7, %cst_70 {dimension_numbers = #tpu.dot_dimension_numbers<[1], [0], [0], [1], [0, 0, 1, 1], [], []>} : vector<2x32xf32>, vector<32x128xf32>, vector<2x128xf32> -> vector<2x128xf32>
    %317 = arith.addf %316, %15 : vector<2x128xf32>
    %318 = vector.extract_strided_slice %317 {offsets = [0, 0], sizes = [2, 96], strides = [1, 1]} : vector<2x128xf32> to vector<2x96xf32>
    %319 = arith.negf %318 : vector<2x96xf32>
    %320 = math.exp %319 : vector<2x96xf32>
    %cst_71 = arith.constant 1.000000e+00 : f32
    %321 = vector.broadcast %cst_71 : f32 to vector<2x96xf32>
    %322 = arith.addf %321, %320 : vector<2x96xf32>
    %323 = arith.divf %321, %322 : vector<2x96xf32>
    %324 = vector.extract_strided_slice %317 {offsets = [0, 96], sizes = [2, 32], strides = [1, 1]} : vector<2x128xf32> to vector<2x32xf32>
    %325 = math.tanh %324 : vector<2x32xf32>
    %326 = vector.extract_strided_slice %323 {offsets = [0, 0], sizes = [2, 32], strides = [1, 1]} : vector<2x96xf32> to vector<2x32xf32>
    %327 = vector.extract_strided_slice %323 {offsets = [0, 32], sizes = [2, 32], strides = [1, 1]} : vector<2x96xf32> to vector<2x32xf32>
    %328 = vector.extract_strided_slice %323 {offsets = [0, 64], sizes = [2, 32], strides = [1, 1]} : vector<2x96xf32> to vector<2x32xf32>
    %329 = arith.mulf %327, %289 : vector<2x32xf32>
    %330 = arith.mulf %326, %325 : vector<2x32xf32>
    %331 = arith.addf %329, %330 : vector<2x32xf32>
    %332 = math.tanh %331 : vector<2x32xf32>
    %333 = arith.mulf %328, %332 : vector<2x32xf32>
    %cst_72 = arith.constant dense<0.000000e+00> : vector<2x128xf32>
    %334 = tpu.matmul %311, %9, %cst_72 {dimension_numbers = #tpu.dot_dimension_numbers<[1], [0], [0], [1], [0, 0, 1, 1], [], []>} : vector<2x32xf32>, vector<32x128xf32>, vector<2x128xf32> -> vector<2x128xf32>
    %335 = arith.addf %334, %19 : vector<2x128xf32>
    %cst_73 = arith.constant dense<0.000000e+00> : vector<2x128xf32>
    %336 = tpu.matmul %333, %11, %cst_73 {dimension_numbers = #tpu.dot_dimension_numbers<[1], [0], [0], [1], [0, 0, 1, 1], [], []>} : vector<2x32xf32>, vector<32x128xf32>, vector<2x128xf32> -> vector<2x128xf32>
    %337 = arith.addf %335, %336 : vector<2x128xf32>
    %338 = vector.extract_strided_slice %337 {offsets = [0, 0], sizes = [2, 96], strides = [1, 1]} : vector<2x128xf32> to vector<2x96xf32>
    %339 = arith.negf %338 : vector<2x96xf32>
    %340 = math.exp %339 : vector<2x96xf32>
    %cst_74 = arith.constant 1.000000e+00 : f32
    %341 = vector.broadcast %cst_74 : f32 to vector<2x96xf32>
    %342 = arith.addf %341, %340 : vector<2x96xf32>
    %343 = arith.divf %341, %342 : vector<2x96xf32>
    %344 = vector.extract_strided_slice %337 {offsets = [0, 96], sizes = [2, 32], strides = [1, 1]} : vector<2x128xf32> to vector<2x32xf32>
    %345 = math.tanh %344 : vector<2x32xf32>
    %346 = vector.extract_strided_slice %343 {offsets = [0, 0], sizes = [2, 32], strides = [1, 1]} : vector<2x96xf32> to vector<2x32xf32>
    %347 = vector.extract_strided_slice %343 {offsets = [0, 32], sizes = [2, 32], strides = [1, 1]} : vector<2x96xf32> to vector<2x32xf32>
    %348 = vector.extract_strided_slice %343 {offsets = [0, 64], sizes = [2, 32], strides = [1, 1]} : vector<2x96xf32> to vector<2x32xf32>
    %349 = arith.mulf %347, %309 : vector<2x32xf32>
    %350 = arith.mulf %346, %345 : vector<2x32xf32>
    %351 = arith.addf %349, %350 : vector<2x32xf32>
    %352 = math.tanh %351 : vector<2x32xf32>
    %353 = arith.mulf %348, %352 : vector<2x32xf32>
    %354 = arith.index_cast %c7_i32 : i32 to index
    %c0_75 = arith.constant 0 : index
    %c0_76 = arith.constant 0 : index
    %355 = vector.load %arg9[%354, %c0_75, %c0_76] : memref<8x2x32xf32, #tpu.memory_space<vmem>>, vector<1x2x32xf32>
    %356 = vector.shape_cast %355 : vector<1x2x32xf32> to vector<2x32xf32>
    %357 = vector.shape_cast %353 : vector<2x32xf32> to vector<1x2x32xf32>
    tpu.vector_store %arg9[%354, %c0_75, %c0_76], %357 {strides = array<i32>} : memref<8x2x32xf32, #tpu.memory_space<vmem>>, vector<1x2x32xf32>,
    %c8_i32 = arith.constant 8 : i32
    %c0_77 = arith.constant 0 : index
    %c0_78 = arith.constant 0 : index
    %c0_79 = arith.constant 0 : index
    %358 = vector.load %arg9[%c0_77, %c0_78, %c0_79] : memref<8x2x32xf32, #tpu.memory_space<vmem>>, vector<8x2x32xf32>
    %359 = vector.shape_cast %358 : vector<8x2x32xf32> to vector<16x32xf32>
    %c0_80 = arith.constant 0 : index
    %c0_81 = arith.constant 0 : index
    %360 = vector.load %arg6[%c0_80, %c0_81] : memref<32x2xf32, #tpu.memory_space<vmem>>, vector<32x2xf32>
    %cst_82 = arith.constant dense<0.000000e+00> : vector<16x2xf32>
    %361 = tpu.matmul %359, %360, %cst_82 {dimension_numbers = #tpu.dot_dimension_numbers<[1], [0], [0], [1], [0, 0, 1, 1], [], []>} : vector<16x32xf32>, vector<32x2xf32>, vector<16x2xf32> -> vector<16x2xf32>
    %c0_83 = arith.constant 0 : index
    %c0_84 = arith.constant 0 : index
    %362 = vector.load %arg7[%c0_83, %c0_84] : memref<1x2xf32, #tpu.memory_space<vmem>>, vector<1x2xf32>
    %363 = vector.broadcast %362 : vector<1x2xf32> to vector<16x2xf32>
    %364 = arith.addf %361, %363 : vector<16x2xf32>
    %365 = vector.shape_cast %364 : vector<16x2xf32> to vector<8x2x2xf32>
    %c0_85 = arith.constant 0 : index
    %c0_86 = arith.constant 0 : index
    %c0_87 = arith.constant 0 : index
    %366 = vector.load %arg8[%c0_85, %c0_86, %c0_87] : memref<8x2x2xf32, #tpu.memory_space<vmem>>, vector<8x2x2xf32>
    tpu.vector_store %arg8[%c0_85, %c0_86, %c0_87], %365 {strides = array<i32>} : memref<8x2x2xf32, #tpu.memory_space<vmem>>, vector<8x2x2xf32>,
    return
  }
}

</mosaic_0001>

<llo_original>
// kernel: tpu_custom_call.1
$region0: #{tpu_custom_call.1}
  #allocation0 [shape = 'u32[]', space=smem, size = 0x4, offset = 0x4, fixed_abs, tag = 'smem constant byte address 0x4 - core index']
  #allocation1 [shape = 'u32[144,128]{1,0:T(1,128)}', space=vmem, size = 0x12000, scoped, tag = 'internal scratch']
  #allocation2 [shape = 'f32[8,2,32]{2,1,0:T(2,128)}', space=vmem, size = 0x2000, scoped, tag = 'scratch operand']
  %s0 = inlined_call_operand.hbm [shape: f32[2,16], index: 0, kind: input, shape index: {}]
  %s1 = inlined_call_operand.vmem [shape: f32[16,32], index: 1, kind: input, shape index: {}]
  %s2 = inlined_call_operand.hbm [shape: f32[1,32], index: 2, kind: input, shape index: {}]
  %s3 = inlined_call_operand.hbm [shape: f32[2,32,128], index: 3, kind: input, shape index: {}]
  %s4 = inlined_call_operand.vmem [shape: f32[1,32,128], index: 4, kind: input, shape index: {}]
  %s5 = inlined_call_operand.vmem [shape: f32[2,1,128], index: 5, kind: input, shape index: {}]
  %s6 = inlined_call_operand.vmem [shape: f32[32,2], index: 6, kind: input, shape index: {}]
  %s7 = inlined_call_operand.vmem [shape: f32[1,2], index: 7, kind: input, shape index: {}]
  %s8 = inlined_call_operand.vmem [shape: f32[8,2,2], index: 8, kind: output, shape index: {}]
  %s9 = sld [smem:[#allocation0]]
  $region54: #{tpu_custom_call.1} parent=0
    _
  %s11 = ssub.s32 1, %s9
  %s12 = scalar_select 0, %s11, %s9
  $region1: #{tpu_custom_call.1} parent=0
    #allocation3 [shape = 'u8[1024]{0}', space=vmem, size = 0x400, scoped, tag = 'input window, operand 0, single buffered']
    #allocation4 [shape = 's32[1]{0}', space=sflag, size = 0x4, scoped, tag = 'scoped memory for tpu_custom_call.1']
    #allocation5 [shape = 'u8[512]{0}', space=vmem, size = 0x400, scoped, tag = 'input window, operand 2, single buffered']
    #allocation6 [shape = 's32[1]{0}', space=sflag, size = 0x4, scoped, tag = 'scoped memory for tpu_custom_call.1']
    #allocation7 [shape = 'u8[32768]{0}', space=vmem, size = 0x8000, scoped, tag = 'input window, operand 3, single buffered']
    %13 = vsyncpa [#allocation4], 0
    %14 = vsyncpa [#allocation6], 0
    // Predicated region
    $region2: #{tpu_custom_call.1} parent=1 // pred_check
      _
    $region3: #{tpu_custom_call.1} parent=1 // pred_check_branch
      %16 = sbr.rel (0) target = $region5
    $region4: #{tpu_custom_call.1} parent=1 // pred_region
      %s18 = ssub.s32 32, 32
      %19 = vsyncadd [#allocation4], %s18
      %s21 = sshll.u32 [#allocation3], 4
      %s22 = int_to_ptr.vmem [resolvable:$true] %s21
      %24 = dma.hbm_to_vmem [thread:$0]  %s0, 32, %s22, [#allocation4]
    $region5: #{tpu_custom_call.1} parent=1 // pred_fallthru
      _
    // Predicated region
    $region6: #{tpu_custom_call.1} parent=1 // pred_check
      _
    $region7: #{tpu_custom_call.1} parent=1 // pred_check_branch
      %26 = sbr.rel (0) target = $region9
    $region8: #{tpu_custom_call.1} parent=1 // pred_region
      _
    $region9: #{tpu_custom_call.1} parent=1 // pred_fallthru
      _
    // Predicated region
    $region10: #{tpu_custom_call.1} parent=1 // pred_check
      _
    $region11: #{tpu_custom_call.1} parent=1 // pred_check_branch
      %28 = sbr.rel (0) target = $region13
    $region12: #{tpu_custom_call.1} parent=1 // pred_region
      %s30 = ssub.s32 16, 16
      %31 = vsyncadd [#allocation6], %s30
      %s33 = sshll.u32 [#allocation5], 4
      %s34 = int_to_ptr.vmem [resolvable:$true] %s33
      %36 = dma.hbm_to_vmem [thread:$0]  %s2, 16, %s34, [#allocation6]
    $region13: #{tpu_custom_call.1} parent=1 // pred_fallthru
      _
    // Predicated region
    $region14: #{tpu_custom_call.1} parent=1 // pred_check
      _
    $region15: #{tpu_custom_call.1} parent=1 // pred_check_branch
      %38 = sbr.rel (0) target = $region17
    $region16: #{tpu_custom_call.1} parent=1 // pred_region
      %s40 = ssub.s32 1024, 1024
      %41 = vsyncadd [#allocation6], %s40
      %s42 = sshll.u32 [#allocation7], 4
      %s43 = int_to_ptr.vmem [resolvable:$true] %s42
      %48 = dma.hbm_to_vmem [thread:$0]  %s3, 1024, %s43, [#allocation6], 128, 128, 8
    $region17: #{tpu_custom_call.1} parent=1 // pred_fallthru
      _
    // Predicated region
    $region18: #{tpu_custom_call.1} parent=1 // pred_check
      _
    $region19: #{tpu_custom_call.1} parent=1 // pred_check_branch
      %50 = sbr.rel (0) target = $region21
    $region20: #{tpu_custom_call.1} parent=1 // pred_region
      _
    $region21: #{tpu_custom_call.1} parent=1 // pred_fallthru
      _
    // Predicated region
    $region22: #{tpu_custom_call.1} parent=1 // pred_check
      _
    $region23: #{tpu_custom_call.1} parent=1 // pred_check_branch
      %52 = sbr.rel (0) target = $region25
    $region24: #{tpu_custom_call.1} parent=1 // pred_region
      _
    $region25: #{tpu_custom_call.1} parent=1 // pred_fallthru
      _
    // Predicated region
    $region26: #{tpu_custom_call.1} parent=1 // pred_check
      _
    $region27: #{tpu_custom_call.1} parent=1 // pred_check_branch
      %54 = sbr.rel (0) target = $region29
    $region28: #{tpu_custom_call.1} parent=1 // pred_region
      _
    $region29: #{tpu_custom_call.1} parent=1 // pred_fallthru
      _
    // Predicated region
    $region30: #{tpu_custom_call.1} parent=1 // pred_check
      _
    $region31: #{tpu_custom_call.1} parent=1 // pred_check_branch
      %56 = sbr.rel (0) target = $region33
    $region32: #{tpu_custom_call.1} parent=1 // pred_region
      _
    $region33: #{tpu_custom_call.1} parent=1 // pred_fallthru
      _
    // Predicated region
    $region34: #{tpu_custom_call.1} parent=1 // pred_check
      _
    $region35: #{tpu_custom_call.1} parent=1 // pred_check_branch
      %58 = sbr.rel (0) target = $region37
    $region36: #{tpu_custom_call.1} parent=1 // pred_region
      %59 = dma.done [#allocation4], 32
    $region37: #{tpu_custom_call.1} parent=1 // pred_fallthru
      _
    // Predicated region
    $region38: #{tpu_custom_call.1} parent=1 // pred_check
      _
    $region39: #{tpu_custom_call.1} parent=1 // pred_check_branch
      %61 = sbr.rel (0) target = $region41
    $region40: #{tpu_custom_call.1} parent=1 // pred_region
      %62 = dma.done [#allocation6], 16
    $region41: #{tpu_custom_call.1} parent=1 // pred_fallthru
      _
    // Predicated region
    $region42: #{tpu_custom_call.1} parent=1 // pred_check
      _
    $region43: #{tpu_custom_call.1} parent=1 // pred_check_branch
      %64 = sbr.rel (0) target = $region45
    $region44: #{tpu_custom_call.1} parent=1 // pred_region
      %65 = dma.done [#allocation6], 1024
    $region45: #{tpu_custom_call.1} parent=1 // pred_fallthru
      _
    %v66 = vld [vmem:[#allocation3] sm:$0x3]
    %v67 = vld [vmem:[%s1] sm:$0xff]
    %v68 = vld [vmem:[%s1 + $0x8] sm:$0xff]
    %v69 = vld [vmem:[#allocation5] sm:$0x1]
    %v71 = vlaneseq
    %v72 = vshrl.u32 %v71, 7
    %v73 = vsub.s32 0, %v72
    %v74 = vrot.slane %v69, %v73
    %vm76 = vcmask 130048
    %v78 = vsel %vm76, %v66, 0
    %80 = vmatprep.subr.mxu0 0.0
    %81 = vmatpush1.msra.mxu0 %v67
    %82 = vmatprep.subr.mxu0 0.0
    %83 = vmatpush1.msra.mxu0 %v68
    %84 = vmatprep.subr.mxu0 0.0
    %85 = vmatpush1.msra.mxu0 0.0
    %86 = vmatprep.subr.mxu0 0.0
    %87 = vmatpush1.msra.mxu0 0.0
    %88 = vmatprep.subr.mxu0 0.0
    %89 = vmatpush1.msra.mxu0 0.0
    %90 = vmatprep.subr.mxu0 0.0
    %91 = vmatpush1.msra.mxu0 0.0
    %92 = vmatprep.subr.mxu0 0.0
    %93 = vmatpush1.msra.mxu0 0.0
    %94 = vmatprep.subr.mxu0 0.0
    %95 = vmatpush1.msra.mxu0 0.0
    %96 = vmatprep.subr.mxu0 0.0
    %97 = vmatpush1.msra.mxu0 0.0
    %98 = vmatprep.subr.mxu0 0.0
    %99 = vmatpush1.msra.mxu0 0.0
    %100 = vmatprep.subr.mxu0 0.0
    %101 = vmatpush1.msra.mxu0 0.0
    %102 = vmatprep.subr.mxu0 0.0
    %103 = vmatpush1.msra.mxu0 0.0
    %104 = vmatprep.subr.mxu0 0.0
    %105 = vmatpush1.msra.mxu0 0.0
    %106 = vmatprep.subr.mxu0 0.0
    %107 = vmatpush1.msra.mxu0 0.0
    %108 = vmatprep.subr.mxu0 0.0
    %109 = vmatpush1.msra.mxu0 0.0
    %110 = vmatprep.subr.mxu0 0.0
    %111 = vmatpush1.msra.mxu0 0.0
    %112 = vmatprep.subr.mxu0 0.0
    %113 = vmatpush1.msra.mxu0 0.0
    %114 = vmatprep.subr.mxu0 0.0
    %115 = vmatpush1.msra.mxu0 0.0
    %116 = vmatprep.subr.mxu0 0.0
    %117 = vmatpush1.msra.mxu0 0.0
    %118 = vmatprep.subr.mxu0 0.0
    %119 = vmatpush1.msra.mxu0 0.0
    %120 = vmatprep.subr.mxu0 0.0
    %121 = vmatpush1.msra.mxu0 0.0
    %122 = vmatprep.subr.mxu0 0.0
    %123 = vmatpush1.msra.mxu0 0.0
    %124 = vmatprep.subr.mxu0 0.0
    %125 = vmatpush1.msra.mxu0 0.0
    %126 = vmatprep.subr.mxu0 0.0
    %127 = vmatpush1.msra.mxu0 0.0
    %128 = vmatprep.subr.mxu0 0.0
    %129 = vmatpush1.msra.mxu0 0.0
    %130 = vmatprep.subr.mxu0 0.0
    %131 = vmatpush1.msra.mxu0 0.0
    %132 = vmatprep.subr.mxu0 0.0
    %133 = vmatpush1.msra.mxu0 0.0
    %134 = vmatprep.subr.mxu0 0.0
    %135 = vmatpush1.msra.mxu0 0.0
    %136 = vmatprep.subr.mxu0 0.0
    %137 = vmatpush1.msra.mxu0 0.0
    %138 = vmatprep.subr.mxu0 0.0
    %139 = vmatpush1.msra.mxu0 0.0
    %140 = vmatprep.subr.mxu0 0.0
    %141 = vmatpush1.msra.mxu0 0.0
    %142 = vmatprep.subr.mxu0 0.0
    %143 = vmatpush1.msra.mxu0 0.0
    %144 = vmatprep.mubr.f32.mxu0 0.0
    %145 = vmatmul.mubr.f32.gmra.mrb[0].mxu0 %v78
    %v146 = vpop.f32.mrb[0].mxu0
    %v147 = vadd.f32 %v74, %v146
    %v148 = vpop.f32.mrb[0].mxu0
    %149 = vdwg.mxu0
    %v150 = vld [vmem:[#allocation7] sm:$0xff]
    %v151 = vld [vmem:[#allocation7 + $0x8] sm:$0xff]
    %v152 = vld [vmem:[#allocation7 + $0x10] sm:$0xff]
    %v153 = vld [vmem:[#allocation7 + $0x18] sm:$0xff]
    %s154 = scalar_lea.vmem [#allocation7], 32
    %v155 = vld [vmem:[%s154] sm:$0xff]
    %v156 = vld [vmem:[%s154 + $0x8] sm:$0xff]
    %v157 = vld [vmem:[%s154 + $0x10] sm:$0xff]
    %v158 = vld [vmem:[%s154 + $0x18] sm:$0xff]
    %v159 = vld [vmem:[%s4] sm:$0xff]
    %v160 = vld [vmem:[%s4 + $0x8] sm:$0xff]
    %v161 = vld [vmem:[%s4 + $0x10] sm:$0xff]
    %v162 = vld [vmem:[%s4 + $0x18] sm:$0xff]
    %v163 = vld [vmem:[%s5] sm:$0x1]
    %v165 = vlaneseq
    %v166 = vshrl.u32 %v165, 7
    %v167 = vsub.s32 0, %v166
    %v168 = vrot.slane %v163, %v167
    %s170 = scalar_lea.vmem %s5, 1
    %v171 = vld [vmem:[%s170] sm:$0x1]
    %v173 = vlaneseq
    %v174 = vshrl.u32 %v173, 7
    %v175 = vsub.s32 0, %v174
    %v176 = vrot.slane %v171, %v175
    %vm178 = vcmask 261120
    %v180 = vsel %vm178, %v147, 0
    %182 = vmatprep.subr.mxu0 0.0
    %183 = vmatpush1.msra.mxu0 %v150
    %184 = vmatprep.subr.mxu0 0.0
    %185 = vmatpush1.msra.mxu0 %v151
    %186 = vmatprep.subr.mxu0 0.0
    %187 = vmatpush1.msra.mxu0 %v152
    %188 = vmatprep.subr.mxu0 0.0
    %189 = vmatpush1.msra.mxu0 %v153
    %190 = vmatprep.subr.mxu0 0.0
    %191 = vmatpush1.msra.mxu0 0.0
    %192 = vmatprep.subr.mxu0 0.0
    %193 = vmatpush1.msra.mxu0 0.0
    %194 = vmatprep.subr.mxu0 0.0
    %195 = vmatpush1.msra.mxu0 0.0
    %196 = vmatprep.subr.mxu0 0.0
    %197 = vmatpush1.msra.mxu0 0.0
    %198 = vmatprep.subr.mxu0 0.0
    %199 = vmatpush1.msra.mxu0 0.0
    %200 = vmatprep.subr.mxu0 0.0
    %201 = vmatpush1.msra.mxu0 0.0
    %202 = vmatprep.subr.mxu0 0.0
    %203 = vmatpush1.msra.mxu0 0.0
    %204 = vmatprep.subr.mxu0 0.0
    %205 = vmatpush1.msra.mxu0 0.0
    %206 = vmatprep.subr.mxu0 0.0
    %207 = vmatpush1.msra.mxu0 0.0
    %208 = vmatprep.subr.mxu0 0.0
    %209 = vmatpush1.msra.mxu0 0.0
    %210 = vmatprep.subr.mxu0 0.0
    %211 = vmatpush1.msra.mxu0 0.0
    %212 = vmatprep.subr.mxu0 0.0
    %213 = vmatpush1.msra.mxu0 0.0
    %214 = vmatprep.subr.mxu0 0.0
    %215 = vmatpush1.msra.mxu0 0.0
    %216 = vmatprep.subr.mxu0 0.0
    %217 = vmatpush1.msra.mxu0 0.0
    %218 = vmatprep.subr.mxu0 0.0
    %219 = vmatpush1.msra.mxu0 0.0
    %220 = vmatprep.subr.mxu0 0.0
    %221 = vmatpush1.msra.mxu0 0.0
    %222 = vmatprep.subr.mxu0 0.0
    %223 = vmatpush1.msra.mxu0 0.0
    %224 = vmatprep.subr.mxu0 0.0
    %225 = vmatpush1.msra.mxu0 0.0
    %226 = vmatprep.subr.mxu0 0.0
    %227 = vmatpush1.msra.mxu0 0.0
    %228 = vmatprep.subr.mxu0 0.0
    %229 = vmatpush1.msra.mxu0 0.0
    %230 = vmatprep.subr.mxu0 0.0
    %231 = vmatpush1.msra.mxu0 0.0
    %232 = vmatprep.subr.mxu0 0.0
    %233 = vmatpush1.msra.mxu0 0.0
    %234 = vmatprep.subr.mxu0 0.0
    %235 = vmatpush1.msra.mxu0 0.0
    %236 = vmatprep.subr.mxu0 0.0
    %237 = vmatpush1.msra.mxu0 0.0
    %238 = vmatprep.subr.mxu0 0.0
    %239 = vmatpush1.msra.mxu0 0.0
    %240 = vmatprep.subr.mxu0 0.0
    %241 = vmatpush1.msra.mxu0 0.0
    %242 = vmatprep.subr.mxu0 0.0
    %243 = vmatpush1.msra.mxu0 0.0
    %244 = vmatprep.subr.mxu0 0.0
    %245 = vmatpush1.msra.mxu0 0.0
    %246 = vmatprep.mubr.f32.mxu0 0.0
    %247 = vmatmul.mubr.f32.gmra.mrb[0].mxu0 %v180
    %v248 = vpop.f32.mrb[0].mxu0
    %v249 = vadd.f32 %v168, %v248
    %v250 = vpop.f32.mrb[0].mxu0
    %251 = vdwg.mxu0
    %v252 = vxor.u32 %v249, 2147483648
    %v253 = vmul.f32 %v252, 1.442695
    %v254 = vpow.pop %v253
    %v255 = vadd.f32 %v254, 1.0
    %v256 = vrcp.pop %v255
    %v257 = vmul.f32 1.0, %v256
    %v258 = vtanh.pop %v249
    %v259 = vmul.f32 %v257, 0.0
    %261 = vrot.lane.b32.xlu0 %v258, 32
    %v262 = vpop.permute.xlu0 %261
    %v264 = vmul.f32 %v257, %v262
    %266 = vrot.lane.b32.xlu0 %v264, 32
    %v267 = vpop.permute.xlu0 %266
    %v269 = vadd.f32 %v259, %v267
    %v270 = vtanh.pop %v269
    %272 = vrot.lane.b32.xlu0 %v270, 32
    %v273 = vpop.permute.xlu0 %272
    %v275 = vmul.f32 %v257, %v273
    %276 = vmatprep.subr.mxu0 0.0
    %277 = vmatpush1.msra.mxu0 %v155
    %278 = vmatprep.subr.mxu0 0.0
    %279 = vmatpush1.msra.mxu0 %v156
    %280 = vmatprep.subr.mxu0 0.0
    %281 = vmatpush1.msra.mxu0 %v157
    %282 = vmatprep.subr.mxu0 0.0
    %283 = vmatpush1.msra.mxu0 %v158
    %284 = vmatprep.subr.mxu0 0.0
    %285 = vmatpush1.msra.mxu0 0.0
    %286 = vmatprep.subr.mxu0 0.0
    %287 = vmatpush1.msra.mxu0 0.0
    %288 = vmatprep.subr.mxu0 0.0
    %289 = vmatpush1.msra.mxu0 0.0
    %290 = vmatprep.subr.mxu0 0.0
    %291 = vmatpush1.msra.mxu0 0.0
    %292 = vmatprep.subr.mxu0 0.0
    %293 = vmatpush1.msra.mxu0 0.0
    %294 = vmatprep.subr.mxu0 0.0
    %295 = vmatpush1.msra.mxu0 0.0
    %296 = vmatprep.subr.mxu0 0.0
    %297 = vmatpush1.msra.mxu0 0.0
    %298 = vmatprep.subr.mxu0 0.0
    %299 = vmatpush1.msra.mxu0 0.0
    %300 = vmatprep.subr.mxu0 0.0
    %301 = vmatpush1.msra.mxu0 0.0
    %302 = vmatprep.subr.mxu0 0.0
    %303 = vmatpush1.msra.mxu0 0.0
    %304 = vmatprep.subr.mxu0 0.0
    %305 = vmatpush1.msra.mxu0 0.0
    %306 = vmatprep.subr.mxu0 0.0
    %307 = vmatpush1.msra.mxu0 0.0
    %308 = vmatprep.subr.mxu0 0.0
    %309 = vmatpush1.msra.mxu0 0.0
    %310 = vmatprep.subr.mxu0 0.0
    %311 = vmatpush1.msra.mxu0 0.0
    %312 = vmatprep.subr.mxu0 0.0
    %313 = vmatpush1.msra.mxu0 0.0
    %314 = vmatprep.subr.mxu0 0.0
    %315 = vmatpush1.msra.mxu0 0.0
    %316 = vmatprep.subr.mxu0 0.0
    %317 = vmatpush1.msra.mxu0 0.0
    %318 = vmatprep.subr.mxu0 0.0
    %319 = vmatpush1.msra.mxu0 0.0
    %320 = vmatprep.subr.mxu0 0.0
    %321 = vmatpush1.msra.mxu0 0.0
    %322 = vmatprep.subr.mxu0 0.0
    %323 = vmatpush1.msra.mxu0 0.0
    %324 = vmatprep.subr.mxu0 0.0
    %325 = vmatpush1.msra.mxu0 0.0
    %326 = vmatprep.subr.mxu0 0.0
    %327 = vmatpush1.msra.mxu0 0.0
    %328 = vmatprep.subr.mxu0 0.0
    %329 = vmatpush1.msra.mxu0 0.0
    %330 = vmatprep.subr.mxu0 0.0
    %331 = vmatpush1.msra.mxu0 0.0
    %332 = vmatprep.subr.mxu0 0.0
    %333 = vmatpush1.msra.mxu0 0.0
    %334 = vmatprep.subr.mxu0 0.0
    %335 = vmatpush1.msra.mxu0 0.0
    %336 = vmatprep.subr.mxu0 0.0
    %337 = vmatpush1.msra.mxu0 0.0
    %338 = vmatprep.subr.mxu0 0.0
    %339 = vmatpush1.msra.mxu0 0.0
    %340 = vmatprep.mubr.f32.mxu0 0.0
    %341 = vmatmul.mubr.f32.gmra.mrb[0].mxu0 %v180
    %v342 = vpop.f32.mrb[0].mxu0
    %v343 = vadd.f32 %v176, %v342
    %v344 = vpop.f32.mrb[0].mxu0
    %345 = vdwg.mxu0
    %347 = vrot.lane.b32.xlu0 %v275, 64
    %v348 = vpop.permute.xlu0 %347
    %v349 = vsel %vm178, %v348, 0
    %351 = vmatprep.subr.mxu0 0.0
    %352 = vmatpush1.msra.mxu0 %v159
    %353 = vmatprep.subr.mxu0 0.0
    %354 = vmatpush1.msra.mxu0 %v160
    %355 = vmatprep.subr.mxu0 0.0
    %356 = vmatpush1.msra.mxu0 %v161
    %357 = vmatprep.subr.mxu0 0.0
    %358 = vmatpush1.msra.mxu0 %v162
    %359 = vmatprep.subr.mxu0 0.0
    %360 = vmatpush1.msra.mxu0 0.0
    %361 = vmatprep.subr.mxu0 0.0
    %362 = vmatpush1.msra.mxu0 0.0
    %363 = vmatprep.subr.mxu0 0.0
    %364 = vmatpush1.msra.mxu0 0.0
    %365 = vmatprep.subr.mxu0 0.0
    %366 = vmatpush1.msra.mxu0 0.0
    %367 = vmatprep.subr.mxu0 0.0
    %368 = vmatpush1.msra.mxu0 0.0
    %369 = vmatprep.subr.mxu0 0.0
    %370 = vmatpush1.msra.mxu0 0.0
    %371 = vmatprep.subr.mxu0 0.0
    %372 = vmatpush1.msra.mxu0 0.0
    %373 = vmatprep.subr.mxu0 0.0
    %374 = vmatpush1.msra.mxu0 0.0
    %375 = vmatprep.subr.mxu0 0.0
    %376 = vmatpush1.msra.mxu0 0.0
    %377 = vmatprep.subr.mxu0 0.0
    %378 = vmatpush1.msra.mxu0 0.0
    %379 = vmatprep.subr.mxu0 0.0
    %380 = vmatpush1.msra.mxu0 0.0
    %381 = vmatprep.subr.mxu0 0.0
    %382 = vmatpush1.msra.mxu0 0.0
    %383 = vmatprep.subr.mxu0 0.0
    %384 = vmatpush1.msra.mxu0 0.0
    %385 = vmatprep.subr.mxu0 0.0
    %386 = vmatpush1.msra.mxu0 0.0
    %387 = vmatprep.subr.mxu0 0.0
    %388 = vmatpush1.msra.mxu0 0.0
    %389 = vmatprep.subr.mxu0 0.0
    %390 = vmatpush1.msra.mxu0 0.0
    %391 = vmatprep.subr.mxu0 0.0
    %392 = vmatpush1.msra.mxu0 0.0
    %393 = vmatprep.subr.mxu0 0.0
    %394 = vmatpush1.msra.mxu0 0.0
    %395 = vmatprep.subr.mxu0 0.0
    %396 = vmatpush1.msra.mxu0 0.0
    %397 = vmatprep.subr.mxu0 0.0
    %398 = vmatpush1.msra.mxu0 0.0
    %399 = vmatprep.subr.mxu0 0.0
    %400 = vmatpush1.msra.mxu0 0.0
    %401 = vmatprep.subr.mxu0 0.0
    %402 = vmatpush1.msra.mxu0 0.0
    %403 = vmatprep.subr.mxu0 0.0
    %404 = vmatpush1.msra.mxu0 0.0
    %405 = vmatprep.subr.mxu0 0.0
    %406 = vmatpush1.msra.mxu0 0.0
    %407 = vmatprep.subr.mxu0 0.0
    %408 = vmatpush1.msra.mxu0 0.0
    %409 = vmatprep.subr.mxu0 0.0
    %410 = vmatpush1.msra.mxu0 0.0
    %411 = vmatprep.subr.mxu0 0.0
    %412 = vmatpush1.msra.mxu0 0.0
    %413 = vmatprep.subr.mxu0 0.0
    %414 = vmatpush1.msra.mxu0 0.0
    %415 = vmatprep.mubr.f32.mxu0 0.0
    %416 = vmatmul.mubr.f32.gmra.mrb[0].mxu0 %v349
    %v417 = vpop.f32.mrb[0].mxu0
    %v418 = vadd.f32 0.0, %v417
    %v419 = vpop.f32.mrb[0].mxu0
    %420 = vdwg.mxu0
    %v421 = vadd.f32 %v343, %v418
    %v422 = vxor.u32 %v421, 2147483648
    %v423 = vmul.f32 %v422, 1.442695
    %v424 = vpow.pop %v423
    %v425 = vadd.f32 %v424, 1.0
    %v426 = vrcp.pop %v425
    %v427 = vmul.f32 1.0, %v426
    %v428 = vtanh.pop %v421
    %v429 = vmul.f32 %v427, 0.0
    %431 = vrot.lane.b32.xlu0 %v428, 32
    %v432 = vpop.permute.xlu0 %431
    %v434 = vmul.f32 %v427, %v432
    %436 = vrot.lane.b32.xlu0 %v434, 32
    %v437 = vpop.permute.xlu0 %436
    %v439 = vadd.f32 %v429, %v437
    %v440 = vtanh.pop %v439
    %442 = vrot.lane.b32.xlu0 %v440, 32
    %v443 = vpop.permute.xlu0 %442
    %v445 = vmul.f32 %v427, %v443
    %447 = vrot.lane.b32.xlu0 %v445, 64
    %v448 = vpop.permute.xlu0 %447
    %vm450 = vcmask 254976
    %451 = vst.msk [vmem:[#allocation2] sm:$0x3] %vm450, %v448
    %452 = vmatprep.subr.mxu0 0.0
    %453 = vmatpush1.msra.mxu0 %v150
    %454 = vmatprep.subr.mxu0 0.0
    %455 = vmatpush1.msra.mxu0 %v151
    %456 = vmatprep.subr.mxu0 0.0
    %457 = vmatpush1.msra.mxu0 %v152
    %458 = vmatprep.subr.mxu0 0.0
    %459 = vmatpush1.msra.mxu0 %v153
    %460 = vmatprep.subr.mxu0 0.0
    %461 = vmatpush1.msra.mxu0 0.0
    %462 = vmatprep.subr.mxu0 0.0
    %463 = vmatpush1.msra.mxu0 0.0
    %464 = vmatprep.subr.mxu0 0.0
    %465 = vmatpush1.msra.mxu0 0.0
    %466 = vmatprep.subr.mxu0 0.0
    %467 = vmatpush1.msra.mxu0 0.0
    %468 = vmatprep.subr.mxu0 0.0
    %469 = vmatpush1.msra.mxu0 0.0
    %470 = vmatprep.subr.mxu0 0.0
    %471 = vmatpush1.msra.mxu0 0.0
    %472 = vmatprep.subr.mxu0 0.0
    %473 = vmatpush1.msra.mxu0 0.0
    %474 = vmatprep.subr.mxu0 0.0
    %475 = vmatpush1.msra.mxu0 0.0
    %476 = vmatprep.subr.mxu0 0.0
    %477 = vmatpush1.msra.mxu0 0.0
    %478 = vmatprep.subr.mxu0 0.0
    %479 = vmatpush1.msra.mxu0 0.0
    %480 = vmatprep.subr.mxu0 0.0
    %481 = vmatpush1.msra.mxu0 0.0
    %482 = vmatprep.subr.mxu0 0.0
    %483 = vmatpush1.msra.mxu0 0.0
    %484 = vmatprep.subr.mxu0 0.0
    %485 = vmatpush1.msra.mxu0 0.0
    %486 = vmatprep.subr.mxu0 0.0
    %487 = vmatpush1.msra.mxu0 0.0
    %488 = vmatprep.subr.mxu0 0.0
    %489 = vmatpush1.msra.mxu0 0.0
    %490 = vmatprep.subr.mxu0 0.0
    %491 = vmatpush1.msra.mxu0 0.0
    %492 = vmatprep.subr.mxu0 0.0
    %493 = vmatpush1.msra.mxu0 0.0
    %494 = vmatprep.subr.mxu0 0.0
    %495 = vmatpush1.msra.mxu0 0.0
    %496 = vmatprep.subr.mxu0 0.0
    %497 = vmatpush1.msra.mxu0 0.0
    %498 = vmatprep.subr.mxu0 0.0
    %499 = vmatpush1.msra.mxu0 0.0
    %500 = vmatprep.subr.mxu0 0.0
    %501 = vmatpush1.msra.mxu0 0.0
    %502 = vmatprep.subr.mxu0 0.0
    %503 = vmatpush1.msra.mxu0 0.0
    %504 = vmatprep.subr.mxu0 0.0
    %505 = vmatpush1.msra.mxu0 0.0
    %506 = vmatprep.subr.mxu0 0.0
    %507 = vmatpush1.msra.mxu0 0.0
    %508 = vmatprep.subr.mxu0 0.0
    %509 = vmatpush1.msra.mxu0 0.0
    %510 = vmatprep.subr.mxu0 0.0
    %511 = vmatpush1.msra.mxu0 0.0
    %512 = vmatprep.subr.mxu0 0.0
    %513 = vmatpush1.msra.mxu0 0.0
    %514 = vmatprep.subr.mxu0 0.0
    %515 = vmatpush1.msra.mxu0 0.0
    %516 = vmatprep.mubr.f32.mxu0 0.0
    %517 = vmatmul.mubr.f32.gmra.mrb[0].mxu0 %v349
    %v518 = vpop.f32.mrb[0].mxu0
    %v519 = vadd.f32 %v168, %v518
    %v520 = vpop.f32.mrb[0].mxu0
    %521 = vdwg.mxu0
    %v522 = vxor.u32 %v519, 2147483648
    %v523 = vmul.f32 %v522, 1.442695
    %v524 = vpow.pop %v523
    %v525 = vadd.f32 %v524, 1.0
    %v526 = vrcp.pop %v525
    %v527 = vmul.f32 1.0, %v526
    %v528 = vtanh.pop %v519
    %v529 = vmul.f32 %v527, %v269
    %531 = vrot.lane.b32.xlu0 %v528, 32
    %v532 = vpop.permute.xlu0 %531
    %v534 = vmul.f32 %v527, %v532
    %536 = vrot.lane.b32.xlu0 %v534, 32
    %v537 = vpop.permute.xlu0 %536
    %v539 = vadd.f32 %v529, %v537
    %v540 = vtanh.pop %v539
    %542 = vrot.lane.b32.xlu0 %v540, 32
    %v543 = vpop.permute.xlu0 %542
    %v545 = vmul.f32 %v527, %v543
    %v546 = vsel %vm178, %v448, 0
    %548 = vmatprep.subr.mxu0 0.0
    %549 = vmatpush1.msra.mxu0 %v155
    %550 = vmatprep.subr.mxu0 0.0
    %551 = vmatpush1.msra.mxu0 %v156
    %552 = vmatprep.subr.mxu0 0.0
    %553 = vmatpush1.msra.mxu0 %v157
    %554 = vmatprep.subr.mxu0 0.0
    %555 = vmatpush1.msra.mxu0 %v158
    %556 = vmatprep.subr.mxu0 0.0
    %557 = vmatpush1.msra.mxu0 0.0
    %558 = vmatprep.subr.mxu0 0.0
    %559 = vmatpush1.msra.mxu0 0.0
    %560 = vmatprep.subr.mxu0 0.0
    %561 = vmatpush1.msra.mxu0 0.0
    %562 = vmatprep.subr.mxu0 0.0
    %563 = vmatpush1.msra.mxu0 0.0
    %564 = vmatprep.subr.mxu0 0.0
    %565 = vmatpush1.msra.mxu0 0.0
    %566 = vmatprep.subr.mxu0 0.0
    %567 = vmatpush1.msra.mxu0 0.0
    %568 = vmatprep.subr.mxu0 0.0
    %569 = vmatpush1.msra.mxu0 0.0
    %570 = vmatprep.subr.mxu0 0.0
    %571 = vmatpush1.msra.mxu0 0.0
    %572 = vmatprep.subr.mxu0 0.0
    %573 = vmatpush1.msra.mxu0 0.0
    %574 = vmatprep.subr.mxu0 0.0
    %575 = vmatpush1.msra.mxu0 0.0
    %576 = vmatprep.subr.mxu0 0.0
    %577 = vmatpush1.msra.mxu0 0.0
    %578 = vmatprep.subr.mxu0 0.0
    %579 = vmatpush1.msra.mxu0 0.0
    %580 = vmatprep.subr.mxu0 0.0
    %581 = vmatpush1.msra.mxu0 0.0
    %582 = vmatprep.subr.mxu0 0.0
    %583 = vmatpush1.msra.mxu0 0.0
    %584 = vmatprep.subr.mxu0 0.0
    %585 = vmatpush1.msra.mxu0 0.0
    %586 = vmatprep.subr.mxu0 0.0
    %587 = vmatpush1.msra.mxu0 0.0
    %588 = vmatprep.subr.mxu0 0.0
    %589 = vmatpush1.msra.mxu0 0.0
    %590 = vmatprep.subr.mxu0 0.0
    %591 = vmatpush1.msra.mxu0 0.0
    %592 = vmatprep.subr.mxu0 0.0
    %593 = vmatpush1.msra.mxu0 0.0
    %594 = vmatprep.subr.mxu0 0.0
    %595 = vmatpush1.msra.mxu0 0.0
    %596 = vmatprep.subr.mxu0 0.0
    %597 = vmatpush1.msra.mxu0 0.0
    %598 = vmatprep.subr.mxu0 0.0
    %599 = vmatpush1.msra.mxu0 0.0
    %600 = vmatprep.subr.mxu0 0.0
    %601 = vmatpush1.msra.mxu0 0.0
    %602 = vmatprep.subr.mxu0 0.0
    %603 = vmatpush1.msra.mxu0 0.0
    %604 = vmatprep.subr.mxu0 0.0
    %605 = vmatpush1.msra.mxu0 0.0
    %606 = vmatprep.subr.mxu0 0.0
    %607 = vmatpush1.msra.mxu0 0.0
    %608 = vmatprep.subr.mxu0 0.0
    %609 = vmatpush1.msra.mxu0 0.0
    %610 = vmatprep.subr.mxu0 0.0
    %611 = vmatpush1.msra.mxu0 0.0
    %612 = vmatprep.mubr.f32.mxu0 0.0
    %613 = vmatmul.mubr.f32.gmra.mrb[0].mxu0 %v546
    %v614 = vpop.f32.mrb[0].mxu0
    %v615 = vadd.f32 %v176, %v614
    %v616 = vpop.f32.mrb[0].mxu0
    %617 = vdwg.mxu0
    %619 = vrot.lane.b32.xlu0 %v545, 64
    %v620 = vpop.permute.xlu0 %619
    %v621 = vsel %vm178, %v620, 0
    %623 = vmatprep.subr.mxu0 0.0
    %624 = vmatpush1.msra.mxu0 %v159
    %625 = vmatprep.subr.mxu0 0.0
    %626 = vmatpush1.msra.mxu0 %v160
    %627 = vmatprep.subr.mxu0 0.0
    %628 = vmatpush1.msra.mxu0 %v161
    %629 = vmatprep.subr.mxu0 0.0
    %630 = vmatpush1.msra.mxu0 %v162
    %631 = vmatprep.subr.mxu0 0.0
    %632 = vmatpush1.msra.mxu0 0.0
    %633 = vmatprep.subr.mxu0 0.0
    %634 = vmatpush1.msra.mxu0 0.0
    %635 = vmatprep.subr.mxu0 0.0
    %636 = vmatpush1.msra.mxu0 0.0
    %637 = vmatprep.subr.mxu0 0.0
    %638 = vmatpush1.msra.mxu0 0.0
    %639 = vmatprep.subr.mxu0 0.0
    %640 = vmatpush1.msra.mxu0 0.0
    %641 = vmatprep.subr.mxu0 0.0
    %642 = vmatpush1.msra.mxu0 0.0
    %643 = vmatprep.subr.mxu0 0.0
    %644 = vmatpush1.msra.mxu0 0.0
    %645 = vmatprep.subr.mxu0 0.0
    %646 = vmatpush1.msra.mxu0 0.0
    %647 = vmatprep.subr.mxu0 0.0
    %648 = vmatpush1.msra.mxu0 0.0
    %649 = vmatprep.subr.mxu0 0.0
    %650 = vmatpush1.msra.mxu0 0.0
    %651 = vmatprep.subr.mxu0 0.0
    %652 = vmatpush1.msra.mxu0 0.0
    %653 = vmatprep.subr.mxu0 0.0
    %654 = vmatpush1.msra.mxu0 0.0
    %655 = vmatprep.subr.mxu0 0.0
    %656 = vmatpush1.msra.mxu0 0.0
    %657 = vmatprep.subr.mxu0 0.0
    %658 = vmatpush1.msra.mxu0 0.0
    %659 = vmatprep.subr.mxu0 0.0
    %660 = vmatpush1.msra.mxu0 0.0
    %661 = vmatprep.subr.mxu0 0.0
    %662 = vmatpush1.msra.mxu0 0.0
    %663 = vmatprep.subr.mxu0 0.0
    %664 = vmatpush1.msra.mxu0 0.0
    %665 = vmatprep.subr.mxu0 0.0
    %666 = vmatpush1.msra.mxu0 0.0
    %667 = vmatprep.subr.mxu0 0.0
    %668 = vmatpush1.msra.mxu0 0.0
    %669 = vmatprep.subr.mxu0 0.0
    %670 = vmatpush1.msra.mxu0 0.0
    %671 = vmatprep.subr.mxu0 0.0
    %672 = vmatpush1.msra.mxu0 0.0
    %673 = vmatprep.subr.mxu0 0.0
    %674 = vmatpush1.msra.mxu0 0.0
    %675 = vmatprep.subr.mxu0 0.0
    %676 = vmatpush1.msra.mxu0 0.0
    %677 = vmatprep.subr.mxu0 0.0
    %678 = vmatpush1.msra.mxu0 0.0
    %679 = vmatprep.subr.mxu0 0.0
    %680 = vmatpush1.msra.mxu0 0.0
    %681 = vmatprep.subr.mxu0 0.0
    %682 = vmatpush1.msra.mxu0 0.0
    %683 = vmatprep.subr.mxu0 0.0
    %684 = vmatpush1.msra.mxu0 0.0
    %685 = vmatprep.subr.mxu0 0.0
    %686 = vmatpush1.msra.mxu0 0.0
    %687 = vmatprep.mubr.f32.mxu0 0.0
    %688 = vmatmul.mubr.f32.gmra.mrb[0].mxu0 %v621
    %v689 = vpop.f32.mrb[0].mxu0
    %v690 = vadd.f32 0.0, %v689
    %v691 = vpop.f32.mrb[0].mxu0
    %692 = vdwg.mxu0
    %v693 = vadd.f32 %v615, %v690
    %v694 = vxor.u32 %v693, 2147483648
    %v695 = vmul.f32 %v694, 1.442695
    %v696 = vpow.pop %v695
    %v697 = vadd.f32 %v696, 1.0
    %v698 = vrcp.pop %v697
    %v699 = vmul.f32 1.0, %v698
    %v700 = vtanh.pop %v693
    %v701 = vmul.f32 %v699, %v439
    %703 = vrot.lane.b32.xlu0 %v700, 32
    %v704 = vpop.permute.xlu0 %703
    %v706 = vmul.f32 %v699, %v704
    %708 = vrot.lane.b32.xlu0 %v706, 32
    %v709 = vpop.permute.xlu0 %708
    %v711 = vadd.f32 %v701, %v709
    %v712 = vtanh.pop %v711
    %714 = vrot.lane.b32.xlu0 %v712, 32
    %v715 = vpop.permute.xlu0 %714
    %v717 = vmul.f32 %v699, %v715
    %719 = vrot.lane.b32.xlu0 %v717, 64
    %v720 = vpop.permute.xlu0 %719
    %s722 = scalar_lea.vmem [#allocation2], 2
    %723 = vst.msk [vmem:[%s722] sm:$0x3] %vm450, %v720
    %724 = vmatprep.subr.mxu0 0.0
    %725 = vmatpush1.msra.mxu0 %v150
    %726 = vmatprep.subr.mxu0 0.0
    %727 = vmatpush1.msra.mxu0 %v151
    %728 = vmatprep.subr.mxu0 0.0
    %729 = vmatpush1.msra.mxu0 %v152
    %730 = vmatprep.subr.mxu0 0.0
    %731 = vmatpush1.msra.mxu0 %v153
    %732 = vmatprep.subr.mxu0 0.0
    %733 = vmatpush1.msra.mxu0 0.0
    %734 = vmatprep.subr.mxu0 0.0
    %735 = vmatpush1.msra.mxu0 0.0
    %736 = vmatprep.subr.mxu0 0.0
    %737 = vmatpush1.msra.mxu0 0.0
    %738 = vmatprep.subr.mxu0 0.0
    %739 = vmatpush1.msra.mxu0 0.0
    %740 = vmatprep.subr.mxu0 0.0
    %741 = vmatpush1.msra.mxu0 0.0
    %742 = vmatprep.subr.mxu0 0.0
    %743 = vmatpush1.msra.mxu0 0.0
    %744 = vmatprep.subr.mxu0 0.0
    %745 = vmatpush1.msra.mxu0 0.0
    %746 = vmatprep.subr.mxu0 0.0
    %747 = vmatpush1.msra.mxu0 0.0
    %748 = vmatprep.subr.mxu0 0.0
    %749 = vmatpush1.msra.mxu0 0.0
    %750 = vmatprep.subr.mxu0 0.0
    %751 = vmatpush1.msra.mxu0 0.0
    %752 = vmatprep.subr.mxu0 0.0
    %753 = vmatpush1.msra.mxu0 0.0
    %754 = vmatprep.subr.mxu0 0.0
    %755 = vmatpush1.msra.mxu0 0.0
    %756 = vmatprep.subr.mxu0 0.0
    %757 = vmatpush1.msra.mxu0 0.0
    %758 = vmatprep.subr.mxu0 0.0
    %759 = vmatpush1.msra.mxu0 0.0
    %760 = vmatprep.subr.mxu0 0.0
    %761 = vmatpush1.msra.mxu0 0.0
    %762 = vmatprep.subr.mxu0 0.0
    %763 = vmatpush1.msra.mxu0 0.0
    %764 = vmatprep.subr.mxu0 0.0
    %765 = vmatpush1.msra.mxu0 0.0
    %766 = vmatprep.subr.mxu0 0.0
    %767 = vmatpush1.msra.mxu0 0.0
    %768 = vmatprep.subr.mxu0 0.0
    %769 = vmatpush1.msra.mxu0 0.0
    %770 = vmatprep.subr.mxu0 0.0
    %771 = vmatpush1.msra.mxu0 0.0
    %772 = vmatprep.subr.mxu0 0.0
    %773 = vmatpush1.msra.mxu0 0.0
    %774 = vmatprep.subr.mxu0 0.0
    %775 = vmatpush1.msra.mxu0 0.0
    %776 = vmatprep.subr.mxu0 0.0
    %777 = vmatpush1.msra.mxu0 0.0
    %778 = vmatprep.subr.mxu0 0.0
    %779 = vmatpush1.msra.mxu0 0.0
    %780 = vmatprep.subr.mxu0 0.0
    %781 = vmatpush1.msra.mxu0 0.0
    %782 = vmatprep.subr.mxu0 0.0
    %783 = vmatpush1.msra.mxu0 0.0
    %784 = vmatprep.subr.mxu0 0.0
    %785 = vmatpush1.msra.mxu0 0.0
    %786 = vmatprep.subr.mxu0 0.0
    %787 = vmatpush1.msra.mxu0 0.0
    %788 = vmatprep.mubr.f32.mxu0 0.0
    %789 = vmatmul.mubr.f32.gmra.mrb[0].mxu0 %v621
    %v790 = vpop.f32.mrb[0].mxu0
    %v791 = vadd.f32 %v168, %v790
    %v792 = vpop.f32.mrb[0].mxu0
    %793 = vdwg.mxu0
    %v794 = vxor.u32 %v791, 2147483648
    %v795 = vmul.f32 %v794, 1.442695
    %v796 = vpow.pop %v795
    %v797 = vadd.f32 %v796, 1.0
    %v798 = vrcp.pop %v797
    %v799 = vmul.f32 1.0, %v798
    %v800 = vtanh.pop %v791
    %v801 = vmul.f32 %v799, %v539
    %803 = vrot.lane.b32.xlu0 %v800, 32
    %v804 = vpop.permute.xlu0 %803
    %v806 = vmul.f32 %v799, %v804
    %808 = vrot.lane.b32.xlu0 %v806, 32
    %v809 = vpop.permute.xlu0 %808
    %v811 = vadd.f32 %v801, %v809
    %v812 = vtanh.pop %v811
    %814 = vrot.lane.b32.xlu0 %v812, 32
    %v815 = vpop.permute.xlu0 %814
    %v817 = vmul.f32 %v799, %v815
    %v818 = vsel %vm178, %v720, 0
    %820 = vmatprep.subr.mxu0 0.0
    %821 = vmatpush1.msra.mxu0 %v155
    %822 = vmatprep.subr.mxu0 0.0
    %823 = vmatpush1.msra.mxu0 %v156
    %824 = vmatprep.subr.mxu0 0.0
    %825 = vmatpush1.msra.mxu0 %v157
    %826 = vmatprep.subr.mxu0 0.0
    %827 = vmatpush1.msra.mxu0 %v158
    %828 = vmatprep.subr.mxu0 0.0
    %829 = vmatpush1.msra.mxu0 0.0
    %830 = vmatprep.subr.mxu0 0.0
    %831 = vmatpush1.msra.mxu0 0.0
    %832 = vmatprep.subr.mxu0 0.0
    %833 = vmatpush1.msra.mxu0 0.0
    %834 = vmatprep.subr.mxu0 0.0
    %835 = vmatpush1.msra.mxu0 0.0
    %836 = vmatprep.subr.mxu0 0.0
    %837 = vmatpush1.msra.mxu0 0.0
    %838 = vmatprep.subr.mxu0 0.0
    %839 = vmatpush1.msra.mxu0 0.0
    %840 = vmatprep.subr.mxu0 0.0
    %841 = vmatpush1.msra.mxu0 0.0
    %842 = vmatprep.subr.mxu0 0.0
    %843 = vmatpush1.msra.mxu0 0.0
    %844 = vmatprep.subr.mxu0 0.0
    %845 = vmatpush1.msra.mxu0 0.0
    %846 = vmatprep.subr.mxu0 0.0
    %847 = vmatpush1.msra.mxu0 0.0
    %848 = vmatprep.subr.mxu0 0.0
    %849 = vmatpush1.msra.mxu0 0.0
    %850 = vmatprep.subr.mxu0 0.0
    %851 = vmatpush1.msra.mxu0 0.0
    %852 = vmatprep.subr.mxu0 0.0
    %853 = vmatpush1.msra.mxu0 0.0
    %854 = vmatprep.subr.mxu0 0.0
    %855 = vmatpush1.msra.mxu0 0.0
    %856 = vmatprep.subr.mxu0 0.0
    %857 = vmatpush1.msra.mxu0 0.0
    %858 = vmatprep.subr.mxu0 0.0
    %859 = vmatpush1.msra.mxu0 0.0
    %860 = vmatprep.subr.mxu0 0.0
    %861 = vmatpush1.msra.mxu0 0.0
    %862 = vmatprep.subr.mxu0 0.0
    %863 = vmatpush1.msra.mxu0 0.0
    %864 = vmatprep.subr.mxu0 0.0
    %865 = vmatpush1.msra.mxu0 0.0
    %866 = vmatprep.subr.mxu0 0.0
    %867 = vmatpush1.msra.mxu0 0.0
    %868 = vmatprep.subr.mxu0 0.0
    %869 = vmatpush1.msra.mxu0 0.0
    %870 = vmatprep.subr.mxu0 0.0
    %871 = vmatpush1.msra.mxu0 0.0
    %872 = vmatprep.subr.mxu0 0.0
    %873 = vmatpush1.msra.mxu0 0.0
    %874 = vmatprep.subr.mxu0 0.0
    %875 = vmatpush1.msra.mxu0 0.0
    %876 = vmatprep.subr.mxu0 0.0
    %877 = vmatpush1.msra.mxu0 0.0
    %878 = vmatprep.subr.mxu0 0.0
    %879 = vmatpush1.msra.mxu0 0.0
    %880 = vmatprep.subr.mxu0 0.0
    %881 = vmatpush1.msra.mxu0 0.0
    %882 = vmatprep.subr.mxu0 0.0
    %883 = vmatpush1.msra.mxu0 0.0
    %884 = vmatprep.mubr.f32.mxu0 0.0
    %885 = vmatmul.mubr.f32.gmra.mrb[0].mxu0 %v818
    %v886 = vpop.f32.mrb[0].mxu0
    %v887 = vadd.f32 %v176, %v886
    %v888 = vpop.f32.mrb[0].mxu0
    %889 = vdwg.mxu0
    %891 = vrot.lane.b32.xlu0 %v817, 64
    %v892 = vpop.permute.xlu0 %891
    %v893 = vsel %vm178, %v892, 0
    %895 = vmatprep.subr.mxu0 0.0
    %896 = vmatpush1.msra.mxu0 %v159
    %897 = vmatprep.subr.mxu0 0.0
    %898 = vmatpush1.msra.mxu0 %v160
    %899 = vmatprep.subr.mxu0 0.0
    %900 = vmatpush1.msra.mxu0 %v161
    %901 = vmatprep.subr.mxu0 0.0
    %902 = vmatpush1.msra.mxu0 %v162
    %903 = vmatprep.subr.mxu0 0.0
    %904 = vmatpush1.msra.mxu0 0.0
    %905 = vmatprep.subr.mxu0 0.0
    %906 = vmatpush1.msra.mxu0 0.0
    %907 = vmatprep.subr.mxu0 0.0
    %908 = vmatpush1.msra.mxu0 0.0
    %909 = vmatprep.subr.mxu0 0.0
    %910 = vmatpush1.msra.mxu0 0.0
    %911 = vmatprep.subr.mxu0 0.0
    %912 = vmatpush1.msra.mxu0 0.0
    %913 = vmatprep.subr.mxu0 0.0
    %914 = vmatpush1.msra.mxu0 0.0
    %915 = vmatprep.subr.mxu0 0.0
    %916 = vmatpush1.msra.mxu0 0.0
    %917 = vmatprep.subr.mxu0 0.0
    %918 = vmatpush1.msra.mxu0 0.0
    %919 = vmatprep.subr.mxu0 0.0
    %920 = vmatpush1.msra.mxu0 0.0
    %921 = vmatprep.subr.mxu0 0.0
    %922 = vmatpush1.msra.mxu0 0.0
    %923 = vmatprep.subr.mxu0 0.0
    %924 = vmatpush1.msra.mxu0 0.0
    %925 = vmatprep.subr.mxu0 0.0
    %926 = vmatpush1.msra.mxu0 0.0
    %927 = vmatprep.subr.mxu0 0.0
    %928 = vmatpush1.msra.mxu0 0.0
    %929 = vmatprep.subr.mxu0 0.0
    %930 = vmatpush1.msra.mxu0 0.0
    %931 = vmatprep.subr.mxu0 0.0
    %932 = vmatpush1.msra.mxu0 0.0
    %933 = vmatprep.subr.mxu0 0.0
    %934 = vmatpush1.msra.mxu0 0.0
    %935 = vmatprep.subr.mxu0 0.0
    %936 = vmatpush1.msra.mxu0 0.0
    %937 = vmatprep.subr.mxu0 0.0
    %938 = vmatpush1.msra.mxu0 0.0
    %939 = vmatprep.subr.mxu0 0.0
    %940 = vmatpush1.msra.mxu0 0.0
    %941 = vmatprep.subr.mxu0 0.0
    %942 = vmatpush1.msra.mxu0 0.0
    %943 = vmatprep.subr.mxu0 0.0
    %944 = vmatpush1.msra.mxu0 0.0
    %945 = vmatprep.subr.mxu0 0.0
    %946 = vmatpush1.msra.mxu0 0.0
    %947 = vmatprep.subr.mxu0 0.0
    %948 = vmatpush1.msra.mxu0 0.0
    %949 = vmatprep.subr.mxu0 0.0
    %950 = vmatpush1.msra.mxu0 0.0
    %951 = vmatprep.subr.mxu0 0.0
    %952 = vmatpush1.msra.mxu0 0.0
    %953 = vmatprep.subr.mxu0 0.0
    %954 = vmatpush1.msra.mxu0 0.0
    %955 = vmatprep.subr.mxu0 0.0
    %956 = vmatpush1.msra.mxu0 0.0
    %957 = vmatprep.subr.mxu0 0.0
    %958 = vmatpush1.msra.mxu0 0.0
    %959 = vmatprep.mubr.f32.mxu0 0.0
    %960 = vmatmul.mubr.f32.gmra.mrb[0].mxu0 %v893
    %v961 = vpop.f32.mrb[0].mxu0
    %v962 = vadd.f32 0.0, %v961
    %v963 = vpop.f32.mrb[0].mxu0
    %964 = vdwg.mxu0
    %v965 = vadd.f32 %v887, %v962
    %v966 = vxor.u32 %v965, 2147483648
    %v967 = vmul.f32 %v966, 1.442695
    %v968 = vpow.pop %v967
    %v969 = vadd.f32 %v968, 1.0
    %v970 = vrcp.pop %v969
    %v971 = vmul.f32 1.0, %v970
    %v972 = vtanh.pop %v965
    %v973 = vmul.f32 %v971, %v711
    %975 = vrot.lane.b32.xlu0 %v972, 32
    %v976 = vpop.permute.xlu0 %975
    %v978 = vmul.f32 %v971, %v976
    %980 = vrot.lane.b32.xlu0 %v978, 32
    %v981 = vpop.permute.xlu0 %980
    %v983 = vadd.f32 %v973, %v981
    %v984 = vtanh.pop %v983
    %986 = vrot.lane.b32.xlu0 %v984, 32
    %v987 = vpop.permute.xlu0 %986
    %v989 = vmul.f32 %v971, %v987
    %991 = vrot.lane.b32.xlu0 %v989, 64
    %v992 = vpop.permute.xlu0 %991
    %s994 = scalar_lea.vmem [#allocation2], 4
    %995 = vst.msk [vmem:[%s994] sm:$0x3] %vm450, %v992
    %996 = vmatprep.subr.mxu0 0.0
    %997 = vmatpush1.msra.mxu0 %v150
    %998 = vmatprep.subr.mxu0 0.0
    %999 = vmatpush1.msra.mxu0 %v151
    %1000 = vmatprep.subr.mxu0 0.0
    %1001 = vmatpush1.msra.mxu0 %v152
    %1002 = vmatprep.subr.mxu0 0.0
    %1003 = vmatpush1.msra.mxu0 %v153
    %1004 = vmatprep.subr.mxu0 0.0
    %1005 = vmatpush1.msra.mxu0 0.0
    %1006 = vmatprep.subr.mxu0 0.0
    %1007 = vmatpush1.msra.mxu0 0.0
    %1008 = vmatprep.subr.mxu0 0.0
    %1009 = vmatpush1.msra.mxu0 0.0
    %1010 = vmatprep.subr.mxu0 0.0
    %1011 = vmatpush1.msra.mxu0 0.0
    %1012 = vmatprep.subr.mxu0 0.0
    %1013 = vmatpush1.msra.mxu0 0.0
    %1014 = vmatprep.subr.mxu0 0.0
    %1015 = vmatpush1.msra.mxu0 0.0
    %1016 = vmatprep.subr.mxu0 0.0
    %1017 = vmatpush1.msra.mxu0 0.0
    %1018 = vmatprep.subr.mxu0 0.0
    %1019 = vmatpush1.msra.mxu0 0.0
    %1020 = vmatprep.subr.mxu0 0.0
    %1021 = vmatpush1.msra.mxu0 0.0
    %1022 = vmatprep.subr.mxu0 0.0
    %1023 = vmatpush1.msra.mxu0 0.0
    %1024 = vmatprep.subr.mxu0 0.0
    %1025 = vmatpush1.msra.mxu0 0.0
    %1026 = vmatprep.subr.mxu0 0.0
    %1027 = vmatpush1.msra.mxu0 0.0
    %1028 = vmatprep.subr.mxu0 0.0
    %1029 = vmatpush1.msra.mxu0 0.0
    %1030 = vmatprep.subr.mxu0 0.0
    %1031 = vmatpush1.msra.mxu0 0.0
    %1032 = vmatprep.subr.mxu0 0.0
    %1033 = vmatpush1.msra.mxu0 0.0
    %1034 = vmatprep.subr.mxu0 0.0
    %1035 = vmatpush1.msra.mxu0 0.0
    %1036 = vmatprep.subr.mxu0 0.0
    %1037 = vmatpush1.msra.mxu0 0.0
    %1038 = vmatprep.subr.mxu0 0.0
    %1039 = vmatpush1.msra.mxu0 0.0
    %1040 = vmatprep.subr.mxu0 0.0
    %1041 = vmatpush1.msra.mxu0 0.0
    %1042 = vmatprep.subr.mxu0 0.0
    %1043 = vmatpush1.msra.mxu0 0.0
    %1044 = vmatprep.subr.mxu0 0.0
    %1045 = vmatpush1.msra.mxu0 0.0
    %1046 = vmatprep.subr.mxu0 0.0
    %1047 = vmatpush1.msra.mxu0 0.0
    %1048 = vmatprep.subr.mxu0 0.0
    %1049 = vmatpush1.msra.mxu0 0.0
    %1050 = vmatprep.subr.mxu0 0.0
    %1051 = vmatpush1.msra.mxu0 0.0
    %1052 = vmatprep.subr.mxu0 0.0
    %1053 = vmatpush1.msra.mxu0 0.0
    %1054 = vmatprep.subr.mxu0 0.0
    %1055 = vmatpush1.msra.mxu0 0.0
    %1056 = vmatprep.subr.mxu0 0.0
    %1057 = vmatpush1.msra.mxu0 0.0
    %1058 = vmatprep.subr.mxu0 0.0
    %1059 = vmatpush1.msra.mxu0 0.0
    %1060 = vmatprep.mubr.f32.mxu0 0.0
    %1061 = vmatmul.mubr.f32.gmra.mrb[0].mxu0 %v893
    %v1062 = vpop.f32.mrb[0].mxu0
    %v1063 = vadd.f32 %v168, %v1062
    %v1064 = vpop.f32.mrb[0].mxu0
    %1065 = vdwg.mxu0
    %v1066 = vxor.u32 %v1063, 2147483648
    %v1067 = vmul.f32 %v1066, 1.442695
    %v1068 = vpow.pop %v1067
    %v1069 = vadd.f32 %v1068, 1.0
    %v1070 = vrcp.pop %v1069
    %v1071 = vmul.f32 1.0, %v1070
    %v1072 = vtanh.pop %v1063
    %v1073 = vmul.f32 %v1071, %v811
    %1075 = vrot.lane.b32.xlu0 %v1072, 32
    %v1076 = vpop.permute.xlu0 %1075
    %v1078 = vmul.f32 %v1071, %v1076
    %1080 = vrot.lane.b32.xlu0 %v1078, 32
    %v1081 = vpop.permute.xlu0 %1080
    %v1083 = vadd.f32 %v1073, %v1081
    %v1084 = vtanh.pop %v1083
    %1086 = vrot.lane.b32.xlu0 %v1084, 32
    %v1087 = vpop.permute.xlu0 %1086
    %v1089 = vmul.f32 %v1071, %v1087
    %v1090 = vsel %vm178, %v992, 0
    %1092 = vmatprep.subr.mxu0 0.0
    %1093 = vmatpush1.msra.mxu0 %v155
    %1094 = vmatprep.subr.mxu0 0.0
    %1095 = vmatpush1.msra.mxu0 %v156
    %1096 = vmatprep.subr.mxu0 0.0
    %1097 = vmatpush1.msra.mxu0 %v157
    %1098 = vmatprep.subr.mxu0 0.0
    %1099 = vmatpush1.msra.mxu0 %v158
    %1100 = vmatprep.subr.mxu0 0.0
    %1101 = vmatpush1.msra.mxu0 0.0
    %1102 = vmatprep.subr.mxu0 0.0
    %1103 = vmatpush1.msra.mxu0 0.0
    %1104 = vmatprep.subr.mxu0 0.0
    %1105 = vmatpush1.msra.mxu0 0.0
    %1106 = vmatprep.subr.mxu0 0.0
    %1107 = vmatpush1.msra.mxu0 0.0
    %1108 = vmatprep.subr.mxu0 0.0
    %1109 = vmatpush1.msra.mxu0 0.0
    %1110 = vmatprep.subr.mxu0 0.0
    %1111 = vmatpush1.msra.mxu0 0.0
    %1112 = vmatprep.subr.mxu0 0.0
    %1113 = vmatpush1.msra.mxu0 0.0
    %1114 = vmatprep.subr.mxu0 0.0
    %1115 = vmatpush1.msra.mxu0 0.0
    %1116 = vmatprep.subr.mxu0 0.0
    %1117 = vmatpush1.msra.mxu0 0.0
    %1118 = vmatprep.subr.mxu0 0.0
    %1119 = vmatpush1.msra.mxu0 0.0
    %1120 = vmatprep.subr.mxu0 0.0
    %1121 = vmatpush1.msra.mxu0 0.0
    %1122 = vmatprep.subr.mxu0 0.0
    %1123 = vmatpush1.msra.mxu0 0.0
    %1124 = vmatprep.subr.mxu0 0.0
    %1125 = vmatpush1.msra.mxu0 0.0
    %1126 = vmatprep.subr.mxu0 0.0
    %1127 = vmatpush1.msra.mxu0 0.0
    %1128 = vmatprep.subr.mxu0 0.0
    %1129 = vmatpush1.msra.mxu0 0.0
    %1130 = vmatprep.subr.mxu0 0.0
    %1131 = vmatpush1.msra.mxu0 0.0
    %1132 = vmatprep.subr.mxu0 0.0
    %1133 = vmatpush1.msra.mxu0 0.0
    %1134 = vmatprep.subr.mxu0 0.0
    %1135 = vmatpush1.msra.mxu0 0.0
    %1136 = vmatprep.subr.mxu0 0.0
    %1137 = vmatpush1.msra.mxu0 0.0
    %1138 = vmatprep.subr.mxu0 0.0
    %1139 = vmatpush1.msra.mxu0 0.0
    %1140 = vmatprep.subr.mxu0 0.0
    %1141 = vmatpush1.msra.mxu0 0.0
    %1142 = vmatprep.subr.mxu0 0.0
    %1143 = vmatpush1.msra.mxu0 0.0
    %1144 = vmatprep.subr.mxu0 0.0
    %1145 = vmatpush1.msra.mxu0 0.0
    %1146 = vmatprep.subr.mxu0 0.0
    %1147 = vmatpush1.msra.mxu0 0.0
    %1148 = vmatprep.subr.mxu0 0.0
    %1149 = vmatpush1.msra.mxu0 0.0
    %1150 = vmatprep.subr.mxu0 0.0
    %1151 = vmatpush1.msra.mxu0 0.0
    %1152 = vmatprep.subr.mxu0 0.0
    %1153 = vmatpush1.msra.mxu0 0.0
    %1154 = vmatprep.subr.mxu0 0.0
    %1155 = vmatpush1.msra.mxu0 0.0
    %1156 = vmatprep.mubr.f32.mxu0 0.0
    %1157 = vmatmul.mubr.f32.gmra.mrb[0].mxu0 %v1090
    %v1158 = vpop.f32.mrb[0].mxu0
    %v1159 = vadd.f32 %v176, %v1158
    %v1160 = vpop.f32.mrb[0].mxu0
    %1161 = vdwg.mxu0
    %1163 = vrot.lane.b32.xlu0 %v1089, 64
    %v1164 = vpop.permute.xlu0 %1163
    %v1165 = vsel %vm178, %v1164, 0
    %1167 = vmatprep.subr.mxu0 0.0
    %1168 = vmatpush1.msra.mxu0 %v159
    %1169 = vmatprep.subr.mxu0 0.0
    %1170 = vmatpush1.msra.mxu0 %v160
    %1171 = vmatprep.subr.mxu0 0.0
    %1172 = vmatpush1.msra.mxu0 %v161
    %1173 = vmatprep.subr.mxu0 0.0
    %1174 = vmatpush1.msra.mxu0 %v162
    %1175 = vmatprep.subr.mxu0 0.0
    %1176 = vmatpush1.msra.mxu0 0.0
    %1177 = vmatprep.subr.mxu0 0.0
    %1178 = vmatpush1.msra.mxu0 0.0
    %1179 = vmatprep.subr.mxu0 0.0
    %1180 = vmatpush1.msra.mxu0 0.0
    %1181 = vmatprep.subr.mxu0 0.0
    %1182 = vmatpush1.msra.mxu0 0.0
    %1183 = vmatprep.subr.mxu0 0.0
    %1184 = vmatpush1.msra.mxu0 0.0
    %1185 = vmatprep.subr.mxu0 0.0
    %1186 = vmatpush1.msra.mxu0 0.0
    %1187 = vmatprep.subr.mxu0 0.0
    %1188 = vmatpush1.msra.mxu0 0.0
    %1189 = vmatprep.subr.mxu0 0.0
    %1190 = vmatpush1.msra.mxu0 0.0
    %1191 = vmatprep.subr.mxu0 0.0
    %1192 = vmatpush1.msra.mxu0 0.0
    %1193 = vmatprep.subr.mxu0 0.0
    %1194 = vmatpush1.msra.mxu0 0.0
    %1195 = vmatprep.subr.mxu0 0.0
    %1196 = vmatpush1.msra.mxu0 0.0
    %1197 = vmatprep.subr.mxu0 0.0
    %1198 = vmatpush1.msra.mxu0 0.0
    %1199 = vmatprep.subr.mxu0 0.0
    %1200 = vmatpush1.msra.mxu0 0.0
    %1201 = vmatprep.subr.mxu0 0.0
    %1202 = vmatpush1.msra.mxu0 0.0
    %1203 = vmatprep.subr.mxu0 0.0
    %1204 = vmatpush1.msra.mxu0 0.0
    %1205 = vmatprep.subr.mxu0 0.0
    %1206 = vmatpush1.msra.mxu0 0.0
    %1207 = vmatprep.subr.mxu0 0.0
    %1208 = vmatpush1.msra.mxu0 0.0
    %1209 = vmatprep.subr.mxu0 0.0
    %1210 = vmatpush1.msra.mxu0 0.0
    %1211 = vmatprep.subr.mxu0 0.0
    %1212 = vmatpush1.msra.mxu0 0.0
    %1213 = vmatprep.subr.mxu0 0.0
    %1214 = vmatpush1.msra.mxu0 0.0
    %1215 = vmatprep.subr.mxu0 0.0
    %1216 = vmatpush1.msra.mxu0 0.0
    %1217 = vmatprep.subr.mxu0 0.0
    %1218 = vmatpush1.msra.mxu0 0.0
    %1219 = vmatprep.subr.mxu0 0.0
    %1220 = vmatpush1.msra.mxu0 0.0
    %1221 = vmatprep.subr.mxu0 0.0
    %1222 = vmatpush1.msra.mxu0 0.0
    %1223 = vmatprep.subr.mxu0 0.0
    %1224 = vmatpush1.msra.mxu0 0.0
    %1225 = vmatprep.subr.mxu0 0.0
    %1226 = vmatpush1.msra.mxu0 0.0
    %1227 = vmatprep.subr.mxu0 0.0
    %1228 = vmatpush1.msra.mxu0 0.0
    %1229 = vmatprep.subr.mxu0 0.0
    %1230 = vmatpush1.msra.mxu0 0.0
    %1231 = vmatprep.mubr.f32.mxu0 0.0
    %1232 = vmatmul.mubr.f32.gmra.mrb[0].mxu0 %v1165
    %v1233 = vpop.f32.mrb[0].mxu0
    %v1234 = vadd.f32 0.0, %v1233
    %v1235 = vpop.f32.mrb[0].mxu0
    %1236 = vdwg.mxu0
    %v1237 = vadd.f32 %v1159, %v1234
    %v1238 = vxor.u32 %v1237, 2147483648
    %v1239 = vmul.f32 %v1238, 1.442695
    %v1240 = vpow.pop %v1239
    %v1241 = vadd.f32 %v1240, 1.0
    %v1242 = vrcp.pop %v1241
    %v1243 = vmul.f32 1.0, %v1242
    %v1244 = vtanh.pop %v1237
    %v1245 = vmul.f32 %v1243, %v983
    %1247 = vrot.lane.b32.xlu0 %v1244, 32
    %v1248 = vpop.permute.xlu0 %1247
    %v1250 = vmul.f32 %v1243, %v1248
    %1252 = vrot.lane.b32.xlu0 %v1250, 32
    %v1253 = vpop.permute.xlu0 %1252
    %v1255 = vadd.f32 %v1245, %v1253
    %v1256 = vtanh.pop %v1255
    %1258 = vrot.lane.b32.xlu0 %v1256, 32
    %v1259 = vpop.permute.xlu0 %1258
    %v1261 = vmul.f32 %v1243, %v1259
    %1263 = vrot.lane.b32.xlu0 %v1261, 64
    %v1264 = vpop.permute.xlu0 %1263
    %s1266 = scalar_lea.vmem [#allocation2], 6
    %1267 = vst.msk [vmem:[%s1266] sm:$0x3] %vm450, %v1264
    %1268 = vmatprep.subr.mxu0 0.0
    %1269 = vmatpush1.msra.mxu0 %v150
    %1270 = vmatprep.subr.mxu0 0.0
    %1271 = vmatpush1.msra.mxu0 %v151
    %1272 = vmatprep.subr.mxu0 0.0
    %1273 = vmatpush1.msra.mxu0 %v152
    %1274 = vmatprep.subr.mxu0 0.0
    %1275 = vmatpush1.msra.mxu0 %v153
    %1276 = vmatprep.subr.mxu0 0.0
    %1277 = vmatpush1.msra.mxu0 0.0
    %1278 = vmatprep.subr.mxu0 0.0
    %1279 = vmatpush1.msra.mxu0 0.0
    %1280 = vmatprep.subr.mxu0 0.0
    %1281 = vmatpush1.msra.mxu0 0.0
    %1282 = vmatprep.subr.mxu0 0.0
    %1283 = vmatpush1.msra.mxu0 0.0
    %1284 = vmatprep.subr.mxu0 0.0
    %1285 = vmatpush1.msra.mxu0 0.0
    %1286 = vmatprep.subr.mxu0 0.0
    %1287 = vmatpush1.msra.mxu0 0.0
    %1288 = vmatprep.subr.mxu0 0.0
    %1289 = vmatpush1.msra.mxu0 0.0
    %1290 = vmatprep.subr.mxu0 0.0
    %1291 = vmatpush1.msra.mxu0 0.0
    %1292 = vmatprep.subr.mxu0 0.0
    %1293 = vmatpush1.msra.mxu0 0.0
    %1294 = vmatprep.subr.mxu0 0.0
    %1295 = vmatpush1.msra.mxu0 0.0
    %1296 = vmatprep.subr.mxu0 0.0
    %1297 = vmatpush1.msra.mxu0 0.0
    %1298 = vmatprep.subr.mxu0 0.0
    %1299 = vmatpush1.msra.mxu0 0.0
    %1300 = vmatprep.subr.mxu0 0.0
    %1301 = vmatpush1.msra.mxu0 0.0
    %1302 = vmatprep.subr.mxu0 0.0
    %1303 = vmatpush1.msra.mxu0 0.0
    %1304 = vmatprep.subr.mxu0 0.0
    %1305 = vmatpush1.msra.mxu0 0.0
    %1306 = vmatprep.subr.mxu0 0.0
    %1307 = vmatpush1.msra.mxu0 0.0
    %1308 = vmatprep.subr.mxu0 0.0
    %1309 = vmatpush1.msra.mxu0 0.0
    %1310 = vmatprep.subr.mxu0 0.0
    %1311 = vmatpush1.msra.mxu0 0.0
    %1312 = vmatprep.subr.mxu0 0.0
    %1313 = vmatpush1.msra.mxu0 0.0
    %1314 = vmatprep.subr.mxu0 0.0
    %1315 = vmatpush1.msra.mxu0 0.0
    %1316 = vmatprep.subr.mxu0 0.0
    %1317 = vmatpush1.msra.mxu0 0.0
    %1318 = vmatprep.subr.mxu0 0.0
    %1319 = vmatpush1.msra.mxu0 0.0
    %1320 = vmatprep.subr.mxu0 0.0
    %1321 = vmatpush1.msra.mxu0 0.0
    %1322 = vmatprep.subr.mxu0 0.0
    %1323 = vmatpush1.msra.mxu0 0.0
    %1324 = vmatprep.subr.mxu0 0.0
    %1325 = vmatpush1.msra.mxu0 0.0
    %1326 = vmatprep.subr.mxu0 0.0
    %1327 = vmatpush1.msra.mxu0 0.0
    %1328 = vmatprep.subr.mxu0 0.0
    %1329 = vmatpush1.msra.mxu0 0.0
    %1330 = vmatprep.subr.mxu0 0.0
    %1331 = vmatpush1.msra.mxu0 0.0
    %1332 = vmatprep.mubr.f32.mxu0 0.0
    %1333 = vmatmul.mubr.f32.gmra.mrb[0].mxu0 %v1165
    %v1334 = vpop.f32.mrb[0].mxu0
    %v1335 = vadd.f32 %v168, %v1334
    %v1336 = vpop.f32.mrb[0].mxu0
    %1337 = vdwg.mxu0
    %v1338 = vxor.u32 %v1335, 2147483648
    %v1339 = vmul.f32 %v1338, 1.442695
    %v1340 = vpow.pop %v1339
    %v1341 = vadd.f32 %v1340, 1.0
    %v1342 = vrcp.pop %v1341
    %v1343 = vmul.f32 1.0, %v1342
    %v1344 = vtanh.pop %v1335
    %v1345 = vmul.f32 %v1343, %v1083
    %1347 = vrot.lane.b32.xlu0 %v1344, 32
    %v1348 = vpop.permute.xlu0 %1347
    %v1350 = vmul.f32 %v1343, %v1348
    %1352 = vrot.lane.b32.xlu0 %v1350, 32
    %v1353 = vpop.permute.xlu0 %1352
    %v1355 = vadd.f32 %v1345, %v1353
    %v1356 = vtanh.pop %v1355
    %1358 = vrot.lane.b32.xlu0 %v1356, 32
    %v1359 = vpop.permute.xlu0 %1358
    %v1361 = vmul.f32 %v1343, %v1359
    %v1362 = vsel %vm178, %v1264, 0
    %1364 = vmatprep.subr.mxu0 0.0
    %1365 = vmatpush1.msra.mxu0 %v155
    %1366 = vmatprep.subr.mxu0 0.0
    %1367 = vmatpush1.msra.mxu0 %v156
    %1368 = vmatprep.subr.mxu0 0.0
    %1369 = vmatpush1.msra.mxu0 %v157
    %1370 = vmatprep.subr.mxu0 0.0
    %1371 = vmatpush1.msra.mxu0 %v158
    %1372 = vmatprep.subr.mxu0 0.0
    %1373 = vmatpush1.msra.mxu0 0.0
    %1374 = vmatprep.subr.mxu0 0.0
    %1375 = vmatpush1.msra.mxu0 0.0
    %1376 = vmatprep.subr.mxu0 0.0
    %1377 = vmatpush1.msra.mxu0 0.0
    %1378 = vmatprep.subr.mxu0 0.0
    %1379 = vmatpush1.msra.mxu0 0.0
    %1380 = vmatprep.subr.mxu0 0.0
    %1381 = vmatpush1.msra.mxu0 0.0
    %1382 = vmatprep.subr.mxu0 0.0
    %1383 = vmatpush1.msra.mxu0 0.0
    %1384 = vmatprep.subr.mxu0 0.0
    %1385 = vmatpush1.msra.mxu0 0.0
    %1386 = vmatprep.subr.mxu0 0.0
    %1387 = vmatpush1.msra.mxu0 0.0
    %1388 = vmatprep.subr.mxu0 0.0
    %1389 = vmatpush1.msra.mxu0 0.0
    %1390 = vmatprep.subr.mxu0 0.0
    %1391 = vmatpush1.msra.mxu0 0.0
    %1392 = vmatprep.subr.mxu0 0.0
    %1393 = vmatpush1.msra.mxu0 0.0
    %1394 = vmatprep.subr.mxu0 0.0
    %1395 = vmatpush1.msra.mxu0 0.0
    %1396 = vmatprep.subr.mxu0 0.0
    %1397 = vmatpush1.msra.mxu0 0.0
    %1398 = vmatprep.subr.mxu0 0.0
    %1399 = vmatpush1.msra.mxu0 0.0
    %1400 = vmatprep.subr.mxu0 0.0
    %1401 = vmatpush1.msra.mxu0 0.0
    %1402 = vmatprep.subr.mxu0 0.0
    %1403 = vmatpush1.msra.mxu0 0.0
    %1404 = vmatprep.subr.mxu0 0.0
    %1405 = vmatpush1.msra.mxu0 0.0
    %1406 = vmatprep.subr.mxu0 0.0
    %1407 = vmatpush1.msra.mxu0 0.0
    %1408 = vmatprep.subr.mxu0 0.0
    %1409 = vmatpush1.msra.mxu0 0.0
    %1410 = vmatprep.subr.mxu0 0.0
    %1411 = vmatpush1.msra.mxu0 0.0
    %1412 = vmatprep.subr.mxu0 0.0
    %1413 = vmatpush1.msra.mxu0 0.0
    %1414 = vmatprep.subr.mxu0 0.0
    %1415 = vmatpush1.msra.mxu0 0.0
    %1416 = vmatprep.subr.mxu0 0.0
    %1417 = vmatpush1.msra.mxu0 0.0
    %1418 = vmatprep.subr.mxu0 0.0
    %1419 = vmatpush1.msra.mxu0 0.0
    %1420 = vmatprep.subr.mxu0 0.0
    %1421 = vmatpush1.msra.mxu0 0.0
    %1422 = vmatprep.subr.mxu0 0.0
    %1423 = vmatpush1.msra.mxu0 0.0
    %1424 = vmatprep.subr.mxu0 0.0
    %1425 = vmatpush1.msra.mxu0 0.0
    %1426 = vmatprep.subr.mxu0 0.0
    %1427 = vmatpush1.msra.mxu0 0.0
    %1428 = vmatprep.mubr.f32.mxu0 0.0
    %1429 = vmatmul.mubr.f32.gmra.mrb[0].mxu0 %v1362
    %v1430 = vpop.f32.mrb[0].mxu0
    %v1431 = vadd.f32 %v176, %v1430
    %v1432 = vpop.f32.mrb[0].mxu0
    %1433 = vdwg.mxu0
    %1435 = vrot.lane.b32.xlu0 %v1361, 64
    %v1436 = vpop.permute.xlu0 %1435
    %v1437 = vsel %vm178, %v1436, 0
    %1439 = vmatprep.subr.mxu0 0.0
    %1440 = vmatpush1.msra.mxu0 %v159
    %1441 = vmatprep.subr.mxu0 0.0
    %1442 = vmatpush1.msra.mxu0 %v160
    %1443 = vmatprep.subr.mxu0 0.0
    %1444 = vmatpush1.msra.mxu0 %v161
    %1445 = vmatprep.subr.mxu0 0.0
    %1446 = vmatpush1.msra.mxu0 %v162
    %1447 = vmatprep.subr.mxu0 0.0
    %1448 = vmatpush1.msra.mxu0 0.0
    %1449 = vmatprep.subr.mxu0 0.0
    %1450 = vmatpush1.msra.mxu0 0.0
    %1451 = vmatprep.subr.mxu0 0.0
    %1452 = vmatpush1.msra.mxu0 0.0
    %1453 = vmatprep.subr.mxu0 0.0
    %1454 = vmatpush1.msra.mxu0 0.0
    %1455 = vmatprep.subr.mxu0 0.0
    %1456 = vmatpush1.msra.mxu0 0.0
    %1457 = vmatprep.subr.mxu0 0.0
    %1458 = vmatpush1.msra.mxu0 0.0
    %1459 = vmatprep.subr.mxu0 0.0
    %1460 = vmatpush1.msra.mxu0 0.0
    %1461 = vmatprep.subr.mxu0 0.0
    %1462 = vmatpush1.msra.mxu0 0.0
    %1463 = vmatprep.subr.mxu0 0.0
    %1464 = vmatpush1.msra.mxu0 0.0
    %1465 = vmatprep.subr.mxu0 0.0
    %1466 = vmatpush1.msra.mxu0 0.0
    %1467 = vmatprep.subr.mxu0 0.0
    %1468 = vmatpush1.msra.mxu0 0.0
    %1469 = vmatprep.subr.mxu0 0.0
    %1470 = vmatpush1.msra.mxu0 0.0
    %1471 = vmatprep.subr.mxu0 0.0
    %1472 = vmatpush1.msra.mxu0 0.0
    %1473 = vmatprep.subr.mxu0 0.0
    %1474 = vmatpush1.msra.mxu0 0.0
    %1475 = vmatprep.subr.mxu0 0.0
    %1476 = vmatpush1.msra.mxu0 0.0
    %1477 = vmatprep.subr.mxu0 0.0
    %1478 = vmatpush1.msra.mxu0 0.0
    %1479 = vmatprep.subr.mxu0 0.0
    %1480 = vmatpush1.msra.mxu0 0.0
    %1481 = vmatprep.subr.mxu0 0.0
    %1482 = vmatpush1.msra.mxu0 0.0
    %1483 = vmatprep.subr.mxu0 0.0
    %1484 = vmatpush1.msra.mxu0 0.0
    %1485 = vmatprep.subr.mxu0 0.0
    %1486 = vmatpush1.msra.mxu0 0.0
    %1487 = vmatprep.subr.mxu0 0.0
    %1488 = vmatpush1.msra.mxu0 0.0
    %1489 = vmatprep.subr.mxu0 0.0
    %1490 = vmatpush1.msra.mxu0 0.0
    %1491 = vmatprep.subr.mxu0 0.0
    %1492 = vmatpush1.msra.mxu0 0.0
    %1493 = vmatprep.subr.mxu0 0.0
    %1494 = vmatpush1.msra.mxu0 0.0
    %1495 = vmatprep.subr.mxu0 0.0
    %1496 = vmatpush1.msra.mxu0 0.0
    %1497 = vmatprep.subr.mxu0 0.0
    %1498 = vmatpush1.msra.mxu0 0.0
    %1499 = vmatprep.subr.mxu0 0.0
    %1500 = vmatpush1.msra.mxu0 0.0
    %1501 = vmatprep.subr.mxu0 0.0
    %1502 = vmatpush1.msra.mxu0 0.0
    %1503 = vmatprep.mubr.f32.mxu0 0.0
    %1504 = vmatmul.mubr.f32.gmra.mrb[0].mxu0 %v1437
    %v1505 = vpop.f32.mrb[0].mxu0
    %v1506 = vadd.f32 0.0, %v1505
    %v1507 = vpop.f32.mrb[0].mxu0
    %1508 = vdwg.mxu0
    %v1509 = vadd.f32 %v1431, %v1506
    %v1510 = vxor.u32 %v1509, 2147483648
    %v1511 = vmul.f32 %v1510, 1.442695
    %v1512 = vpow.pop %v1511
    %v1513 = vadd.f32 %v1512, 1.0
    %v1514 = vrcp.pop %v1513
    %v1515 = vmul.f32 1.0, %v1514
    %v1516 = vtanh.pop %v1509
    %v1517 = vmul.f32 %v1515, %v1255
    %1519 = vrot.lane.b32.xlu0 %v1516, 32
    %v1520 = vpop.permute.xlu0 %1519
    %v1522 = vmul.f32 %v1515, %v1520
    %1524 = vrot.lane.b32.xlu0 %v1522, 32
    %v1525 = vpop.permute.xlu0 %1524
    %v1527 = vadd.f32 %v1517, %v1525
    %v1528 = vtanh.pop %v1527
    %1530 = vrot.lane.b32.xlu0 %v1528, 32
    %v1531 = vpop.permute.xlu0 %1530
    %v1533 = vmul.f32 %v1515, %v1531
    %1535 = vrot.lane.b32.xlu0 %v1533, 64
    %v1536 = vpop.permute.xlu0 %1535
    %s1538 = scalar_lea.vmem [#allocation2], 8
    %1539 = vst.msk [vmem:[%s1538] sm:$0x3] %vm450, %v1536
    %1540 = vmatprep.subr.mxu0 0.0
    %1541 = vmatpush1.msra.mxu0 %v150
    %1542 = vmatprep.subr.mxu0 0.0
    %1543 = vmatpush1.msra.mxu0 %v151
    %1544 = vmatprep.subr.mxu0 0.0
    %1545 = vmatpush1.msra.mxu0 %v152
    %1546 = vmatprep.subr.mxu0 0.0
    %1547 = vmatpush1.msra.mxu0 %v153
    %1548 = vmatprep.subr.mxu0 0.0
    %1549 = vmatpush1.msra.mxu0 0.0
    %1550 = vmatprep.subr.mxu0 0.0
    %1551 = vmatpush1.msra.mxu0 0.0
    %1552 = vmatprep.subr.mxu0 0.0
    %1553 = vmatpush1.msra.mxu0 0.0
    %1554 = vmatprep.subr.mxu0 0.0
    %1555 = vmatpush1.msra.mxu0 0.0
    %1556 = vmatprep.subr.mxu0 0.0
    %1557 = vmatpush1.msra.mxu0 0.0
    %1558 = vmatprep.subr.mxu0 0.0
    %1559 = vmatpush1.msra.mxu0 0.0
    %1560 = vmatprep.subr.mxu0 0.0
    %1561 = vmatpush1.msra.mxu0 0.0
    %1562 = vmatprep.subr.mxu0 0.0
    %1563 = vmatpush1.msra.mxu0 0.0
    %1564 = vmatprep.subr.mxu0 0.0
    %1565 = vmatpush1.msra.mxu0 0.0
    %1566 = vmatprep.subr.mxu0 0.0
    %1567 = vmatpush1.msra.mxu0 0.0
    %1568 = vmatprep.subr.mxu0 0.0
    %1569 = vmatpush1.msra.mxu0 0.0
    %1570 = vmatprep.subr.mxu0 0.0
    %1571 = vmatpush1.msra.mxu0 0.0
    %1572 = vmatprep.subr.mxu0 0.0
    %1573 = vmatpush1.msra.mxu0 0.0
    %1574 = vmatprep.subr.mxu0 0.0
    %1575 = vmatpush1.msra.mxu0 0.0
    %1576 = vmatprep.subr.mxu0 0.0
    %1577 = vmatpush1.msra.mxu0 0.0
    %1578 = vmatprep.subr.mxu0 0.0
    %1579 = vmatpush1.msra.mxu0 0.0
    %1580 = vmatprep.subr.mxu0 0.0
    %1581 = vmatpush1.msra.mxu0 0.0
    %1582 = vmatprep.subr.mxu0 0.0
    %1583 = vmatpush1.msra.mxu0 0.0
    %1584 = vmatprep.subr.mxu0 0.0
    %1585 = vmatpush1.msra.mxu0 0.0
    %1586 = vmatprep.subr.mxu0 0.0
    %1587 = vmatpush1.msra.mxu0 0.0
    %1588 = vmatprep.subr.mxu0 0.0
    %1589 = vmatpush1.msra.mxu0 0.0
    %1590 = vmatprep.subr.mxu0 0.0
    %1591 = vmatpush1.msra.mxu0 0.0
    %1592 = vmatprep.subr.mxu0 0.0
    %1593 = vmatpush1.msra.mxu0 0.0
    %1594 = vmatprep.subr.mxu0 0.0
    %1595 = vmatpush1.msra.mxu0 0.0
    %1596 = vmatprep.subr.mxu0 0.0
    %1597 = vmatpush1.msra.mxu0 0.0
    %1598 = vmatprep.subr.mxu0 0.0
    %1599 = vmatpush1.msra.mxu0 0.0
    %1600 = vmatprep.subr.mxu0 0.0
    %1601 = vmatpush1.msra.mxu0 0.0
    %1602 = vmatprep.subr.mxu0 0.0
    %1603 = vmatpush1.msra.mxu0 0.0
    %1604 = vmatprep.mubr.f32.mxu0 0.0
    %1605 = vmatmul.mubr.f32.gmra.mrb[0].mxu0 %v1437
    %v1606 = vpop.f32.mrb[0].mxu0
    %v1607 = vadd.f32 %v168, %v1606
    %v1608 = vpop.f32.mrb[0].mxu0
    %1609 = vdwg.mxu0
    %v1610 = vxor.u32 %v1607, 2147483648
    %v1611 = vmul.f32 %v1610, 1.442695
    %v1612 = vpow.pop %v1611
    %v1613 = vadd.f32 %v1612, 1.0
    %v1614 = vrcp.pop %v1613
    %v1615 = vmul.f32 1.0, %v1614
    %v1616 = vtanh.pop %v1607
    %v1617 = vmul.f32 %v1615, %v1355
    %1619 = vrot.lane.b32.xlu0 %v1616, 32
    %v1620 = vpop.permute.xlu0 %1619
    %v1622 = vmul.f32 %v1615, %v1620
    %1624 = vrot.lane.b32.xlu0 %v1622, 32
    %v1625 = vpop.permute.xlu0 %1624
    %v1627 = vadd.f32 %v1617, %v1625
    %v1628 = vtanh.pop %v1627
    %1630 = vrot.lane.b32.xlu0 %v1628, 32
    %v1631 = vpop.permute.xlu0 %1630
    %v1633 = vmul.f32 %v1615, %v1631
    %v1634 = vsel %vm178, %v1536, 0
    %1636 = vmatprep.subr.mxu0 0.0
    %1637 = vmatpush1.msra.mxu0 %v155
    %1638 = vmatprep.subr.mxu0 0.0
    %1639 = vmatpush1.msra.mxu0 %v156
    %1640 = vmatprep.subr.mxu0 0.0
    %1641 = vmatpush1.msra.mxu0 %v157
    %1642 = vmatprep.subr.mxu0 0.0
    %1643 = vmatpush1.msra.mxu0 %v158
    %1644 = vmatprep.subr.mxu0 0.0
    %1645 = vmatpush1.msra.mxu0 0.0
    %1646 = vmatprep.subr.mxu0 0.0
    %1647 = vmatpush1.msra.mxu0 0.0
    %1648 = vmatprep.subr.mxu0 0.0
    %1649 = vmatpush1.msra.mxu0 0.0
    %1650 = vmatprep.subr.mxu0 0.0
    %1651 = vmatpush1.msra.mxu0 0.0
    %1652 = vmatprep.subr.mxu0 0.0
    %1653 = vmatpush1.msra.mxu0 0.0
    %1654 = vmatprep.subr.mxu0 0.0
    %1655 = vmatpush1.msra.mxu0 0.0
    %1656 = vmatprep.subr.mxu0 0.0
    %1657 = vmatpush1.msra.mxu0 0.0
    %1658 = vmatprep.subr.mxu0 0.0
    %1659 = vmatpush1.msra.mxu0 0.0
    %1660 = vmatprep.subr.mxu0 0.0
    %1661 = vmatpush1.msra.mxu0 0.0
    %1662 = vmatprep.subr.mxu0 0.0
    %1663 = vmatpush1.msra.mxu0 0.0
    %1664 = vmatprep.subr.mxu0 0.0
    %1665 = vmatpush1.msra.mxu0 0.0
    %1666 = vmatprep.subr.mxu0 0.0
    %1667 = vmatpush1.msra.mxu0 0.0
    %1668 = vmatprep.subr.mxu0 0.0
    %1669 = vmatpush1.msra.mxu0 0.0
    %1670 = vmatprep.subr.mxu0 0.0
    %1671 = vmatpush1.msra.mxu0 0.0
    %1672 = vmatprep.subr.mxu0 0.0
    %1673 = vmatpush1.msra.mxu0 0.0
    %1674 = vmatprep.subr.mxu0 0.0
    %1675 = vmatpush1.msra.mxu0 0.0
    %1676 = vmatprep.subr.mxu0 0.0
    %1677 = vmatpush1.msra.mxu0 0.0
    %1678 = vmatprep.subr.mxu0 0.0
    %1679 = vmatpush1.msra.mxu0 0.0
    %1680 = vmatprep.subr.mxu0 0.0
    %1681 = vmatpush1.msra.mxu0 0.0
    %1682 = vmatprep.subr.mxu0 0.0
    %1683 = vmatpush1.msra.mxu0 0.0
    %1684 = vmatprep.subr.mxu0 0.0
    %1685 = vmatpush1.msra.mxu0 0.0
    %1686 = vmatprep.subr.mxu0 0.0
    %1687 = vmatpush1.msra.mxu0 0.0
    %1688 = vmatprep.subr.mxu0 0.0
    %1689 = vmatpush1.msra.mxu0 0.0
    %1690 = vmatprep.subr.mxu0 0.0
    %1691 = vmatpush1.msra.mxu0 0.0
    %1692 = vmatprep.subr.mxu0 0.0
    %1693 = vmatpush1.msra.mxu0 0.0
    %1694 = vmatprep.subr.mxu0 0.0
    %1695 = vmatpush1.msra.mxu0 0.0
    %1696 = vmatprep.subr.mxu0 0.0
    %1697 = vmatpush1.msra.mxu0 0.0
    %1698 = vmatprep.subr.mxu0 0.0
    %1699 = vmatpush1.msra.mxu0 0.0
    %1700 = vmatprep.mubr.f32.mxu0 0.0
    %1701 = vmatmul.mubr.f32.gmra.mrb[0].mxu0 %v1634
    %v1702 = vpop.f32.mrb[0].mxu0
    %v1703 = vadd.f32 %v176, %v1702
    %v1704 = vpop.f32.mrb[0].mxu0
    %1705 = vdwg.mxu0
    %1707 = vrot.lane.b32.xlu0 %v1633, 64
    %v1708 = vpop.permute.xlu0 %1707
    %v1709 = vsel %vm178, %v1708, 0
    %1711 = vmatprep.subr.mxu0 0.0
    %1712 = vmatpush1.msra.mxu0 %v159
    %1713 = vmatprep.subr.mxu0 0.0
    %1714 = vmatpush1.msra.mxu0 %v160
    %1715 = vmatprep.subr.mxu0 0.0
    %1716 = vmatpush1.msra.mxu0 %v161
    %1717 = vmatprep.subr.mxu0 0.0
    %1718 = vmatpush1.msra.mxu0 %v162
    %1719 = vmatprep.subr.mxu0 0.0
    %1720 = vmatpush1.msra.mxu0 0.0
    %1721 = vmatprep.subr.mxu0 0.0
    %1722 = vmatpush1.msra.mxu0 0.0
    %1723 = vmatprep.subr.mxu0 0.0
    %1724 = vmatpush1.msra.mxu0 0.0
    %1725 = vmatprep.subr.mxu0 0.0
    %1726 = vmatpush1.msra.mxu0 0.0
    %1727 = vmatprep.subr.mxu0 0.0
    %1728 = vmatpush1.msra.mxu0 0.0
    %1729 = vmatprep.subr.mxu0 0.0
    %1730 = vmatpush1.msra.mxu0 0.0
    %1731 = vmatprep.subr.mxu0 0.0
    %1732 = vmatpush1.msra.mxu0 0.0
    %1733 = vmatprep.subr.mxu0 0.0
    %1734 = vmatpush1.msra.mxu0 0.0
    %1735 = vmatprep.subr.mxu0 0.0
    %1736 = vmatpush1.msra.mxu0 0.0
    %1737 = vmatprep.subr.mxu0 0.0
    %1738 = vmatpush1.msra.mxu0 0.0
    %1739 = vmatprep.subr.mxu0 0.0
    %1740 = vmatpush1.msra.mxu0 0.0
    %1741 = vmatprep.subr.mxu0 0.0
    %1742 = vmatpush1.msra.mxu0 0.0
    %1743 = vmatprep.subr.mxu0 0.0
    %1744 = vmatpush1.msra.mxu0 0.0
    %1745 = vmatprep.subr.mxu0 0.0
    %1746 = vmatpush1.msra.mxu0 0.0
    %1747 = vmatprep.subr.mxu0 0.0
    %1748 = vmatpush1.msra.mxu0 0.0
    %1749 = vmatprep.subr.mxu0 0.0
    %1750 = vmatpush1.msra.mxu0 0.0
    %1751 = vmatprep.subr.mxu0 0.0
    %1752 = vmatpush1.msra.mxu0 0.0
    %1753 = vmatprep.subr.mxu0 0.0
    %1754 = vmatpush1.msra.mxu0 0.0
    %1755 = vmatprep.subr.mxu0 0.0
    %1756 = vmatpush1.msra.mxu0 0.0
    %1757 = vmatprep.subr.mxu0 0.0
    %1758 = vmatpush1.msra.mxu0 0.0
    %1759 = vmatprep.subr.mxu0 0.0
    %1760 = vmatpush1.msra.mxu0 0.0
    %1761 = vmatprep.subr.mxu0 0.0
    %1762 = vmatpush1.msra.mxu0 0.0
    %1763 = vmatprep.subr.mxu0 0.0
    %1764 = vmatpush1.msra.mxu0 0.0
    %1765 = vmatprep.subr.mxu0 0.0
    %1766 = vmatpush1.msra.mxu0 0.0
    %1767 = vmatprep.subr.mxu0 0.0
    %1768 = vmatpush1.msra.mxu0 0.0
    %1769 = vmatprep.subr.mxu0 0.0
    %1770 = vmatpush1.msra.mxu0 0.0
    %1771 = vmatprep.subr.mxu0 0.0
    %1772 = vmatpush1.msra.mxu0 0.0
    %1773 = vmatprep.subr.mxu0 0.0
    %1774 = vmatpush1.msra.mxu0 0.0
    %1775 = vmatprep.mubr.f32.mxu0 0.0
    %1776 = vmatmul.mubr.f32.gmra.mrb[0].mxu0 %v1709
    %v1777 = vpop.f32.mrb[0].mxu0
    %v1778 = vadd.f32 0.0, %v1777
    %v1779 = vpop.f32.mrb[0].mxu0
    %1780 = vdwg.mxu0
    %v1781 = vadd.f32 %v1703, %v1778
    %v1782 = vxor.u32 %v1781, 2147483648
    %v1783 = vmul.f32 %v1782, 1.442695
    %v1784 = vpow.pop %v1783
    %v1785 = vadd.f32 %v1784, 1.0
    %v1786 = vrcp.pop %v1785
    %v1787 = vmul.f32 1.0, %v1786
    %v1788 = vtanh.pop %v1781
    %v1789 = vmul.f32 %v1787, %v1527
    %1791 = vrot.lane.b32.xlu0 %v1788, 32
    %v1792 = vpop.permute.xlu0 %1791
    %v1794 = vmul.f32 %v1787, %v1792
    %1796 = vrot.lane.b32.xlu0 %v1794, 32
    %v1797 = vpop.permute.xlu0 %1796
    %v1799 = vadd.f32 %v1789, %v1797
    %v1800 = vtanh.pop %v1799
    %1802 = vrot.lane.b32.xlu0 %v1800, 32
    %v1803 = vpop.permute.xlu0 %1802
    %v1805 = vmul.f32 %v1787, %v1803
    %1807 = vrot.lane.b32.xlu0 %v1805, 64
    %v1808 = vpop.permute.xlu0 %1807
    %s1810 = scalar_lea.vmem [#allocation2], 10
    %1811 = vst.msk [vmem:[%s1810] sm:$0x3] %vm450, %v1808
    %1812 = vmatprep.subr.mxu0 0.0
    %1813 = vmatpush1.msra.mxu0 %v150
    %1814 = vmatprep.subr.mxu0 0.0
    %1815 = vmatpush1.msra.mxu0 %v151
    %1816 = vmatprep.subr.mxu0 0.0
    %1817 = vmatpush1.msra.mxu0 %v152
    %1818 = vmatprep.subr.mxu0 0.0
    %1819 = vmatpush1.msra.mxu0 %v153
    %1820 = vmatprep.subr.mxu0 0.0
    %1821 = vmatpush1.msra.mxu0 0.0
    %1822 = vmatprep.subr.mxu0 0.0
    %1823 = vmatpush1.msra.mxu0 0.0
    %1824 = vmatprep.subr.mxu0 0.0
    %1825 = vmatpush1.msra.mxu0 0.0
    %1826 = vmatprep.subr.mxu0 0.0
    %1827 = vmatpush1.msra.mxu0 0.0
    %1828 = vmatprep.subr.mxu0 0.0
    %1829 = vmatpush1.msra.mxu0 0.0
    %1830 = vmatprep.subr.mxu0 0.0
    %1831 = vmatpush1.msra.mxu0 0.0
    %1832 = vmatprep.subr.mxu0 0.0
    %1833 = vmatpush1.msra.mxu0 0.0
    %1834 = vmatprep.subr.mxu0 0.0
    %1835 = vmatpush1.msra.mxu0 0.0
    %1836 = vmatprep.subr.mxu0 0.0
    %1837 = vmatpush1.msra.mxu0 0.0
    %1838 = vmatprep.subr.mxu0 0.0
    %1839 = vmatpush1.msra.mxu0 0.0
    %1840 = vmatprep.subr.mxu0 0.0
    %1841 = vmatpush1.msra.mxu0 0.0
    %1842 = vmatprep.subr.mxu0 0.0
    %1843 = vmatpush1.msra.mxu0 0.0
    %1844 = vmatprep.subr.mxu0 0.0
    %1845 = vmatpush1.msra.mxu0 0.0
    %1846 = vmatprep.subr.mxu0 0.0
    %1847 = vmatpush1.msra.mxu0 0.0
    %1848 = vmatprep.subr.mxu0 0.0
    %1849 = vmatpush1.msra.mxu0 0.0
    %1850 = vmatprep.subr.mxu0 0.0
    %1851 = vmatpush1.msra.mxu0 0.0
    %1852 = vmatprep.subr.mxu0 0.0
    %1853 = vmatpush1.msra.mxu0 0.0
    %1854 = vmatprep.subr.mxu0 0.0
    %1855 = vmatpush1.msra.mxu0 0.0
    %1856 = vmatprep.subr.mxu0 0.0
    %1857 = vmatpush1.msra.mxu0 0.0
    %1858 = vmatprep.subr.mxu0 0.0
    %1859 = vmatpush1.msra.mxu0 0.0
    %1860 = vmatprep.subr.mxu0 0.0
    %1861 = vmatpush1.msra.mxu0 0.0
    %1862 = vmatprep.subr.mxu0 0.0
    %1863 = vmatpush1.msra.mxu0 0.0
    %1864 = vmatprep.subr.mxu0 0.0
    %1865 = vmatpush1.msra.mxu0 0.0
    %1866 = vmatprep.subr.mxu0 0.0
    %1867 = vmatpush1.msra.mxu0 0.0
    %1868 = vmatprep.subr.mxu0 0.0
    %1869 = vmatpush1.msra.mxu0 0.0
    %1870 = vmatprep.subr.mxu0 0.0
    %1871 = vmatpush1.msra.mxu0 0.0
    %1872 = vmatprep.subr.mxu0 0.0
    %1873 = vmatpush1.msra.mxu0 0.0
    %1874 = vmatprep.subr.mxu0 0.0
    %1875 = vmatpush1.msra.mxu0 0.0
    %1876 = vmatprep.mubr.f32.mxu0 0.0
    %1877 = vmatmul.mubr.f32.gmra.mrb[0].mxu0 %v1709
    %v1878 = vpop.f32.mrb[0].mxu0
    %v1879 = vadd.f32 %v168, %v1878
    %v1880 = vpop.f32.mrb[0].mxu0
    %1881 = vdwg.mxu0
    %v1882 = vxor.u32 %v1879, 2147483648
    %v1883 = vmul.f32 %v1882, 1.442695
    %v1884 = vpow.pop %v1883
    %v1885 = vadd.f32 %v1884, 1.0
    %v1886 = vrcp.pop %v1885
    %v1887 = vmul.f32 1.0, %v1886
    %v1888 = vtanh.pop %v1879
    %v1889 = vmul.f32 %v1887, %v1627
    %1891 = vrot.lane.b32.xlu0 %v1888, 32
    %v1892 = vpop.permute.xlu0 %1891
    %v1894 = vmul.f32 %v1887, %v1892
    %1896 = vrot.lane.b32.xlu0 %v1894, 32
    %v1897 = vpop.permute.xlu0 %1896
    %v1899 = vadd.f32 %v1889, %v1897
    %v1900 = vtanh.pop %v1899
    %1902 = vrot.lane.b32.xlu0 %v1900, 32
    %v1903 = vpop.permute.xlu0 %1902
    %v1905 = vmul.f32 %v1887, %v1903
    %v1906 = vsel %vm178, %v1808, 0
    %1908 = vmatprep.subr.mxu0 0.0
    %1909 = vmatpush1.msra.mxu0 %v155
    %1910 = vmatprep.subr.mxu0 0.0
    %1911 = vmatpush1.msra.mxu0 %v156
    %1912 = vmatprep.subr.mxu0 0.0
    %1913 = vmatpush1.msra.mxu0 %v157
    %1914 = vmatprep.subr.mxu0 0.0
    %1915 = vmatpush1.msra.mxu0 %v158
    %1916 = vmatprep.subr.mxu0 0.0
    %1917 = vmatpush1.msra.mxu0 0.0
    %1918 = vmatprep.subr.mxu0 0.0
    %1919 = vmatpush1.msra.mxu0 0.0
    %1920 = vmatprep.subr.mxu0 0.0
    %1921 = vmatpush1.msra.mxu0 0.0
    %1922 = vmatprep.subr.mxu0 0.0
    %1923 = vmatpush1.msra.mxu0 0.0
    %1924 = vmatprep.subr.mxu0 0.0
    %1925 = vmatpush1.msra.mxu0 0.0
    %1926 = vmatprep.subr.mxu0 0.0
    %1927 = vmatpush1.msra.mxu0 0.0
    %1928 = vmatprep.subr.mxu0 0.0
    %1929 = vmatpush1.msra.mxu0 0.0
    %1930 = vmatprep.subr.mxu0 0.0
    %1931 = vmatpush1.msra.mxu0 0.0
    %1932 = vmatprep.subr.mxu0 0.0
    %1933 = vmatpush1.msra.mxu0 0.0
    %1934 = vmatprep.subr.mxu0 0.0
    %1935 = vmatpush1.msra.mxu0 0.0
    %1936 = vmatprep.subr.mxu0 0.0
    %1937 = vmatpush1.msra.mxu0 0.0
    %1938 = vmatprep.subr.mxu0 0.0
    %1939 = vmatpush1.msra.mxu0 0.0
    %1940 = vmatprep.subr.mxu0 0.0
    %1941 = vmatpush1.msra.mxu0 0.0
    %1942 = vmatprep.subr.mxu0 0.0
    %1943 = vmatpush1.msra.mxu0 0.0
    %1944 = vmatprep.subr.mxu0 0.0
    %1945 = vmatpush1.msra.mxu0 0.0
    %1946 = vmatprep.subr.mxu0 0.0
    %1947 = vmatpush1.msra.mxu0 0.0
    %1948 = vmatprep.subr.mxu0 0.0
    %1949 = vmatpush1.msra.mxu0 0.0
    %1950 = vmatprep.subr.mxu0 0.0
    %1951 = vmatpush1.msra.mxu0 0.0
    %1952 = vmatprep.subr.mxu0 0.0
    %1953 = vmatpush1.msra.mxu0 0.0
    %1954 = vmatprep.subr.mxu0 0.0
    %1955 = vmatpush1.msra.mxu0 0.0
    %1956 = vmatprep.subr.mxu0 0.0
    %1957 = vmatpush1.msra.mxu0 0.0
    %1958 = vmatprep.subr.mxu0 0.0
    %1959 = vmatpush1.msra.mxu0 0.0
    %1960 = vmatprep.subr.mxu0 0.0
    %1961 = vmatpush1.msra.mxu0 0.0
    %1962 = vmatprep.subr.mxu0 0.0
    %1963 = vmatpush1.msra.mxu0 0.0
    %1964 = vmatprep.subr.mxu0 0.0
    %1965 = vmatpush1.msra.mxu0 0.0
    %1966 = vmatprep.subr.mxu0 0.0
    %1967 = vmatpush1.msra.mxu0 0.0
    %1968 = vmatprep.subr.mxu0 0.0
    %1969 = vmatpush1.msra.mxu0 0.0
    %1970 = vmatprep.subr.mxu0 0.0
    %1971 = vmatpush1.msra.mxu0 0.0
    %1972 = vmatprep.mubr.f32.mxu0 0.0
    %1973 = vmatmul.mubr.f32.gmra.mrb[0].mxu0 %v1906
    %v1974 = vpop.f32.mrb[0].mxu0
    %v1975 = vadd.f32 %v176, %v1974
    %v1976 = vpop.f32.mrb[0].mxu0
    %1977 = vdwg.mxu0
    %1979 = vrot.lane.b32.xlu0 %v1905, 64
    %v1980 = vpop.permute.xlu0 %1979
    %v1981 = vsel %vm178, %v1980, 0
    %1983 = vmatprep.subr.mxu0 0.0
    %1984 = vmatpush1.msra.mxu0 %v159
    %1985 = vmatprep.subr.mxu0 0.0
    %1986 = vmatpush1.msra.mxu0 %v160
    %1987 = vmatprep.subr.mxu0 0.0
    %1988 = vmatpush1.msra.mxu0 %v161
    %1989 = vmatprep.subr.mxu0 0.0
    %1990 = vmatpush1.msra.mxu0 %v162
    %1991 = vmatprep.subr.mxu0 0.0
    %1992 = vmatpush1.msra.mxu0 0.0
    %1993 = vmatprep.subr.mxu0 0.0
    %1994 = vmatpush1.msra.mxu0 0.0
    %1995 = vmatprep.subr.mxu0 0.0
    %1996 = vmatpush1.msra.mxu0 0.0
    %1997 = vmatprep.subr.mxu0 0.0
    %1998 = vmatpush1.msra.mxu0 0.0
    %1999 = vmatprep.subr.mxu0 0.0
    %2000 = vmatpush1.msra.mxu0 0.0
    %2001 = vmatprep.subr.mxu0 0.0
    %2002 = vmatpush1.msra.mxu0 0.0
    %2003 = vmatprep.subr.mxu0 0.0
    %2004 = vmatpush1.msra.mxu0 0.0
    %2005 = vmatprep.subr.mxu0 0.0
    %2006 = vmatpush1.msra.mxu0 0.0
    %2007 = vmatprep.subr.mxu0 0.0
    %2008 = vmatpush1.msra.mxu0 0.0
    %2009 = vmatprep.subr.mxu0 0.0
    %2010 = vmatpush1.msra.mxu0 0.0
    %2011 = vmatprep.subr.mxu0 0.0
    %2012 = vmatpush1.msra.mxu0 0.0
    %2013 = vmatprep.subr.mxu0 0.0
    %2014 = vmatpush1.msra.mxu0 0.0
    %2015 = vmatprep.subr.mxu0 0.0
    %2016 = vmatpush1.msra.mxu0 0.0
    %2017 = vmatprep.subr.mxu0 0.0
    %2018 = vmatpush1.msra.mxu0 0.0
    %2019 = vmatprep.subr.mxu0 0.0
    %2020 = vmatpush1.msra.mxu0 0.0
    %2021 = vmatprep.subr.mxu0 0.0
    %2022 = vmatpush1.msra.mxu0 0.0
    %2023 = vmatprep.subr.mxu0 0.0
    %2024 = vmatpush1.msra.mxu0 0.0
    %2025 = vmatprep.subr.mxu0 0.0
    %2026 = vmatpush1.msra.mxu0 0.0
    %2027 = vmatprep.subr.mxu0 0.0
    %2028 = vmatpush1.msra.mxu0 0.0
    %2029 = vmatprep.subr.mxu0 0.0
    %2030 = vmatpush1.msra.mxu0 0.0
    %2031 = vmatprep.subr.mxu0 0.0
    %2032 = vmatpush1.msra.mxu0 0.0
    %2033 = vmatprep.subr.mxu0 0.0
    %2034 = vmatpush1.msra.mxu0 0.0
    %2035 = vmatprep.subr.mxu0 0.0
    %2036 = vmatpush1.msra.mxu0 0.0
    %2037 = vmatprep.subr.mxu0 0.0
    %2038 = vmatpush1.msra.mxu0 0.0
    %2039 = vmatprep.subr.mxu0 0.0
    %2040 = vmatpush1.msra.mxu0 0.0
    %2041 = vmatprep.subr.mxu0 0.0
    %2042 = vmatpush1.msra.mxu0 0.0
    %2043 = vmatprep.subr.mxu0 0.0
    %2044 = vmatpush1.msra.mxu0 0.0
    %2045 = vmatprep.subr.mxu0 0.0
    %2046 = vmatpush1.msra.mxu0 0.0
    %2047 = vmatprep.mubr.f32.mxu0 0.0
    %2048 = vmatmul.mubr.f32.gmra.mrb[0].mxu0 %v1981
    %v2049 = vpop.f32.mrb[0].mxu0
    %v2050 = vadd.f32 0.0, %v2049
    %v2051 = vpop.f32.mrb[0].mxu0
    %2052 = vdwg.mxu0
    %v2053 = vadd.f32 %v1975, %v2050
    %v2054 = vxor.u32 %v2053, 2147483648
    %v2055 = vmul.f32 %v2054, 1.442695
    %v2056 = vpow.pop %v2055
    %v2057 = vadd.f32 %v2056, 1.0
    %v2058 = vrcp.pop %v2057
    %v2059 = vmul.f32 1.0, %v2058
    %v2060 = vtanh.pop %v2053
    %v2061 = vmul.f32 %v2059, %v1799
    %2063 = vrot.lane.b32.xlu0 %v2060, 32
    %v2064 = vpop.permute.xlu0 %2063
    %v2066 = vmul.f32 %v2059, %v2064
    %2068 = vrot.lane.b32.xlu0 %v2066, 32
    %v2069 = vpop.permute.xlu0 %2068
    %v2071 = vadd.f32 %v2061, %v2069
    %v2072 = vtanh.pop %v2071
    %2074 = vrot.lane.b32.xlu0 %v2072, 32
    %v2075 = vpop.permute.xlu0 %2074
    %v2077 = vmul.f32 %v2059, %v2075
    %2079 = vrot.lane.b32.xlu0 %v2077, 64
    %v2080 = vpop.permute.xlu0 %2079
    %s2082 = scalar_lea.vmem [#allocation2], 12
    %2083 = vst.msk [vmem:[%s2082] sm:$0x3] %vm450, %v2080
    %2084 = vmatprep.subr.mxu0 0.0
    %2085 = vmatpush1.msra.mxu0 %v150
    %2086 = vmatprep.subr.mxu0 0.0
    %2087 = vmatpush1.msra.mxu0 %v151
    %2088 = vmatprep.subr.mxu0 0.0
    %2089 = vmatpush1.msra.mxu0 %v152
    %2090 = vmatprep.subr.mxu0 0.0
    %2091 = vmatpush1.msra.mxu0 %v153
    %2092 = vmatprep.subr.mxu0 0.0
    %2093 = vmatpush1.msra.mxu0 0.0
    %2094 = vmatprep.subr.mxu0 0.0
    %2095 = vmatpush1.msra.mxu0 0.0
    %2096 = vmatprep.subr.mxu0 0.0
    %2097 = vmatpush1.msra.mxu0 0.0
    %2098 = vmatprep.subr.mxu0 0.0
    %2099 = vmatpush1.msra.mxu0 0.0
    %2100 = vmatprep.subr.mxu0 0.0
    %2101 = vmatpush1.msra.mxu0 0.0
    %2102 = vmatprep.subr.mxu0 0.0
    %2103 = vmatpush1.msra.mxu0 0.0
    %2104 = vmatprep.subr.mxu0 0.0
    %2105 = vmatpush1.msra.mxu0 0.0
    %2106 = vmatprep.subr.mxu0 0.0
    %2107 = vmatpush1.msra.mxu0 0.0
    %2108 = vmatprep.subr.mxu0 0.0
    %2109 = vmatpush1.msra.mxu0 0.0
    %2110 = vmatprep.subr.mxu0 0.0
    %2111 = vmatpush1.msra.mxu0 0.0
    %2112 = vmatprep.subr.mxu0 0.0
    %2113 = vmatpush1.msra.mxu0 0.0
    %2114 = vmatprep.subr.mxu0 0.0
    %2115 = vmatpush1.msra.mxu0 0.0
    %2116 = vmatprep.subr.mxu0 0.0
    %2117 = vmatpush1.msra.mxu0 0.0
    %2118 = vmatprep.subr.mxu0 0.0
    %2119 = vmatpush1.msra.mxu0 0.0
    %2120 = vmatprep.subr.mxu0 0.0
    %2121 = vmatpush1.msra.mxu0 0.0
    %2122 = vmatprep.subr.mxu0 0.0
    %2123 = vmatpush1.msra.mxu0 0.0
    %2124 = vmatprep.subr.mxu0 0.0
    %2125 = vmatpush1.msra.mxu0 0.0
    %2126 = vmatprep.subr.mxu0 0.0
    %2127 = vmatpush1.msra.mxu0 0.0
    %2128 = vmatprep.subr.mxu0 0.0
    %2129 = vmatpush1.msra.mxu0 0.0
    %2130 = vmatprep.subr.mxu0 0.0
    %2131 = vmatpush1.msra.mxu0 0.0
    %2132 = vmatprep.subr.mxu0 0.0
    %2133 = vmatpush1.msra.mxu0 0.0
    %2134 = vmatprep.subr.mxu0 0.0
    %2135 = vmatpush1.msra.mxu0 0.0
    %2136 = vmatprep.subr.mxu0 0.0
    %2137 = vmatpush1.msra.mxu0 0.0
    %2138 = vmatprep.subr.mxu0 0.0
    %2139 = vmatpush1.msra.mxu0 0.0
    %2140 = vmatprep.subr.mxu0 0.0
    %2141 = vmatpush1.msra.mxu0 0.0
    %2142 = vmatprep.subr.mxu0 0.0
    %2143 = vmatpush1.msra.mxu0 0.0
    %2144 = vmatprep.subr.mxu0 0.0
    %2145 = vmatpush1.msra.mxu0 0.0
    %2146 = vmatprep.subr.mxu0 0.0
    %2147 = vmatpush1.msra.mxu0 0.0
    %2148 = vmatprep.mubr.f32.mxu0 0.0
    %2149 = vmatmul.mubr.f32.gmra.mrb[0].mxu0 %v1981
    %v2150 = vpop.f32.mrb[0].mxu0
    %v2151 = vadd.f32 %v168, %v2150
    %v2152 = vpop.f32.mrb[0].mxu0
    %2153 = vdwg.mxu0
    %v2154 = vxor.u32 %v2151, 2147483648
    %v2155 = vmul.f32 %v2154, 1.442695
    %v2156 = vpow.pop %v2155
    %v2157 = vadd.f32 %v2156, 1.0
    %v2158 = vrcp.pop %v2157
    %v2159 = vmul.f32 1.0, %v2158
    %v2160 = vtanh.pop %v2151
    %v2161 = vmul.f32 %v2159, %v1899
    %2163 = vrot.lane.b32.xlu0 %v2160, 32
    %v2164 = vpop.permute.xlu0 %2163
    %v2166 = vmul.f32 %v2159, %v2164
    %2168 = vrot.lane.b32.xlu0 %v2166, 32
    %v2169 = vpop.permute.xlu0 %2168
    %v2171 = vadd.f32 %v2161, %v2169
    %v2172 = vtanh.pop %v2171
    %2174 = vrot.lane.b32.xlu0 %v2172, 32
    %v2175 = vpop.permute.xlu0 %2174
    %v2177 = vmul.f32 %v2159, %v2175
    %v2178 = vsel %vm178, %v2080, 0
    %2180 = vmatprep.subr.mxu0 0.0
    %2181 = vmatpush1.msra.mxu0 %v155
    %2182 = vmatprep.subr.mxu0 0.0
    %2183 = vmatpush1.msra.mxu0 %v156
    %2184 = vmatprep.subr.mxu0 0.0
    %2185 = vmatpush1.msra.mxu0 %v157
    %2186 = vmatprep.subr.mxu0 0.0
    %2187 = vmatpush1.msra.mxu0 %v158
    %2188 = vmatprep.subr.mxu0 0.0
    %2189 = vmatpush1.msra.mxu0 0.0
    %2190 = vmatprep.subr.mxu0 0.0
    %2191 = vmatpush1.msra.mxu0 0.0
    %2192 = vmatprep.subr.mxu0 0.0
    %2193 = vmatpush1.msra.mxu0 0.0
    %2194 = vmatprep.subr.mxu0 0.0
    %2195 = vmatpush1.msra.mxu0 0.0
    %2196 = vmatprep.subr.mxu0 0.0
    %2197 = vmatpush1.msra.mxu0 0.0
    %2198 = vmatprep.subr.mxu0 0.0
    %2199 = vmatpush1.msra.mxu0 0.0
    %2200 = vmatprep.subr.mxu0 0.0
    %2201 = vmatpush1.msra.mxu0 0.0
    %2202 = vmatprep.subr.mxu0 0.0
    %2203 = vmatpush1.msra.mxu0 0.0
    %2204 = vmatprep.subr.mxu0 0.0
    %2205 = vmatpush1.msra.mxu0 0.0
    %2206 = vmatprep.subr.mxu0 0.0
    %2207 = vmatpush1.msra.mxu0 0.0
    %2208 = vmatprep.subr.mxu0 0.0
    %2209 = vmatpush1.msra.mxu0 0.0
    %2210 = vmatprep.subr.mxu0 0.0
    %2211 = vmatpush1.msra.mxu0 0.0
    %2212 = vmatprep.subr.mxu0 0.0
    %2213 = vmatpush1.msra.mxu0 0.0
    %2214 = vmatprep.subr.mxu0 0.0
    %2215 = vmatpush1.msra.mxu0 0.0
    %2216 = vmatprep.subr.mxu0 0.0
    %2217 = vmatpush1.msra.mxu0 0.0
    %2218 = vmatprep.subr.mxu0 0.0
    %2219 = vmatpush1.msra.mxu0 0.0
    %2220 = vmatprep.subr.mxu0 0.0
    %2221 = vmatpush1.msra.mxu0 0.0
    %2222 = vmatprep.subr.mxu0 0.0
    %2223 = vmatpush1.msra.mxu0 0.0
    %2224 = vmatprep.subr.mxu0 0.0
    %2225 = vmatpush1.msra.mxu0 0.0
    %2226 = vmatprep.subr.mxu0 0.0
    %2227 = vmatpush1.msra.mxu0 0.0
    %2228 = vmatprep.subr.mxu0 0.0
    %2229 = vmatpush1.msra.mxu0 0.0
    %2230 = vmatprep.subr.mxu0 0.0
    %2231 = vmatpush1.msra.mxu0 0.0
    %2232 = vmatprep.subr.mxu0 0.0
    %2233 = vmatpush1.msra.mxu0 0.0
    %2234 = vmatprep.subr.mxu0 0.0
    %2235 = vmatpush1.msra.mxu0 0.0
    %2236 = vmatprep.subr.mxu0 0.0
    %2237 = vmatpush1.msra.mxu0 0.0
    %2238 = vmatprep.subr.mxu0 0.0
    %2239 = vmatpush1.msra.mxu0 0.0
    %2240 = vmatprep.subr.mxu0 0.0
    %2241 = vmatpush1.msra.mxu0 0.0
    %2242 = vmatprep.subr.mxu0 0.0
    %2243 = vmatpush1.msra.mxu0 0.0
    %2244 = vmatprep.mubr.f32.mxu0 0.0
    %2245 = vmatmul.mubr.f32.gmra.mrb[0].mxu0 %v2178
    %v2246 = vpop.f32.mrb[0].mxu0
    %v2247 = vadd.f32 %v176, %v2246
    %v2248 = vpop.f32.mrb[0].mxu0
    %2249 = vdwg.mxu0
    %2251 = vrot.lane.b32.xlu0 %v2177, 64
    %v2252 = vpop.permute.xlu0 %2251
    %v2253 = vsel %vm178, %v2252, 0
    %2255 = vmatprep.subr.mxu0 0.0
    %2256 = vmatpush1.msra.mxu0 %v159
    %2257 = vmatprep.subr.mxu0 0.0
    %2258 = vmatpush1.msra.mxu0 %v160
    %2259 = vmatprep.subr.mxu0 0.0
    %2260 = vmatpush1.msra.mxu0 %v161
    %2261 = vmatprep.subr.mxu0 0.0
    %2262 = vmatpush1.msra.mxu0 %v162
    %2263 = vmatprep.subr.mxu0 0.0
    %2264 = vmatpush1.msra.mxu0 0.0
    %2265 = vmatprep.subr.mxu0 0.0
    %2266 = vmatpush1.msra.mxu0 0.0
    %2267 = vmatprep.subr.mxu0 0.0
    %2268 = vmatpush1.msra.mxu0 0.0
    %2269 = vmatprep.subr.mxu0 0.0
    %2270 = vmatpush1.msra.mxu0 0.0
    %2271 = vmatprep.subr.mxu0 0.0
    %2272 = vmatpush1.msra.mxu0 0.0
    %2273 = vmatprep.subr.mxu0 0.0
    %2274 = vmatpush1.msra.mxu0 0.0
    %2275 = vmatprep.subr.mxu0 0.0
    %2276 = vmatpush1.msra.mxu0 0.0
    %2277 = vmatprep.subr.mxu0 0.0
    %2278 = vmatpush1.msra.mxu0 0.0
    %2279 = vmatprep.subr.mxu0 0.0
    %2280 = vmatpush1.msra.mxu0 0.0
    %2281 = vmatprep.subr.mxu0 0.0
    %2282 = vmatpush1.msra.mxu0 0.0
    %2283 = vmatprep.subr.mxu0 0.0
    %2284 = vmatpush1.msra.mxu0 0.0
    %2285 = vmatprep.subr.mxu0 0.0
    %2286 = vmatpush1.msra.mxu0 0.0
    %2287 = vmatprep.subr.mxu0 0.0
    %2288 = vmatpush1.msra.mxu0 0.0
    %2289 = vmatprep.subr.mxu0 0.0
    %2290 = vmatpush1.msra.mxu0 0.0
    %2291 = vmatprep.subr.mxu0 0.0
    %2292 = vmatpush1.msra.mxu0 0.0
    %2293 = vmatprep.subr.mxu0 0.0
    %2294 = vmatpush1.msra.mxu0 0.0
    %2295 = vmatprep.subr.mxu0 0.0
    %2296 = vmatpush1.msra.mxu0 0.0
    %2297 = vmatprep.subr.mxu0 0.0
    %2298 = vmatpush1.msra.mxu0 0.0
    %2299 = vmatprep.subr.mxu0 0.0
    %2300 = vmatpush1.msra.mxu0 0.0
    %2301 = vmatprep.subr.mxu0 0.0
    %2302 = vmatpush1.msra.mxu0 0.0
    %2303 = vmatprep.subr.mxu0 0.0
    %2304 = vmatpush1.msra.mxu0 0.0
    %2305 = vmatprep.subr.mxu0 0.0
    %2306 = vmatpush1.msra.mxu0 0.0
    %2307 = vmatprep.subr.mxu0 0.0
    %2308 = vmatpush1.msra.mxu0 0.0
    %2309 = vmatprep.subr.mxu0 0.0
    %2310 = vmatpush1.msra.mxu0 0.0
    %2311 = vmatprep.subr.mxu0 0.0
    %2312 = vmatpush1.msra.mxu0 0.0
    %2313 = vmatprep.subr.mxu0 0.0
    %2314 = vmatpush1.msra.mxu0 0.0
    %2315 = vmatprep.subr.mxu0 0.0
    %2316 = vmatpush1.msra.mxu0 0.0
    %2317 = vmatprep.subr.mxu0 0.0
    %2318 = vmatpush1.msra.mxu0 0.0
    %2319 = vmatprep.mubr.f32.mxu0 0.0
    %2320 = vmatmul.mubr.f32.gmra.mrb[0].mxu0 %v2253
    %v2321 = vpop.f32.mrb[0].mxu0
    %v2322 = vadd.f32 0.0, %v2321
    %v2323 = vpop.f32.mrb[0].mxu0
    %2324 = vdwg.mxu0
    %v2325 = vadd.f32 %v2247, %v2322
    %v2326 = vxor.u32 %v2325, 2147483648
    %v2327 = vmul.f32 %v2326, 1.442695
    %v2328 = vpow.pop %v2327
    %v2329 = vadd.f32 %v2328, 1.0
    %v2330 = vrcp.pop %v2329
    %v2331 = vmul.f32 1.0, %v2330
    %v2332 = vtanh.pop %v2325
    %v2333 = vmul.f32 %v2331, %v2071
    %2335 = vrot.lane.b32.xlu0 %v2332, 32
    %v2336 = vpop.permute.xlu0 %2335
    %v2338 = vmul.f32 %v2331, %v2336
    %2340 = vrot.lane.b32.xlu0 %v2338, 32
    %v2341 = vpop.permute.xlu0 %2340
    %v2343 = vadd.f32 %v2333, %v2341
    %v2344 = vtanh.pop %v2343
    %2346 = vrot.lane.b32.xlu0 %v2344, 32
    %v2347 = vpop.permute.xlu0 %2346
    %v2349 = vmul.f32 %v2331, %v2347
    %2351 = vrot.lane.b32.xlu0 %v2349, 64
    %v2352 = vpop.permute.xlu0 %2351
    %s2354 = scalar_lea.vmem [#allocation2], 14
    %2355 = vst.msk [vmem:[%s2354] sm:$0x3] %vm450, %v2352
    %v2356 = vld [vmem:[#allocation2] sm:$0x3]
    %v2357 = vld [vmem:[#allocation2 + $0x2] sm:$0x3]
    %v2358 = vld [vmem:[#allocation2 + $0x4] sm:$0x3]
    %v2359 = vld [vmem:[#allocation2 + $0x6] sm:$0x3]
    %v2360 = vld [vmem:[#allocation2 + $0x8] sm:$0x3]
    %v2361 = vld [vmem:[#allocation2 + $0xa] sm:$0x3]
    %v2362 = vld [vmem:[#allocation2 + $0xc] sm:$0x3]
    %v2363 = vld [vmem:[#allocation2 + $0xe] sm:$0x3]
    %v2364 = vld [vmem:[%s6] sm:$0xff]
    %v2365 = vld [vmem:[%s6 + $0x8] sm:$0xff]
    %v2366 = vld [vmem:[%s6 + $0x10] sm:$0xff]
    %v2367 = vld [vmem:[%s6 + $0x18] sm:$0xff]
    %v2368 = vld [vmem:[%s7] sm:$0x1]
    %v2370 = vlaneseq
    %v2371 = vshrl.u32 %v2370, 7
    %v2372 = vsub.s32 0, %v2371
    %v2373 = vrot.slane %v2368, %v2372
    %v2383 = vcombine.low %v2356, %v2357
    %v2384 = vcombine.low %v2358, %v2359
    %v2386 = vunpack.c.l.s4 1983009808
    %v2387 = vunpack.c.0.s8 %v2386
    %v2388 = vlaneseq
    %v2389 = vshrl.u32 %v2388, 7
    %v2390 = vsub.s32 %v2387, %v2389
    %v2391 = vrot.slane %v2383, %v2390
    %v2393 = vunpack.c.l.s4 1983009808
    %v2394 = vunpack.c.0.s8 %v2393
    %v2395 = vlaneseq
    %v2396 = vshrl.u32 %v2395, 7
    %v2397 = vsub.s32 %v2394, %v2396
    %v2398 = vrot.slane %v2384, %v2397
    %v2399 = vcombine.low %v2391, %v2398
    %v2400 = vcombine.low %v2360, %v2361
    %v2401 = vcombine.low %v2362, %v2363
    %v2403 = vunpack.c.l.s4 1983009808
    %v2404 = vunpack.c.0.s8 %v2403
    %v2405 = vlaneseq
    %v2406 = vshrl.u32 %v2405, 7
    %v2407 = vsub.s32 %v2404, %v2406
    %v2408 = vrot.slane %v2400, %v2407
    %v2410 = vunpack.c.l.s4 1983009808
    %v2411 = vunpack.c.0.s8 %v2410
    %v2412 = vlaneseq
    %v2413 = vshrl.u32 %v2412, 7
    %v2414 = vsub.s32 %v2411, %v2413
    %v2415 = vrot.slane %v2401, %v2414
    %v2416 = vcombine.low %v2408, %v2415
    %v2417 = vsel %vm178, %v2399, 0
    %v2419 = vsel %vm178, %v2416, 0
    %2421 = vmatprep.subr.mxu0 0.0
    %2422 = vmatpush1.msra.mxu0 %v2364
    %2423 = vmatprep.subr.mxu0 0.0
    %2424 = vmatpush1.msra.mxu0 %v2365
    %2425 = vmatprep.subr.mxu0 0.0
    %2426 = vmatpush1.msra.mxu0 %v2366
    %2427 = vmatprep.subr.mxu0 0.0
    %2428 = vmatpush1.msra.mxu0 %v2367
    %2429 = vmatprep.subr.mxu0 0.0
    %2430 = vmatpush1.msra.mxu0 0.0
    %2431 = vmatprep.subr.mxu0 0.0
    %2432 = vmatpush1.msra.mxu0 0.0
    %2433 = vmatprep.subr.mxu0 0.0
    %2434 = vmatpush1.msra.mxu0 0.0
    %2435 = vmatprep.subr.mxu0 0.0
    %2436 = vmatpush1.msra.mxu0 0.0
    %2437 = vmatprep.subr.mxu0 0.0
    %2438 = vmatpush1.msra.mxu0 0.0
    %2439 = vmatprep.subr.mxu0 0.0
    %2440 = vmatpush1.msra.mxu0 0.0
    %2441 = vmatprep.subr.mxu0 0.0
    %2442 = vmatpush1.msra.mxu0 0.0
    %2443 = vmatprep.subr.mxu0 0.0
    %2444 = vmatpush1.msra.mxu0 0.0
    %2445 = vmatprep.subr.mxu0 0.0
    %2446 = vmatpush1.msra.mxu0 0.0
    %2447 = vmatprep.subr.mxu0 0.0
    %2448 = vmatpush1.msra.mxu0 0.0
    %2449 = vmatprep.subr.mxu0 0.0
    %2450 = vmatpush1.msra.mxu0 0.0
    %2451 = vmatprep.subr.mxu0 0.0
    %2452 = vmatpush1.msra.mxu0 0.0
    %2453 = vmatprep.subr.mxu0 0.0
    %2454 = vmatpush1.msra.mxu0 0.0
    %2455 = vmatprep.subr.mxu0 0.0
    %2456 = vmatpush1.msra.mxu0 0.0
    %2457 = vmatprep.subr.mxu0 0.0
    %2458 = vmatpush1.msra.mxu0 0.0
    %2459 = vmatprep.subr.mxu0 0.0
    %2460 = vmatpush1.msra.mxu0 0.0
    %2461 = vmatprep.subr.mxu0 0.0
    %2462 = vmatpush1.msra.mxu0 0.0
    %2463 = vmatprep.subr.mxu0 0.0
    %2464 = vmatpush1.msra.mxu0 0.0
    %2465 = vmatprep.subr.mxu0 0.0
    %2466 = vmatpush1.msra.mxu0 0.0
    %2467 = vmatprep.subr.mxu0 0.0
    %2468 = vmatpush1.msra.mxu0 0.0
    %2469 = vmatprep.subr.mxu0 0.0
    %2470 = vmatpush1.msra.mxu0 0.0
    %2471 = vmatprep.subr.mxu0 0.0
    %2472 = vmatpush1.msra.mxu0 0.0
    %2473 = vmatprep.subr.mxu0 0.0
    %2474 = vmatpush1.msra.mxu0 0.0
    %2475 = vmatprep.subr.mxu0 0.0
    %2476 = vmatpush1.msra.mxu0 0.0
    %2477 = vmatprep.subr.mxu0 0.0
    %2478 = vmatpush1.msra.mxu0 0.0
    %2479 = vmatprep.subr.mxu0 0.0
    %2480 = vmatpush1.msra.mxu0 0.0
    %2481 = vmatprep.subr.mxu0 0.0
    %2482 = vmatpush1.msra.mxu0 0.0
    %2483 = vmatprep.subr.mxu0 0.0
    %2484 = vmatpush1.msra.mxu0 0.0
    %2485 = vmatprep.mubr.f32.mxu0 0.0
    %2486 = vmatmul.mubr.f32.gmra.mrb[0].mxu0 %v2417
    %v2487 = vpop.f32.mrb[0].mxu0
    %v2488 = vadd.f32 %v2373, %v2487
    %v2489 = vpop.f32.mrb[0].mxu0
    %2490 = vmatprep.mubr.f32.mxu0 0.0
    %2491 = vmatmul.mubr.f32.gmra.mrb[0].mxu0 %v2419
    %v2492 = vpop.f32.mrb[0].mxu0
    %v2493 = vadd.f32 %v2373, %v2492
    %v2494 = vpop.f32.mrb[0].mxu0
    %2495 = vdwg.mxu0
    %v2498 = vcombine.high %v2488, %v2488
    %v2500 = vunpack.c.l.s4 1983009808
    %v2501 = vunpack.c.0.s8 %v2500
    %v2502 = vlaneseq
    %v2503 = vshrl.u32 %v2502, 7
    %v2504 = vsub.s32 %v2501, %v2503
    %v2505 = vrot.slane %v2488, %v2504
    %v2507 = vunpack.c.l.s4 1983009808
    %v2508 = vunpack.c.0.s8 %v2507
    %v2509 = vlaneseq
    %v2510 = vshrl.u32 %v2509, 7
    %v2511 = vsub.s32 %v2508, %v2510
    %v2512 = vrot.slane %v2498, %v2511
    %v2513 = vcombine.high %v2505, %v2505
    %v2514 = vcombine.high %v2512, %v2512
    %v2515 = vcombine.high %v2493, %v2493
    %v2517 = vunpack.c.l.s4 1983009808
    %v2518 = vunpack.c.0.s8 %v2517
    %v2519 = vlaneseq
    %v2520 = vshrl.u32 %v2519, 7
    %v2521 = vsub.s32 %v2518, %v2520
    %v2522 = vrot.slane %v2493, %v2521
    %v2524 = vunpack.c.l.s4 1983009808
    %v2525 = vunpack.c.0.s8 %v2524
    %v2526 = vlaneseq
    %v2527 = vshrl.u32 %v2526, 7
    %v2528 = vsub.s32 %v2525, %v2527
    %v2529 = vrot.slane %v2515, %v2528
    %v2530 = vcombine.high %v2522, %v2522
    %v2531 = vcombine.high %v2529, %v2529
    %vm2540 = vcmask 9216
    %2541 = vst.msk [vmem:[%s8] sm:$0x3] %vm2540, %v2505
    %2542 = vst.msk [vmem:[%s8 + $0x2] sm:$0x3] %vm2540, %v2513
    %2543 = vst.msk [vmem:[%s8 + $0x4] sm:$0x3] %vm2540, %v2512
    %2544 = vst.msk [vmem:[%s8 + $0x6] sm:$0x3] %vm2540, %v2514
    %2545 = vst.msk [vmem:[%s8 + $0x8] sm:$0x3] %vm2540, %v2522
    %2546 = vst.msk [vmem:[%s8 + $0xa] sm:$0x3] %vm2540, %v2530
    %2547 = vst.msk [vmem:[%s8 + $0xc] sm:$0x3] %vm2540, %v2529
    %2548 = vst.msk [vmem:[%s8 + $0xe] sm:$0x3] %vm2540, %v2531
    // Predicated region
    $region46: #{tpu_custom_call.1} parent=1 // pred_check
      _
    $region47: #{tpu_custom_call.1} parent=1 // pred_check_branch
      %2550 = sbr.rel (0) target = $region49
    $region48: #{tpu_custom_call.1} parent=1 // pred_region
      _
    $region49: #{tpu_custom_call.1} parent=1 // pred_fallthru
      _
    // Predicated region
    $region50: #{tpu_custom_call.1} parent=1 // pred_check
      _
    $region51: #{tpu_custom_call.1} parent=1 // pred_check_branch
      %2552 = sbr.rel (0) target = $region53
    $region52: #{tpu_custom_call.1} parent=1 // pred_region
      _
    $region53: #{tpu_custom_call.1} parent=1 // pred_fallthru
      _
    %2553 = vsyncpa [#allocation4], 1
    %2554 = vsyncpa [#allocation6], 1

</llo_original>
